<compile_context>
chip_gen: v5e
topology: v5e:2x2
jax: 0.10.0
libtpu: 0.0.40
codegen_flags: <defaults>
</compile_context>

<pallas_src>
import functools

import numpy as np
import jax
import jax.numpy as jnp
from jax.experimental import pallas as pl
from jax.experimental.pallas import tpu as pltpu

DIM = 32          # reference module uses 512
EPS = 1e-5
LANE = 128
VMEM_LIMIT = 48 * 1024 * 1024


def _round_up(x, m):
    return (x + m - 1) // m * m


# ---------------------------------------------------------------------------
# Glue: exact PyTorch adaptive-avg-pool and bilinear-upsample matrices
# ---------------------------------------------------------------------------
def _adaptive_pool_matrix_1d(out_size, in_size):
    """P[o, i] = 1/count for i in the PyTorch AdaptiveAvgPool bin of output o."""
    P = np.zeros((out_size, in_size), dtype=np.float32)
    for o in range(out_size):
        start = (o * in_size) // out_size                  # floor
        end = -((-(o + 1) * in_size) // out_size)          # ceil
        P[o, start:end] = 1.0 / float(end - start)
    return P


def _bilinear_matrix_1d(out_size, in_size):
    """U[o, i]: bilinear weights, align_corners=False (F.interpolate)."""
    U = np.zeros((out_size, in_size), dtype=np.float32)
    scale = in_size / out_size
    for o in range(out_size):
        src = max((o + 0.5) * scale - 0.5, 0.0)
        i0 = min(int(np.floor(src)), in_size - 1)
        i1 = min(i0 + 1, in_size - 1)
        frac = src - i0
        U[o, i0] += 1.0 - frac
        U[o, i1] += frac
    return U


def _build_glue(pool_scales, H, W):
    """Stacked pooling / upsample matrices and the per-branch block mask."""
    Ps, Ms = [], []
    for s in pool_scales:
        Ps.append(np.kron(_adaptive_pool_matrix_1d(s, H),
                          _adaptive_pool_matrix_1d(s, W)))   # (s*s, HW)
        Ms.append(np.kron(_bilinear_matrix_1d(H, s),
                          _bilinear_matrix_1d(W, s)))        # (HW, s*s)
    P_all = np.concatenate(Ps, axis=0)                       # (SS, HW)
    M_all = np.concatenate(Ms, axis=1)                       # (HW, SS)
    SS = P_all.shape[0]
    nb = len(pool_scales)
    mask = np.zeros((SS, nb * DIM), np.float32)
    off = 0
    for i, s in enumerate(pool_scales):
        mask[off:off + s * s, i * DIM:(i + 1) * DIM] = 1.0
        off += s * s
    return P_all, M_all, mask


# ---------------------------------------------------------------------------
# Kernel 1: fused PPM branches -> concatenated, padded, slab-layout features
# ---------------------------------------------------------------------------
def _branches_kernel(H, W, x_ref, p_ref, w_ref, b_ref, mask_ref, m_ref, out_ref):
    W2 = W + 2
    R = out_ref.shape[1]
    TS = out_ref.shape[2]
    Ctp = out_ref.shape[3]
    TR = H // R
    HW = H * W

    xb = x_ref[0].astype(jnp.bfloat16)                                   # (HW, C)
    # adaptive-avg-pool for ALL scales in one matmul (stacked pooling matrix)
    pooled = jnp.dot(p_ref[...], xb, preferred_element_type=jnp.float32)  # (SS, C)
    # all 1x1 convs at once (BN scale pre-folded into weights); the block mask
    # keeps each pooled row paired with its own branch's weights only.
    z = jnp.dot(pooled.astype(jnp.bfloat16), w_ref[...],
                preferred_element_type=jnp.float32)                       # (SS, nb*DIM)
    y = jnp.maximum(z + b_ref[...], 0.0) * mask_ref[...]                  # bias+ReLU
    # bilinear upsample of all branches with the stacked upsample matrix
    up = jnp.dot(m_ref[...], y.astype(jnp.bfloat16),
                 preferred_element_type=jnp.float32)                      # (HW, nb*DIM)

    C = xb.shape[1]
    nbd = up.shape[1]
    pad_ch = Ctp - nbd - C
    pieces = [up.astype(jnp.bfloat16), xb]                 # channel order: [branches | x | 0-pad]
    if pad_ch > 0:
        pieces.append(jnp.zeros((HW, pad_ch), jnp.bfloat16))
    feats = jnp.concatenate(pieces, axis=-1)                              # (HW, Ctp)

    # Zero-pad spatially (for the 3x3 conv) and emit flattened-row slabs of
    # TR output rows + 2 halo rows so the head is row-tileable with plain
    # BlockSpecs (no overlapping windows / no wrapper pad+concat HBM passes).
    img = feats.reshape(H, W, Ctp)
    zcol = jnp.zeros((H, 1, Ctp), jnp.bfloat16)
    wide = jnp.concatenate([zcol, img, zcol], axis=1)                     # (H, W+2, Ctp)
    flat = wide.reshape(H * W2, Ctp)
    extra = (R - 1) * TR * W2 + TS - (H + 2) * W2
    padded = jnp.concatenate(
        [jnp.zeros((W2, Ctp), jnp.bfloat16), flat,
         jnp.zeros((W2 + extra, Ctp), jnp.bfloat16)], axis=0)
    for r in range(R):
        out_ref[0, r] = padded[r * TR * W2:r * TR * W2 + TS, :]


def _run_branches(x_flat, p_all, w_cat, b_cat, mask, m_all, H, W, R, TS, Ctp):
    N, HW, C = x_flat.shape
    SS = p_all.shape[0]
    NBD = w_cat.shape[1]
    flops = 2 * N * (SS * HW * C + SS * C * NBD + HW * SS * NBD)
    bytes_accessed = int(x_flat.size * 4 + N * R * TS * Ctp * 2
                         + (p_all.size + w_cat.size + m_all.size) * 2
                         + (b_cat.size + mask.size) * 4)
    return pl.pallas_call(
        functools.partial(_branches_kernel, H, W),
        out_shape=jax.ShapeDtypeStruct((N, R, TS, Ctp), jnp.bfloat16),
        grid=(N,),
        in_specs=[
            pl.BlockSpec((1, HW, C), lambda n: (n, 0, 0)),
            pl.BlockSpec((SS, HW), lambda n: (0, 0)),
            pl.BlockSpec((C, NBD), lambda n: (0, 0)),
            pl.BlockSpec((1, NBD), lambda n: (0, 0)),
            pl.BlockSpec((SS, NBD), lambda n: (0, 0)),
            pl.BlockSpec((HW, SS), lambda n: (0, 0)),
        ],
        out_specs=pl.BlockSpec((1, R, TS, Ctp), lambda n: (n, 0, 0, 0)),
        compiler_params=pltpu.CompilerParams(
            dimension_semantics=("parallel",),
            vmem_limit_bytes=VMEM_LIMIT),
        cost_estimate=pl.CostEstimate(flops=flops, transcendentals=0,
                                      bytes_accessed=bytes_accessed),
    )(x_flat, p_all, w_cat, b_cat, mask, m_all)


# ---------------------------------------------------------------------------
# Kernel 2: head (conv3x3 pad1 -> BN -> ReLU -> conv1x1 + bias), tiled over
#           (batch, row-slabs, channel chunks) with a VMEM f32 accumulator.
# ---------------------------------------------------------------------------
def _head_kernel(W, x_ref, w_ref, b2_ref, wf_ref, bf_ref, out_ref, acc_ref):
    W2 = W + 2
    TRW2 = acc_ref.shape[0]
    c = pl.program_id(2)

    @pl.when(c == 0)
    def _():
        acc_ref[...] = jnp.zeros_like(acc_ref)

    xb = x_ref[0, 0]                                       # (TS, CT) bf16, flattened rows
    acc = acc_ref[...]
    for dy in range(3):
        for dx in range(3):
            s = dy * W2 + dx                               # row-offset slice = conv tap shift
            acc = acc + jnp.dot(xb[s:s + TRW2, :], w_ref[dy * 3 + dx],
                                preferred_element_type=jnp.float32)
    acc_ref[...] = acc

    @pl.when(c == pl.num_programs(2) - 1)
    def _():
        h = jnp.maximum(acc_ref[...] + b2_ref[...], 0.0)   # BN bias (scale folded) + ReLU
        out = jnp.dot(h.astype(jnp.bfloat16), wf_ref[...],
                      preferred_element_type=jnp.float32) + bf_ref[...]
        out_ref[0, 0] = out.astype(out_ref.dtype)


def _run_head(feats, w33, b2, wf, bf, H, W, CT):
    N, R, TS, Ctp = feats.shape
    dim = w33.shape[2]
    NCp = wf.shape[1]
    W2 = W + 2
    TR = H // R
    TRW2 = TR * W2
    assert Ctp % CT == 0
    c_steps = Ctp // CT
    flops = 2 * N * R * TRW2 * dim * (9 * Ctp + NCp)
    bytes_accessed = int(feats.size * 2 + N * R * TRW2 * NCp * 4
                         + N * R * (w33.size * 2 + wf.size * 2
                                    + (b2.size + bf.size) * 4))
    return pl.pallas_call(
        functools.partial(_head_kernel, W),
        out_shape=jax.ShapeDtypeStruct((N, R, TRW2, NCp), jnp.float32),
        grid=(N, R, c_steps),
        in_specs=[
            pl.BlockSpec((1, 1, TS, CT), lambda n, r, c: (n, r, 0, c)),
            pl.BlockSpec((9, CT, dim), lambda n, r, c: (0, c, 0)),
            pl.BlockSpec((1, dim), lambda n, r, c: (0, 0)),
            pl.BlockSpec((dim, NCp), lambda n, r, c: (0, 0)),
            pl.BlockSpec((1, NCp), lambda n, r, c: (0, 0)),
        ],
        out_specs=pl.BlockSpec((1, 1, TRW2, NCp), lambda n, r, c: (n, r, 0, 0)),
        scratch_shapes=[pltpu.VMEM((TRW2, dim), jnp.float32)],
        compiler_params=pltpu.CompilerParams(
            dimension_semantics=("parallel", "parallel", "arbitrary"),
            vmem_limit_bytes=VMEM_LIMIT),
        cost_estimate=pl.CostEstimate(flops=flops, transcendentals=0,
                                      bytes_accessed=bytes_accessed),
    )(feats, w33, b2, wf, bf)


# ---------------------------------------------------------------------------
# Parameters (synthetic, PyTorch-shaped) and forward pass
# ---------------------------------------------------------------------------
def init_params(key, in_channels, num_classes, pool_scales):
    nb = len(pool_scales)
    c_tot = in_channels + nb * DIM
    keys = jax.random.split(key, 5 * nb + 8)
    ki = iter(range(len(keys)))
    params = {"ppm": []}
    for _ in pool_scales:
        params["ppm"].append(dict(
            w=jax.random.normal(keys[next(ki)], (in_channels, DIM), jnp.float32) * 0.1,
            gamma=jax.random.uniform(keys[next(ki)], (DIM,), jnp.float32, 0.5, 1.5),
            beta=jax.random.normal(keys[next(ki)], (DIM,), jnp.float32) * 0.1,
            mean=jax.random.normal(keys[next(ki)], (DIM,), jnp.float32) * 0.1,
            var=jnp.ones((DIM,), jnp.float32)))
    params["w33"] = jax.random.normal(keys[next(ki)], (3, 3, c_tot, DIM), jnp.float32) * 0.05
    params["bn2_gamma"] = jax.random.uniform(keys[next(ki)], (DIM,), jnp.float32, 0.5, 1.5)
    params["bn2_beta"] = jax.random.normal(keys[next(ki)], (DIM,), jnp.float32) * 0.1
    params["bn2_mean"] = jax.random.normal(keys[next(ki)], (DIM,), jnp.float32) * 0.1
    params["bn2_var"] = jnp.ones((DIM,), jnp.float32)
    params["wf"] = jax.random.normal(keys[next(ki)], (DIM, num_classes), jnp.float32) * 0.1
    params["bf"] = jax.random.normal(keys[next(ki)], (num_classes,), jnp.float32) * 0.1
    return params


def ppm_forward(x_nchw, params, pool_scales, num_classes):
    N, C, H, W = x_nchw.shape
    nb = len(pool_scales)
    HW = H * W
    W2 = W + 2
    TR = 8 if H % 8 == 0 else H                 # output rows per head tile
    R = H // TR
    TS = _round_up((TR + 2) * W2 + 2, 8)        # flattened slab rows (2-row halo + pad)
    Ctot = C + nb * DIM
    Ctp = _round_up(Ctot, LANE)                 # lane-dense feats channels
    NCp = _round_up(num_classes, LANE)          # lane-dense head output
    CT = 128 if Ctp <= 512 else 512             # head input-channel chunk

    x_nhwc = jnp.transpose(x_nchw, (0, 2, 3, 1)).astype(jnp.float32)
    x_flat = x_nhwc.reshape(N, HW, C)

    # glue matrices (exact PyTorch adaptive-pool / bilinear align_corners=False)
    P_np, M_np, mask_np = _build_glue(pool_scales, H, W)
    p_all = jnp.asarray(P_np, jnp.bfloat16)
    m_all = jnp.asarray(M_np, jnp.bfloat16)
    mask = jnp.asarray(mask_np, jnp.float32)

    # fold eval-mode BN into the branch 1x1 convs and stack branches column-wise
    w_cols, b_cols = [], []
    for p in params["ppm"]:
        s = p["gamma"] / jnp.sqrt(p["var"] + EPS)
        w_cols.append(p["w"] * s[None, :])
        b_cols.append(p["beta"] - p["mean"] * s)
    w_cat = jnp.concatenate(w_cols, axis=1).astype(jnp.bfloat16)      # (C, nb*DIM)
    b_cat = jnp.concatenate(b_cols, axis=0)[None, :]                   # (1, nb*DIM)

    feats = _run_branches(x_flat, p_all, w_cat, b_cat, mask, m_all,
                          H, W, R, TS, Ctp)                            # (N,R,TS,Ctp) bf16

    # head params: permute w33 input channels to the kernel's feats layout
    # ([branches | x | zero-pad]), fold BN2 scale, pad channels / classes.
    s2 = params["bn2_gamma"] / jnp.sqrt(params["bn2_var"] + EPS)
    b2 = (params["bn2_beta"] - params["bn2_mean"] * s2)[None, :]
    w33 = params["w33"]                                                # (3,3,Ctot,DIM)
    w33_perm = jnp.concatenate([w33[:, :, C:, :], w33[:, :, :C, :]], axis=2)
    w33_perm = jnp.pad(w33_perm, ((0, 0), (0, 0), (0, Ctp - Ctot), (0, 0)))
    w33_k = (w33_perm * s2[None, None, None, :]).reshape(9, Ctp, DIM).astype(jnp.bfloat16)
    wf = jnp.pad(params["wf"], ((0, 0), (0, NCp - num_classes))).astype(jnp.bfloat16)
    bf = jnp.pad(params["bf"], (0, NCp - num_classes))[None, :]

    out_rows = _run_head(feats, w33_k, b2, wf, bf, H, W, CT)           # (N,R,TR*W2,NCp)

    out = out_rows.reshape(N, R, TR, W2, NCp)[:, :, :, :W, :num_classes]
    out = out.reshape(N, H, W, num_classes)
    return jnp.transpose(out, (0, 3, 1, 2))                            # NHWC -> NCHW


# ---------------------------------------------------------------------------
# Pure-JAX f32 reference (PyTorch semantics) for a correctness check
# ---------------------------------------------------------------------------
def ppm_reference(x_nchw, params, pool_scales, num_classes):
    N, C, H, W = x_nchw.shape
    x_nhwc = jnp.transpose(x_nchw.astype(jnp.float32), (0, 2, 3, 1))
    x_flat = x_nhwc.reshape(N, H * W, C)
    branches = []
    for scale, p in zip(pool_scales, params["ppm"]):
        P = jnp.asarray(np.kron(_adaptive_pool_matrix_1d(scale, H),
                                _adaptive_pool_matrix_1d(scale, W)))
        M = jnp.asarray(np.kron(_bilinear_matrix_1d(H, scale),
                                _bilinear_matrix_1d(W, scale)))
        pooled = jnp.einsum("sh,nhc->nsc", P, x_flat)
        y = jnp.einsum("nsc,cd->nsd", pooled, p["w"])
        s = p["gamma"] / jnp.sqrt(p["var"] + EPS)
        b = p["beta"] - p["mean"] * s
        y = jnp.maximum(y * s + b, 0.0)
        up = jnp.einsum("hs,nsd->nhd", M, y)
        branches.append(up.reshape(N, H, W, DIM))
    feats = jnp.concatenate([x_nhwc] + branches, axis=-1)
    fp = jnp.pad(feats, ((0, 0), (1, 1), (1, 1), (0, 0)))
    acc = jnp.zeros((N, H, W, DIM), jnp.float32)
    for dy in range(3):
        for dx in range(3):
            acc = acc + jnp.einsum("nhwc,cd->nhwd",
                                   fp[:, dy:dy + H, dx:dx + W, :],
                                   params["w33"][dy, dx])
    s2 = params["bn2_gamma"] / jnp.sqrt(params["bn2_var"] + EPS)
    b2 = params["bn2_beta"] - params["bn2_mean"] * s2
    h = jnp.maximum(acc * s2 + b2, 0.0)
    out = jnp.einsum("nhwd,dk->nhwk", h, params["wf"]) + params["bf"]
    return jnp.transpose(out, (0, 3, 1, 2))


if __name__ == "__main__":
    in_channels = 4
    num_classes = 3
    pool_scales = (1, 2, 3, 6)
    N, H, W = 2, 16, 16

    key = jax.random.PRNGKey(0)
    kx, kp = jax.random.split(key)
    x = jax.random.normal(kx, (N, in_channels, H, W), jnp.float32)     # NCHW, like PyTorch
    params = init_params(kp, in_channels, num_classes, pool_scales)

    fwd = jax.jit(functools.partial(ppm_forward, pool_scales=pool_scales,
                                    num_classes=num_classes))
    out = jax.block_until_ready(fwd(x, params))
    assert out.shape == (N, num_classes, H, W), out.shape
    assert bool(jnp.all(jnp.isfinite(out)))

    # numerical check against a pure-JAX f32 reference (kernel uses bf16 MXU
    # operands, hence the loose tolerance)
    ref = jax.block_until_ready(ppm_reference(x, params, pool_scales, num_classes))
    err = float(jnp.max(jnp.abs(out - ref)))
    scale = float(jnp.max(jnp.abs(ref)))
    assert err <= 0.05 * scale + 0.05, ("mismatch vs reference", err, scale)
    print("KERNEL_OK")
</pallas_src>

<mosaic_0001>
module attributes {stable_mosaic.version = 11 : i64} {
  func.func @_branches_kernel(%arg0: i32, %arg1: memref<1x256x4xf32, #tpu.memory_space<vmem>>, %arg2: memref<50x256xbf16, #tpu.memory_space<vmem>>, %arg3: memref<4x128xbf16, #tpu.memory_space<vmem>>, %arg4: memref<1x128xf32, #tpu.memory_space<vmem>>, %arg5: memref<50x128xf32, #tpu.memory_space<vmem>>, %arg6: memref<256x50xbf16, #tpu.memory_space<vmem>>, %arg7: memref<1x2x184x256xbf16, #tpu.memory_space<vmem>>) attributes {dimension_semantics = [#tpu.dimension_semantics<parallel>], iteration_bounds = array<i64: 2>, scalar_prefetch = 0 : i64, scratch_operands = 0 : i64, tpu.core_type = #tpu.core_type<tc>, window_params = [{transform_indices = @transform_0, window_bounds = array<i64: 1, 256, 4>}, {pipeline_mode = #tpu.pipeline_mode<synchronous>, transform_indices = @transform_1, window_bounds = array<i64: 50, 256>}, {pipeline_mode = #tpu.pipeline_mode<synchronous>, transform_indices = @transform_2, window_bounds = array<i64: 4, 128>}, {pipeline_mode = #tpu.pipeline_mode<synchronous>, transform_indices = @transform_3, window_bounds = array<i64: 1, 128>}, {pipeline_mode = #tpu.pipeline_mode<synchronous>, transform_indices = @transform_4, window_bounds = array<i64: 50, 128>}, {pipeline_mode = #tpu.pipeline_mode<synchronous>, transform_indices = @transform_5, window_bounds = array<i64: 256, 50>}, {transform_indices = @transform_6, window_bounds = array<i64: 1, 2, 184, 256>}]} {
    %c0 = arith.constant 0 : index
    %c0_0 = arith.constant 0 : index
    %c0_1 = arith.constant 0 : index
    %0 = vector.load %arg1[%c0, %c0_0, %c0_1] : memref<1x256x4xf32, #tpu.memory_space<vmem>>, vector<1x256x4xf32>
    %1 = vector.shape_cast %0 : vector<1x256x4xf32> to vector<256x4xf32>
    %2 = arith.truncf %1 : vector<256x4xf32> to vector<256x4xbf16>
    %c0_2 = arith.constant 0 : index
    %c0_3 = arith.constant 0 : index
    %3 = vector.load %arg2[%c0_2, %c0_3] : memref<50x256xbf16, #tpu.memory_space<vmem>>, vector<50x256xbf16>
    %cst = arith.constant dense<0.000000e+00> : vector<50x4xf32>
    %4 = tpu.matmul %3, %2, %cst {dimension_numbers = #tpu.dot_dimension_numbers<[1], [0], [0], [1], [0, 0, 1, 1], [], []>} : vector<50x256xbf16>, vector<256x4xbf16>, vector<50x4xf32> -> vector<50x4xf32>
    %5 = arith.truncf %4 : vector<50x4xf32> to vector<50x4xbf16>
    %c0_4 = arith.constant 0 : index
    %c0_5 = arith.constant 0 : index
    %6 = vector.load %arg3[%c0_4, %c0_5] : memref<4x128xbf16, #tpu.memory_space<vmem>>, vector<4x128xbf16>
    %cst_6 = arith.constant dense<0.000000e+00> : vector<50x128xf32>
    %7 = tpu.matmul %5, %6, %cst_6 {dimension_numbers = #tpu.dot_dimension_numbers<[1], [0], [0], [1], [0, 0, 1, 1], [], []>} : vector<50x4xbf16>, vector<4x128xbf16>, vector<50x128xf32> -> vector<50x128xf32>
    %c0_7 = arith.constant 0 : index
    %c0_8 = arith.constant 0 : index
    %8 = vector.load %arg4[%c0_7, %c0_8] : memref<1x128xf32, #tpu.memory_space<vmem>>, vector<1x128xf32>
    %9 = vector.broadcast %8 : vector<1x128xf32> to vector<50x128xf32>
    %10 = arith.addf %7, %9 : vector<50x128xf32>
    %cst_9 = arith.constant 0.000000e+00 : f32
    %11 = vector.broadcast %cst_9 : f32 to vector<50x128xf32>
    %12 = arith.maximumf %10, %11 : vector<50x128xf32>
    %c0_10 = arith.constant 0 : index
    %c0_11 = arith.constant 0 : index
    %13 = vector.load %arg5[%c0_10, %c0_11] : memref<50x128xf32, #tpu.memory_space<vmem>>, vector<50x128xf32>
    %14 = arith.mulf %12, %13 : vector<50x128xf32>
    %c0_12 = arith.constant 0 : index
    %c0_13 = arith.constant 0 : index
    %15 = vector.load %arg6[%c0_12, %c0_13] : memref<256x50xbf16, #tpu.memory_space<vmem>>, vector<256x50xbf16>
    %16 = arith.truncf %14 : vector<50x128xf32> to vector<50x128xbf16>
    %cst_14 = arith.constant dense<0.000000e+00> : vector<256x128xf32>
    %17 = tpu.matmul %15, %16, %cst_14 {dimension_numbers = #tpu.dot_dimension_numbers<[1], [0], [0], [1], [0, 0, 1, 1], [], []>} : vector<256x50xbf16>, vector<50x128xbf16>, vector<256x128xf32> -> vector<256x128xf32>
    %18 = arith.truncf %17 : vector<256x128xf32> to vector<256x128xbf16>
    %cst_15 = arith.constant 0.000000e+00 : bf16
    %19 = vector.broadcast %cst_15 : bf16 to vector<256x124xbf16>
    %20 = tpu.concatenate %18, %2, %19 in 1 : vector<256x128xbf16>, vector<256x4xbf16>, vector<256x124xbf16> -> vector<256x256xbf16>
    %21 = vector.shape_cast %20 : vector<256x256xbf16> to vector<16x16x256xbf16>
    %cst_16 = arith.constant 0.000000e+00 : bf16
    %22 = vector.broadcast %cst_16 : bf16 to vector<16x1x256xbf16>
    %23 = tpu.concatenate %22, %21, %22 in 1 : vector<16x1x256xbf16>, vector<16x16x256xbf16>, vector<16x1x256xbf16> -> vector<16x18x256xbf16>
    %24 = vector.shape_cast %23 : vector<16x18x256xbf16> to vector<288x256xbf16>
    %cst_17 = arith.constant 0.000000e+00 : bf16
    %25 = vector.broadcast %cst_17 : bf16 to vector<18x256xbf16>
    %cst_18 = arith.constant 0.000000e+00 : bf16
    %26 = vector.broadcast %cst_18 : bf16 to vector<22x256xbf16>
    %27 = tpu.concatenate %25, %24, %26 in 0 : vector<18x256xbf16>, vector<288x256xbf16>, vector<22x256xbf16> -> vector<328x256xbf16>
    %28 = vector.extract_strided_slice %27 {offsets = [0, 0], sizes = [184, 256], strides = [1, 1]} : vector<328x256xbf16> to vector<184x256xbf16>
    %c0_19 = arith.constant 0 : index
    %c0_20 = arith.constant 0 : index
    %c0_21 = arith.constant 0 : index
    %c0_22 = arith.constant 0 : index
    %29 = vector.load %arg7[%c0_19, %c0_20, %c0_21, %c0_22] : memref<1x2x184x256xbf16, #tpu.memory_space<vmem>>, vector<1x1x184x256xbf16>
    %30 = vector.shape_cast %29 : vector<1x1x184x256xbf16> to vector<184x256xbf16>
    %31 = vector.shape_cast %28 : vector<184x256xbf16> to vector<1x1x184x256xbf16>
    tpu.vector_store %arg7[%c0_19, %c0_20, %c0_21, %c0_22], %31 {strides = array<i32>} : memref<1x2x184x256xbf16, #tpu.memory_space<vmem>>, vector<1x1x184x256xbf16>,
    %32 = vector.extract_strided_slice %27 {offsets = [144, 0], sizes = [184, 256], strides = [1, 1]} : vector<328x256xbf16> to vector<184x256xbf16>
    %c0_23 = arith.constant 0 : index
    %c1 = arith.constant 1 : index
    %c0_24 = arith.constant 0 : index
    %c0_25 = arith.constant 0 : index
    %33 = vector.load %arg7[%c0_23, %c1, %c0_24, %c0_25] : memref<1x2x184x256xbf16, #tpu.memory_space<vmem>>, vector<1x1x184x256xbf16>
    %34 = vector.shape_cast %33 : vector<1x1x184x256xbf16> to vector<184x256xbf16>
    %35 = vector.shape_cast %32 : vector<184x256xbf16> to vector<1x1x184x256xbf16>
    tpu.vector_store %arg7[%c0_23, %c1, %c0_24, %c0_25], %35 {strides = array<i32>} : memref<1x2x184x256xbf16, #tpu.memory_space<vmem>>, vector<1x1x184x256xbf16>,
    return
  }
  func.func @transform_0(%arg0: i32) -> (i32, i32, i32) {
    %c0_i32 = arith.constant 0 : i32
    %c0_i32_0 = arith.constant 0 : i32
    %c0_i32_1 = arith.constant 0 : i32
    return %arg0, %c0_i32, %c0_i32_0 : i32, i32, i32
  }
  func.func @transform_1(%arg0: i32) -> (i32, i32) {
    %c0_i32 = arith.constant 0 : i32
    %c0_i32_0 = arith.constant 0 : i32
    %c0_i32_1 = arith.constant 0 : i32
    return %c0_i32, %c0_i32_0 : i32, i32
  }
  func.func @transform_2(%arg0: i32) -> (i32, i32) {
    %c0_i32 = arith.constant 0 : i32
    %c0_i32_0 = arith.constant 0 : i32
    %c0_i32_1 = arith.constant 0 : i32
    return %c0_i32, %c0_i32_0 : i32, i32
  }
  func.func @transform_3(%arg0: i32) -> (i32, i32) {
    %c0_i32 = arith.constant 0 : i32
    %c0_i32_0 = arith.constant 0 : i32
    %c0_i32_1 = arith.constant 0 : i32
    return %c0_i32, %c0_i32_0 : i32, i32
  }
  func.func @transform_4(%arg0: i32) -> (i32, i32) {
    %c0_i32 = arith.constant 0 : i32
    %c0_i32_0 = arith.constant 0 : i32
    %c0_i32_1 = arith.constant 0 : i32
    return %c0_i32, %c0_i32_0 : i32, i32
  }
  func.func @transform_5(%arg0: i32) -> (i32, i32) {
    %c0_i32 = arith.constant 0 : i32
    %c0_i32_0 = arith.constant 0 : i32
    %c0_i32_1 = arith.constant 0 : i32
    return %c0_i32, %c0_i32_0 : i32, i32
  }
  func.func @transform_6(%arg0: i32) -> (i32, i32, i32, i32) {
    %c0_i32 = arith.constant 0 : i32
    %c0_i32_0 = arith.constant 0 : i32
    %c0_i32_1 = arith.constant 0 : i32
    %c0_i32_2 = arith.constant 0 : i32
    return %arg0, %c0_i32, %c0_i32_0, %c0_i32_1 : i32, i32, i32, i32
  }
}

module attributes {stable_mosaic.version = 11 : i64} {
  func.func @_head_kernel(%arg0: i32, %arg1: i32, %arg2: i32, %arg3: memref<1x1x184x128xbf16, #tpu.memory_space<vmem>>, %arg4: memref<9x128x32xbf16, #tpu.memory_space<vmem>>, %arg5: memref<1x32xf32, #tpu.memory_space<vmem>>, %arg6: memref<32x128xbf16, #tpu.memory_space<vmem>>, %arg7: memref<1x128xf32, #tpu.memory_space<vmem>>, %arg8: memref<1x1x144x128xf32, #tpu.memory_space<vmem>>, %arg9: memref<144x32xf32, #tpu.memory_space<vmem>>) attributes {dimension_semantics = [#tpu.dimension_semantics<parallel>, #tpu.dimension_semantics<parallel>, #tpu.dimension_semantics<arbitrary>], iteration_bounds = array<i64: 2, 2, 2>, scalar_prefetch = 0 : i64, scratch_operands = 1 : i64, tpu.core_type = #tpu.core_type<tc>, window_params = [{transform_indices = @transform_0, window_bounds = array<i64: 1, 1, 184, 128>}, {transform_indices = @transform_1, window_bounds = array<i64: 9, 128, 32>}, {pipeline_mode = #tpu.pipeline_mode<synchronous>, transform_indices = @transform_2, window_bounds = array<i64: 1, 32>}, {pipeline_mode = #tpu.pipeline_mode<synchronous>, transform_indices = @transform_3, window_bounds = array<i64: 32, 128>}, {pipeline_mode = #tpu.pipeline_mode<synchronous>, transform_indices = @transform_4, window_bounds = array<i64: 1, 128>}, {transform_indices = @transform_5, window_bounds = array<i64: 1, 1, 144, 128>}]} {
    %c0_i32 = arith.constant 0 : i32
    %0 = arith.cmpi eq, %arg2, %c0_i32 : i32
    %1 = arith.extui %0 : i1 to i32
    %c0_i32_0 = arith.constant 0 : i32
    %2 = arith.cmpi ne, %1, %c0_i32_0 : i32
    scf.if %2 {
      %cst_36 = arith.constant 0.000000e+00 : f32
      %55 = vector.broadcast %cst_36 : f32 to vector<144x32xf32>
      %c0_37 = arith.constant 0 : index
      %c0_38 = arith.constant 0 : index
      %56 = vector.load %arg9[%c0_37, %c0_38] : memref<144x32xf32, #tpu.memory_space<vmem>>, vector<144x32xf32>
      tpu.vector_store %arg9[%c0_37, %c0_38], %55 {strides = array<i32>} : memref<144x32xf32, #tpu.memory_space<vmem>>, vector<144x32xf32>,
    } else {
    }
    %c0 = arith.constant 0 : index
    %c0_1 = arith.constant 0 : index
    %c0_2 = arith.constant 0 : index
    %c0_3 = arith.constant 0 : index
    %3 = vector.load %arg3[%c0, %c0_1, %c0_2, %c0_3] : memref<1x1x184x128xbf16, #tpu.memory_space<vmem>>, vector<1x1x184x128xbf16>
    %4 = vector.shape_cast %3 : vector<1x1x184x128xbf16> to vector<184x128xbf16>
    %c0_4 = arith.constant 0 : index
    %c0_5 = arith.constant 0 : index
    %5 = vector.load %arg9[%c0_4, %c0_5] : memref<144x32xf32, #tpu.memory_space<vmem>>, vector<144x32xf32>
    %6 = vector.extract_strided_slice %4 {offsets = [0, 0], sizes = [144, 128], strides = [1, 1]} : vector<184x128xbf16> to vector<144x128xbf16>
    %c0_6 = arith.constant 0 : index
    %c0_7 = arith.constant 0 : index
    %c0_8 = arith.constant 0 : index
    %7 = vector.load %arg4[%c0_6, %c0_7, %c0_8] : memref<9x128x32xbf16, #tpu.memory_space<vmem>>, vector<1x128x32xbf16>
    %8 = vector.shape_cast %7 : vector<1x128x32xbf16> to vector<128x32xbf16>
    %cst = arith.constant dense<0.000000e+00> : vector<144x32xf32>
    %9 = tpu.matmul %6, %8, %cst {dimension_numbers = #tpu.dot_dimension_numbers<[1], [0], [0], [1], [0, 0, 1, 1], [], []>} : vector<144x128xbf16>, vector<128x32xbf16>, vector<144x32xf32> -> vector<144x32xf32>
    %10 = arith.addf %5, %9 : vector<144x32xf32>
    %11 = vector.extract_strided_slice %4 {offsets = [1, 0], sizes = [144, 128], strides = [1, 1]} : vector<184x128xbf16> to vector<144x128xbf16>
    %c1 = arith.constant 1 : index
    %c0_9 = arith.constant 0 : index
    %c0_10 = arith.constant 0 : index
    %12 = vector.load %arg4[%c1, %c0_9, %c0_10] : memref<9x128x32xbf16, #tpu.memory_space<vmem>>, vector<1x128x32xbf16>
    %13 = vector.shape_cast %12 : vector<1x128x32xbf16> to vector<128x32xbf16>
    %cst_11 = arith.constant dense<0.000000e+00> : vector<144x32xf32>
    %14 = tpu.matmul %11, %13, %cst_11 {dimension_numbers = #tpu.dot_dimension_numbers<[1], [0], [0], [1], [0, 0, 1, 1], [], []>} : vector<144x128xbf16>, vector<128x32xbf16>, vector<144x32xf32> -> vector<144x32xf32>
    %15 = arith.addf %10, %14 : vector<144x32xf32>
    %16 = vector.extract_strided_slice %4 {offsets = [2, 0], sizes = [144, 128], strides = [1, 1]} : vector<184x128xbf16> to vector<144x128xbf16>
    %c2 = arith.constant 2 : index
    %c0_12 = arith.constant 0 : index
    %c0_13 = arith.constant 0 : index
    %17 = vector.load %arg4[%c2, %c0_12, %c0_13] : memref<9x128x32xbf16, #tpu.memory_space<vmem>>, vector<1x128x32xbf16>
    %18 = vector.shape_cast %17 : vector<1x128x32xbf16> to vector<128x32xbf16>
    %cst_14 = arith.constant dense<0.000000e+00> : vector<144x32xf32>
    %19 = tpu.matmul %16, %18, %cst_14 {dimension_numbers = #tpu.dot_dimension_numbers<[1], [0], [0], [1], [0, 0, 1, 1], [], []>} : vector<144x128xbf16>, vector<128x32xbf16>, vector<144x32xf32> -> vector<144x32xf32>
    %20 = arith.addf %15, %19 : vector<144x32xf32>
    %21 = vector.extract_strided_slice %4 {offsets = [18, 0], sizes = [144, 128], strides = [1, 1]} : vector<184x128xbf16> to vector<144x128xbf16>
    %c3 = arith.constant 3 : index
    %c0_15 = arith.constant 0 : index
    %c0_16 = arith.constant 0 : index
    %22 = vector.load %arg4[%c3, %c0_15, %c0_16] : memref<9x128x32xbf16, #tpu.memory_space<vmem>>, vector<1x128x32xbf16>
    %23 = vector.shape_cast %22 : vector<1x128x32xbf16> to vector<128x32xbf16>
    %cst_17 = arith.constant dense<0.000000e+00> : vector<144x32xf32>
    %24 = tpu.matmul %21, %23, %cst_17 {dimension_numbers = #tpu.dot_dimension_numbers<[1], [0], [0], [1], [0, 0, 1, 1], [], []>} : vector<144x128xbf16>, vector<128x32xbf16>, vector<144x32xf32> -> vector<144x32xf32>
    %25 = arith.addf %20, %24 : vector<144x32xf32>
    %26 = vector.extract_strided_slice %4 {offsets = [19, 0], sizes = [144, 128], strides = [1, 1]} : vector<184x128xbf16> to vector<144x128xbf16>
    %c4 = arith.constant 4 : index
    %c0_18 = arith.constant 0 : index
    %c0_19 = arith.constant 0 : index
    %27 = vector.load %arg4[%c4, %c0_18, %c0_19] : memref<9x128x32xbf16, #tpu.memory_space<vmem>>, vector<1x128x32xbf16>
    %28 = vector.shape_cast %27 : vector<1x128x32xbf16> to vector<128x32xbf16>
    %cst_20 = arith.constant dense<0.000000e+00> : vector<144x32xf32>
    %29 = tpu.matmul %26, %28, %cst_20 {dimension_numbers = #tpu.dot_dimension_numbers<[1], [0], [0], [1], [0, 0, 1, 1], [], []>} : vector<144x128xbf16>, vector<128x32xbf16>, vector<144x32xf32> -> vector<144x32xf32>
    %30 = arith.addf %25, %29 : vector<144x32xf32>
    %31 = vector.extract_strided_slice %4 {offsets = [20, 0], sizes = [144, 128], strides = [1, 1]} : vector<184x128xbf16> to vector<144x128xbf16>
    %c5 = arith.constant 5 : index
    %c0_21 = arith.constant 0 : index
    %c0_22 = arith.constant 0 : index
    %32 = vector.load %arg4[%c5, %c0_21, %c0_22] : memref<9x128x32xbf16, #tpu.memory_space<vmem>>, vector<1x128x32xbf16>
    %33 = vector.shape_cast %32 : vector<1x128x32xbf16> to vector<128x32xbf16>
    %cst_23 = arith.constant dense<0.000000e+00> : vector<144x32xf32>
    %34 = tpu.matmul %31, %33, %cst_23 {dimension_numbers = #tpu.dot_dimension_numbers<[1], [0], [0], [1], [0, 0, 1, 1], [], []>} : vector<144x128xbf16>, vector<128x32xbf16>, vector<144x32xf32> -> vector<144x32xf32>
    %35 = arith.addf %30, %34 : vector<144x32xf32>
    %36 = vector.extract_strided_slice %4 {offsets = [36, 0], sizes = [144, 128], strides = [1, 1]} : vector<184x128xbf16> to vector<144x128xbf16>
    %c6 = arith.constant 6 : index
    %c0_24 = arith.constant 0 : index
    %c0_25 = arith.constant 0 : index
    %37 = vector.load %arg4[%c6, %c0_24, %c0_25] : memref<9x128x32xbf16, #tpu.memory_space<vmem>>, vector<1x128x32xbf16>
    %38 = vector.shape_cast %37 : vector<1x128x32xbf16> to vector<128x32xbf16>
    %cst_26 = arith.constant dense<0.000000e+00> : vector<144x32xf32>
    %39 = tpu.matmul %36, %38, %cst_26 {dimension_numbers = #tpu.dot_dimension_numbers<[1], [0], [0], [1], [0, 0, 1, 1], [], []>} : vector<144x128xbf16>, vector<128x32xbf16>, vector<144x32xf32> -> vector<144x32xf32>
    %40 = arith.addf %35, %39 : vector<144x32xf32>
    %41 = vector.extract_strided_slice %4 {offsets = [37, 0], sizes = [144, 128], strides = [1, 1]} : vector<184x128xbf16> to vector<144x128xbf16>
    %c7 = arith.constant 7 : index
    %c0_27 = arith.constant 0 : index
    %c0_28 = arith.constant 0 : index
    %42 = vector.load %arg4[%c7, %c0_27, %c0_28] : memref<9x128x32xbf16, #tpu.memory_space<vmem>>, vector<1x128x32xbf16>
    %43 = vector.shape_cast %42 : vector<1x128x32xbf16> to vector<128x32xbf16>
    %cst_29 = arith.constant dense<0.000000e+00> : vector<144x32xf32>
    %44 = tpu.matmul %41, %43, %cst_29 {dimension_numbers = #tpu.dot_dimension_numbers<[1], [0], [0], [1], [0, 0, 1, 1], [], []>} : vector<144x128xbf16>, vector<128x32xbf16>, vector<144x32xf32> -> vector<144x32xf32>
    %45 = arith.addf %40, %44 : vector<144x32xf32>
    %46 = vector.extract_strided_slice %4 {offsets = [38, 0], sizes = [144, 128], strides = [1, 1]} : vector<184x128xbf16> to vector<144x128xbf16>
    %c8 = arith.constant 8 : index
    %c0_30 = arith.constant 0 : index
    %c0_31 = arith.constant 0 : index
    %47 = vector.load %arg4[%c8, %c0_30, %c0_31] : memref<9x128x32xbf16, #tpu.memory_space<vmem>>, vector<1x128x32xbf16>
    %48 = vector.shape_cast %47 : vector<1x128x32xbf16> to vector<128x32xbf16>
    %cst_32 = arith.constant dense<0.000000e+00> : vector<144x32xf32>
    %49 = tpu.matmul %46, %48, %cst_32 {dimension_numbers = #tpu.dot_dimension_numbers<[1], [0], [0], [1], [0, 0, 1, 1], [], []>} : vector<144x128xbf16>, vector<128x32xbf16>, vector<144x32xf32> -> vector<144x32xf32>
    %50 = arith.addf %45, %49 : vector<144x32xf32>
    %c0_33 = arith.constant 0 : index
    %c0_34 = arith.constant 0 : index
    %51 = vector.load %arg9[%c0_33, %c0_34] : memref<144x32xf32, #tpu.memory_space<vmem>>, vector<144x32xf32>
    tpu.vector_store %arg9[%c0_33, %c0_34], %50 {strides = array<i32>} : memref<144x32xf32, #tpu.memory_space<vmem>>, vector<144x32xf32>,
    %c1_i32 = arith.constant 1 : i32
    %52 = arith.cmpi eq, %arg2, %c1_i32 : i32
    %53 = arith.extui %52 : i1 to i32
    %c0_i32_35 = arith.constant 0 : i32
    %54 = arith.cmpi ne, %53, %c0_i32_35 : i32
    scf.if %54 {
      %c0_36 = arith.constant 0 : index
      %c0_37 = arith.constant 0 : index
      %55 = vector.load %arg9[%c0_36, %c0_37] : memref<144x32xf32, #tpu.memory_space<vmem>>, vector<144x32xf32>
      %c0_38 = arith.constant 0 : index
      %c0_39 = arith.constant 0 : index
      %56 = vector.load %arg5[%c0_38, %c0_39] : memref<1x32xf32, #tpu.memory_space<vmem>>, vector<1x32xf32>
      %57 = vector.broadcast %56 : vector<1x32xf32> to vector<144x32xf32>
      %58 = arith.addf %55, %57 : vector<144x32xf32>
      %cst_40 = arith.constant 0.000000e+00 : f32
      %59 = vector.broadcast %cst_40 : f32 to vector<144x32xf32>
      %60 = arith.maximumf %58, %59 : vector<144x32xf32>
      %61 = arith.truncf %60 : vector<144x32xf32> to vector<144x32xbf16>
      %c0_41 = arith.constant 0 : index
      %c0_42 = arith.constant 0 : index
      %62 = vector.load %arg6[%c0_41, %c0_42] : memref<32x128xbf16, #tpu.memory_space<vmem>>, vector<32x128xbf16>
      %cst_43 = arith.constant dense<0.000000e+00> : vector<144x128xf32>
      %63 = tpu.matmul %61, %62, %cst_43 {dimension_numbers = #tpu.dot_dimension_numbers<[1], [0], [0], [1], [0, 0, 1, 1], [], []>} : vector<144x32xbf16>, vector<32x128xbf16>, vector<144x128xf32> -> vector<144x128xf32>
      %c0_44 = arith.constant 0 : index
      %c0_45 = arith.constant 0 : index
      %64 = vector.load %arg7[%c0_44, %c0_45] : memref<1x128xf32, #tpu.memory_space<vmem>>, vector<1x128xf32>
      %65 = vector.broadcast %64 : vector<1x128xf32> to vector<144x128xf32>
      %66 = arith.addf %63, %65 : vector<144x128xf32>
      %c0_46 = arith.constant 0 : index
      %c0_47 = arith.constant 0 : index
      %c0_48 = arith.constant 0 : index
      %c0_49 = arith.constant 0 : index
      %67 = vector.load %arg8[%c0_46, %c0_47, %c0_48, %c0_49] : memref<1x1x144x128xf32, #tpu.memory_space<vmem>>, vector<1x1x144x128xf32>
      %68 = vector.shape_cast %67 : vector<1x1x144x128xf32> to vector<144x128xf32>
      %69 = vector.shape_cast %66 : vector<144x128xf32> to vector<1x1x144x128xf32>
      tpu.vector_store %arg8[%c0_46, %c0_47, %c0_48, %c0_49], %69 {strides = array<i32>} : memref<1x1x144x128xf32, #tpu.memory_space<vmem>>, vector<1x1x144x128xf32>,
    } else {
    }
    return
  }
  func.func @transform_0(%arg0: i32, %arg1: i32, %arg2: i32) -> (i32, i32, i32, i32) {
    %c0_i32 = arith.constant 0 : i32
    %c0_i32_0 = arith.constant 0 : i32
    return %arg0, %arg1, %c0_i32, %arg2 : i32, i32, i32, i32
  }
  func.func @transform_1(%arg0: i32, %arg1: i32, %arg2: i32) -> (i32, i32, i32) {
    %c0_i32 = arith.constant 0 : i32
    %c0_i32_0 = arith.constant 0 : i32
    %c0_i32_1 = arith.constant 0 : i32
    return %c0_i32, %arg2, %c0_i32_0 : i32, i32, i32
  }
  func.func @transform_2(%arg0: i32, %arg1: i32, %arg2: i32) -> (i32, i32) {
    %c0_i32 = arith.constant 0 : i32
    %c0_i32_0 = arith.constant 0 : i32
    %c0_i32_1 = arith.constant 0 : i32
    return %c0_i32, %c0_i32_0 : i32, i32
  }
  func.func @transform_3(%arg0: i32, %arg1: i32, %arg2: i32) -> (i32, i32) {
    %c0_i32 = arith.constant 0 : i32
    %c0_i32_0 = arith.constant 0 : i32
    %c0_i32_1 = arith.constant 0 : i32
    return %c0_i32, %c0_i32_0 : i32, i32
  }
  func.func @transform_4(%arg0: i32, %arg1: i32, %arg2: i32) -> (i32, i32) {
    %c0_i32 = arith.constant 0 : i32
    %c0_i32_0 = arith.constant 0 : i32
    %c0_i32_1 = arith.constant 0 : i32
    return %c0_i32, %c0_i32_0 : i32, i32
  }
  func.func @transform_5(%arg0: i32, %arg1: i32, %arg2: i32) -> (i32, i32, i32, i32) {
    %c0_i32 = arith.constant 0 : i32
    %c0_i32_0 = arith.constant 0 : i32
    %c0_i32_1 = arith.constant 0 : i32
    return %arg0, %arg1, %c0_i32, %c0_i32_0 : i32, i32, i32, i32
  }
}

</mosaic_0001>

<llo_original>
// kernel: ppm_forward.3
$region0: #{ppm_forward.3}
  #allocation0 [shape = 'u32[]', space=smem, size = 0x4, offset = 0x4, fixed_abs, tag = 'smem constant byte address 0x4 - core index']
  #allocation1 [shape = 'u32[72,128]{1,0:T(1,128)}', space=vmem, size = 0x9000, scoped, tag = 'internal scratch']
  #allocation2 [shape = 'f32[144,32]{1,0:T(8,128)}', space=vmem, size = 0x12000, scoped, tag = 'scratch operand']
  %s0 = inlined_call_operand.vmem [shape: bf16[2,2,184,256], index: 0, kind: input, shape index: {}]
  %s1 = inlined_call_operand.vmem [shape: bf16[9,256,32], index: 1, kind: input, shape index: {}]
  %s2 = inlined_call_operand.vmem [shape: f32[1,32], index: 2, kind: input, shape index: {}]
  %s3 = inlined_call_operand.vmem [shape: bf16[32,128], index: 3, kind: input, shape index: {}]
  %s4 = inlined_call_operand.vmem [shape: f32[1,128], index: 4, kind: input, shape index: {}]
  %s5 = inlined_call_operand.vmem [shape: f32[2,2,144,128], index: 5, kind: output, shape index: {}]
  %s6 = sld [smem:[#allocation0]]
  $region143: #{ppm_forward.3} parent=0
    _
  %s8 = ssub.s32 1, %s6
  %s9 = scalar_select 0, %s8, %s6
  $region1: #{ppm_forward.3} parent=0
    #allocation3 [shape = 'u8[94208]{0}', space=vmem, size = 0x17000, scoped, tag = 'input window, operand 0']
    #allocation4 [shape = 'u8[589824]{0}', space=vmem, size = 0x90000, scoped, tag = 'input window, operand 1']
    loop: start=0, step=1, limit=10
    $region2: #{ppm_forward.3} parent=1 // loop_pre_header
      _
    $region3: #{ppm_forward.3} parent=1 // loop_header
      %s11 = sphi 0, %s15
      %p12 = scmp.ge.s32.totalorder %s11, 10
      %s18 = sphi 0, %s37
      %s19 = sphi 0, %s33
      %s20 = sphi 0, %s29
      %s21 = sphi 0, %s18
      %s22 = sphi 0, %s19
      %s23 = sphi 0, %s20
      %s24 = sphi 0, %s21
      %s25 = sphi 0, %s22
      %s26 = sphi 0, %s23
      %s44 = sphi 0, %s46
      %s47 = sphi 0, %s44
      %s48 = sphi 0, %s47
      %s64 = sphi 0, %s48
      %s70 = sphi 0, %s72
      %s73 = sphi 0, %s70
      %s74 = sphi 0, %s73
      %s90 = sphi 0, %s74
      %s94 = sphi 0, %s94
      %s96 = sphi 0, %s94
      %s97 = sphi 0, %s96
      %s111 = sphi 0, %s97
      %s115 = sphi 0, %s115
      %s117 = sphi 0, %s115
      %s118 = sphi 0, %s117
      %s132 = sphi 0, %s118
      %s136 = sphi 0, %s136
      %s138 = sphi 0, %s136
      %s139 = sphi 0, %s138
      %s153 = sphi 0, %s139
      %s161 = sphi 0, %s163
      %s164 = sphi 0, %s161
      %s165 = sphi 0, %s164
      %s181 = sphi 0, %s165
    $region4: #{ppm_forward.3} parent=1 // loop_header_branch
      %14 = sbr.rel (%p12) target = $region8
    $region5: #{ppm_forward.3} parent=1 // loop_body
      %s16 = ssub.s32 %s11, 1
      %s17 = ssub.s32 %s11, 2
      %s27 = sadd.s32 1, %s20
      %p28 = scmp.ge.s32.totalorder %s27, 2
      %s29 = scalar_select %p28, 0, %s27
      %s30 = sadd.s32 1, %s19
      %s31 = scalar_select %p28, %s30, %s19
      %p32 = scmp.ge.s32.totalorder %s31, 2
      %s33 = scalar_select %p32, 0, %s31
      %s34 = sadd.s32 1, %s18
      %s35 = scalar_select %p32, %s34, %s18
      %p36 = scmp.ge.s32.totalorder %s35, 2
      %s37 = scalar_select %p36, 0, %s35
      %s38 = ssub.s32 %s18, %s37
      %s39 = ssub.s32 %s19, %s33
      %s40 = sor.u32 %s38, %s39
      %s41 = ssub.s32 %s20, %s29
      %s42 = sor.u32 %s40, %s41
      %p43 = scmp.eq.s32.totalorder %s42, 0
      %s45 = sadd.s32 %s44, 1
      %s46 = scalar_select %p43, %s44, %s45
      %p49 = pneg %p43
      %p50 = scmp.eq.s32.totalorder %s11, 7
      %p51 = por %p49, %p50
      %p52 = scmp.ne.s32.totalorder %s44, %s47
      %p53 = scmp.eq.s32.totalorder %s11, 0
      %p54 = por %p52, %p53
      %p55 = scmp.ne.s32.totalorder %s44, %s47
      %p56 = scmp.eq.s32.totalorder %s16, 7
      %p57 = por %p55, %p56
      %p58 = scmp.ne.s32.totalorder %s47, %s48
      %p59 = scmp.eq.s32.totalorder %s16, 0
      %p60 = por %p58, %p59
      %p61 = scmp.ne.s32.totalorder %s47, %s48
      %p62 = scmp.eq.s32.totalorder %s17, 7
      %p63 = por %p61, %p62
      %p65 = scmp.ne.s32.totalorder %s48, %s64
      %p66 = scmp.eq.s32.totalorder %s17, 0
      %p67 = por %p65, %p66
      %s68 = ssub.s32 %s20, %s29
      %p69 = scmp.eq.s32.totalorder %s68, 0
      %s71 = sadd.s32 %s70, 1
      %s72 = scalar_select %p69, %s70, %s71
      %p75 = pneg %p69
      %p76 = scmp.eq.s32.totalorder %s11, 7
      %p77 = por %p75, %p76
      %p78 = scmp.ne.s32.totalorder %s70, %s73
      %p79 = scmp.eq.s32.totalorder %s11, 0
      %p80 = por %p78, %p79
      %p81 = scmp.ne.s32.totalorder %s70, %s73
      %p82 = scmp.eq.s32.totalorder %s16, 7
      %p83 = por %p81, %p82
      %p84 = scmp.ne.s32.totalorder %s73, %s74
      %p85 = scmp.eq.s32.totalorder %s16, 0
      %p86 = por %p84, %p85
      %p87 = scmp.ne.s32.totalorder %s73, %s74
      %p88 = scmp.eq.s32.totalorder %s17, 7
      %p89 = por %p87, %p88
      %p91 = scmp.ne.s32.totalorder %s74, %s90
      %p92 = scmp.eq.s32.totalorder %s17, 0
      %p93 = por %p91, %p92
      %s95 = sadd.s32 %s94, 1
      %p98 = scmp.eq.s32.totalorder %s11, 7
      %p99 = scmp.ne.s32.totalorder %s94, %s96
      %p100 = scmp.eq.s32.totalorder %s11, 0
      %p101 = por %p99, %p100
      %p102 = scmp.ne.s32.totalorder %s94, %s96
      %p103 = scmp.eq.s32.totalorder %s16, 7
      %p104 = por %p102, %p103
      %p105 = scmp.ne.s32.totalorder %s96, %s97
      %p106 = scmp.eq.s32.totalorder %s16, 0
      %p107 = por %p105, %p106
      %p108 = scmp.ne.s32.totalorder %s96, %s97
      %p109 = scmp.eq.s32.totalorder %s17, 7
      %p110 = por %p108, %p109
      %p112 = scmp.ne.s32.totalorder %s97, %s111
      %p113 = scmp.eq.s32.totalorder %s17, 0
      %p114 = por %p112, %p113
      %s116 = sadd.s32 %s115, 1
      %p119 = scmp.eq.s32.totalorder %s11, 7
      %p120 = scmp.ne.s32.totalorder %s115, %s117
      %p121 = scmp.eq.s32.totalorder %s11, 0
      %p122 = por %p120, %p121
      %p123 = scmp.ne.s32.totalorder %s115, %s117
      %p124 = scmp.eq.s32.totalorder %s16, 7
      %p125 = por %p123, %p124
      %p126 = scmp.ne.s32.totalorder %s117, %s118
      %p127 = scmp.eq.s32.totalorder %s16, 0
      %p128 = por %p126, %p127
      %p129 = scmp.ne.s32.totalorder %s117, %s118
      %p130 = scmp.eq.s32.totalorder %s17, 7
      %p131 = por %p129, %p130
      %p133 = scmp.ne.s32.totalorder %s118, %s132
      %p134 = scmp.eq.s32.totalorder %s17, 0
      %p135 = por %p133, %p134
      %s137 = sadd.s32 %s136, 1
      %p140 = scmp.eq.s32.totalorder %s11, 7
      %p141 = scmp.ne.s32.totalorder %s136, %s138
      %p142 = scmp.eq.s32.totalorder %s11, 0
      %p143 = por %p141, %p142
      %p144 = scmp.ne.s32.totalorder %s136, %s138
      %p145 = scmp.eq.s32.totalorder %s16, 7
      %p146 = por %p144, %p145
      %p147 = scmp.ne.s32.totalorder %s138, %s139
      %p148 = scmp.eq.s32.totalorder %s16, 0
      %p149 = por %p147, %p148
      %p150 = scmp.ne.s32.totalorder %s138, %s139
      %p151 = scmp.eq.s32.totalorder %s17, 7
      %p152 = por %p150, %p151
      %p154 = scmp.ne.s32.totalorder %s139, %s153
      %p155 = scmp.eq.s32.totalorder %s17, 0
      %p156 = por %p154, %p155
      %s157 = ssub.s32 %s18, %s37
      %s158 = ssub.s32 %s19, %s33
      %s159 = sor.u32 %s157, %s158
      %p160 = scmp.eq.s32.totalorder %s159, 0
      %s162 = sadd.s32 %s161, 1
      %s163 = scalar_select %p160, %s161, %s162
      %p166 = pneg %p160
      %p167 = scmp.eq.s32.totalorder %s11, 7
      %p168 = por %p166, %p167
      %p169 = scmp.ne.s32.totalorder %s161, %s164
      %p170 = scmp.eq.s32.totalorder %s11, 0
      %p171 = por %p169, %p170
      %p172 = scmp.ne.s32.totalorder %s161, %s164
      %p173 = scmp.eq.s32.totalorder %s16, 7
      %p174 = por %p172, %p173
      %p175 = scmp.ne.s32.totalorder %s164, %s165
      %p176 = scmp.eq.s32.totalorder %s16, 0
      %p177 = por %p175, %p176
      %p178 = scmp.ne.s32.totalorder %s164, %s165
      %p179 = scmp.eq.s32.totalorder %s17, 7
      %p180 = por %p178, %p179
      %p182 = scmp.ne.s32.totalorder %s165, %s181
      %p183 = scmp.eq.s32.totalorder %s17, 0
      %p184 = por %p182, %p183
      %p185 = scmp.le.s32.totalorder 1, %s11
      %p186 = scmp.lt.s32.totalorder %s11, 9
      %p187 = pnand %p185, %p186
      %p188 = pneg %p187
      // Predicated region
      $region9: #{ppm_forward.3} parent=5 // pred_check
        _
      $region10: #{ppm_forward.3} parent=5 // pred_check_branch
        %190 = sbr.rel (%p187) target = $region12
      $region11: #{ppm_forward.3} parent=5 // pred_region
        %s191 = ssub.s32 %s11, 1
        // Predicated region
        $region13: #{ppm_forward.3} parent=11 // pred_check
          %p192 = pneg %p107
        $region14: #{ppm_forward.3} parent=11 // pred_check_branch
          %194 = sbr.rel (%p192) target = $region16
        $region15: #{ppm_forward.3} parent=11 // pred_region
          _
        $region16: #{ppm_forward.3} parent=11 // pred_fallthru
          _
        // Predicated region
        $region17: #{ppm_forward.3} parent=11 // pred_check
          %p195 = pneg %p128
        $region18: #{ppm_forward.3} parent=11 // pred_check_branch
          %197 = sbr.rel (%p195) target = $region20
        $region19: #{ppm_forward.3} parent=11 // pred_region
          _
        $region20: #{ppm_forward.3} parent=11 // pred_fallthru
          _
        // Predicated region
        $region21: #{ppm_forward.3} parent=11 // pred_check
          %p198 = pneg %p149
        $region22: #{ppm_forward.3} parent=11 // pred_check_branch
          %200 = sbr.rel (%p198) target = $region24
        $region23: #{ppm_forward.3} parent=11 // pred_region
          _
        $region24: #{ppm_forward.3} parent=11 // pred_fallthru
          _
      $region12: #{ppm_forward.3} parent=5 // pred_fallthru
        _
      %p201 = scmp.lt.s32.totalorder %s11, 8
      // Predicated region
      $region25: #{ppm_forward.3} parent=5 // pred_check
        %p202 = pneg %p201
      $region26: #{ppm_forward.3} parent=5 // pred_check_branch
        %204 = sbr.rel (%p202) target = $region28
      $region27: #{ppm_forward.3} parent=5 // pred_region
        // Predicated region
        $region29: #{ppm_forward.3} parent=27 // pred_check
          %p205 = pneg %p54
        $region30: #{ppm_forward.3} parent=27 // pred_check_branch
          %207 = sbr.rel (%p205) target = $region32
        $region31: #{ppm_forward.3} parent=27 // pred_region
          %s208 = sand.u32 %s44, 1
          %s209 = sand.u32 %s44, 1
          %s210 = smul.addr %s209, 92
          %s211 = scalar_lea.vmem [#allocation3], %s210
          %s212 = smul.addr %s19, 46
          %s213 = sadd.s32 %s20, %s212
          %s214 = smul.addr %s18, 92
          %s215 = sadd.s32 %s213, %s214
          %s216 = smul.addr %s215, 4
          %s217 = scalar_lea.vmem %s0, %s216
          // Predicated region
          $region33: #{ppm_forward.3} parent=31 // pred_check
            _
          $region34: #{ppm_forward.3} parent=31 // pred_check_branch
            %219 = sbr.rel (0) target = $region36
          $region35: #{ppm_forward.3} parent=31 // pred_region
            // Predicated region
            $region37: #{ppm_forward.3} parent=35 // pred_check
              _
            $region38: #{ppm_forward.3} parent=35 // pred_check_branch
              %221 = sbr.rel target = $region40
            $region39: #{ppm_forward.3} parent=35 // pred_region
              // Predicated region
              $region52: #{ppm_forward.3} parent=39 // pred_check
                _
              $region53: #{ppm_forward.3} parent=39 // pred_check_branch
                %281 = sbr.rel (0) target = $region55
              $region54: #{ppm_forward.3} parent=39 // pred_region
                loop: start=0, step=1, limit=1
                $region56: #{ppm_forward.3} parent=54 // loop_pre_header
                  _
                $region57: #{ppm_forward.3} parent=54 // loop_header
                  %s283 = sphi 0, %s287
                  %p284 = scmp.ge.s32.totalorder %s283, 1
                  %s288 = sphi %s217, %s217
                  %s289 = sphi %s211, %s211
                $region58: #{ppm_forward.3} parent=54 // loop_header_branch
                  %286 = sbr.rel (%p284) target = $region62
                $region59: #{ppm_forward.3} parent=54 // loop_body
                  _
                $region60: #{ppm_forward.3} parent=54 // loop_footer
                  %s287 = sadd.s32 1, %s283
                $region61: #{ppm_forward.3} parent=54 // loop_footer_branch
                  %282 = sbr.rel target = $region57
                $region62: #{ppm_forward.3} parent=54 // loop_exit
                  _
                %s291 = ssub.s32 16, 1
                loop: start=0, step=1, limit=1
                $region63: #{ppm_forward.3} parent=54 // loop_pre_header
                  _
                $region64: #{ppm_forward.3} parent=54 // loop_header
                  %s293 = sphi 0, %s297
                  %p294 = scmp.ge.s32.totalorder %s293, 1
                  %s298 = sphi %s217, %s217
                  %s299 = sphi %s211, %s211
                $region65: #{ppm_forward.3} parent=54 // loop_header_branch
                  %296 = sbr.rel (%p294) target = $region69
                $region66: #{ppm_forward.3} parent=54 // loop_body
                  %v300 = vld [vmem:[%s298] sm:%s291]
                  %301 = vst [vmem:[%s299] sm:%s291] %v300
                  %v302 = vld [vmem:[%s298 + $0x8] sm:%s291]
                  %303 = vst [vmem:[%s299 + $0x4] sm:%s291] %v302
                  %v304 = vld [vmem:[%s298 + $0x10] sm:%s291]
                  %305 = vst [vmem:[%s299 + $0x8] sm:%s291] %v304
                  %v306 = vld [vmem:[%s298 + $0x18] sm:%s291]
                  %307 = vst [vmem:[%s299 + $0xc] sm:%s291] %v306
                  %v308 = vld [vmem:[%s298 + $0x20] sm:%s291]
                  %309 = vst [vmem:[%s299 + $0x10] sm:%s291] %v308
                  %v310 = vld [vmem:[%s298 + $0x28] sm:%s291]
                  %311 = vst [vmem:[%s299 + $0x14] sm:%s291] %v310
                  %v312 = vld [vmem:[%s298 + $0x30] sm:%s291]
                  %313 = vst [vmem:[%s299 + $0x18] sm:%s291] %v312
                  %v314 = vld [vmem:[%s298 + $0x38] sm:%s291]
                  %315 = vst [vmem:[%s299 + $0x1c] sm:%s291] %v314
                  %v316 = vld [vmem:[%s298 + $0x40] sm:%s291]
                  %317 = vst [vmem:[%s299 + $0x20] sm:%s291] %v316
                  %v318 = vld [vmem:[%s298 + $0x48] sm:%s291]
                  %319 = vst [vmem:[%s299 + $0x24] sm:%s291] %v318
                  %v320 = vld [vmem:[%s298 + $0x50] sm:%s291]
                  %321 = vst [vmem:[%s299 + $0x28] sm:%s291] %v320
                  %v322 = vld [vmem:[%s298 + $0x58] sm:%s291]
                  %323 = vst [vmem:[%s299 + $0x2c] sm:%s291] %v322
                  %v324 = vld [vmem:[%s298 + $0x60] sm:%s291]
                  %325 = vst [vmem:[%s299 + $0x30] sm:%s291] %v324
                  %v326 = vld [vmem:[%s298 + $0x68] sm:%s291]
                  %327 = vst [vmem:[%s299 + $0x34] sm:%s291] %v326
                  %v328 = vld [vmem:[%s298 + $0x70] sm:%s291]
                  %329 = vst [vmem:[%s299 + $0x38] sm:%s291] %v328
                  %v330 = vld [vmem:[%s298 + $0x78] sm:%s291]
                  %331 = vst [vmem:[%s299 + $0x3c] sm:%s291] %v330
                  %v332 = vld [vmem:[%s298 + $0x80] sm:%s291]
                  %333 = vst [vmem:[%s299 + $0x40] sm:%s291] %v332
                  %v334 = vld [vmem:[%s298 + $0x88] sm:%s291]
                  %335 = vst [vmem:[%s299 + $0x44] sm:%s291] %v334
                  %v336 = vld [vmem:[%s298 + $0x90] sm:%s291]
                  %337 = vst [vmem:[%s299 + $0x48] sm:%s291] %v336
                  %v338 = vld [vmem:[%s298 + $0x98] sm:%s291]
                  %339 = vst [vmem:[%s299 + $0x4c] sm:%s291] %v338
                  %v340 = vld [vmem:[%s298 + $0xa0] sm:%s291]
                  %341 = vst [vmem:[%s299 + $0x50] sm:%s291] %v340
                  %v342 = vld [vmem:[%s298 + $0xa8] sm:%s291]
                  %343 = vst [vmem:[%s299 + $0x54] sm:%s291] %v342
                  %v344 = vld [vmem:[%s298 + $0xb0] sm:%s291]
                  %345 = vst [vmem:[%s299 + $0x58] sm:%s291] %v344
                $region67: #{ppm_forward.3} parent=54 // loop_footer
                  %s297 = sadd.s32 1, %s293
                $region68: #{ppm_forward.3} parent=54 // loop_footer_branch
                  %292 = sbr.rel target = $region64
                $region69: #{ppm_forward.3} parent=54 // loop_exit
                  _
              $region55: #{ppm_forward.3} parent=39 // pred_fallthru
                _
            $region40: #{ppm_forward.3} parent=35 // pred_fallthru
              _
            // Predicated region
            $region41: #{ppm_forward.3} parent=35 // pred_check
              _
            $region42: #{ppm_forward.3} parent=35 // pred_check_branch
              %223 = sbr.rel (0) target = $region44
            $region43: #{ppm_forward.3} parent=35 // pred_region
              %s225 = ssub.s32 16, 1
              loop: start=0, step=1, limit=1
              $region45: #{ppm_forward.3} parent=43 // loop_pre_header
                _
              $region46: #{ppm_forward.3} parent=43 // loop_header
                %s227 = sphi 0, %s231
                %p228 = scmp.ge.s32.totalorder %s227, 1
                %s232 = sphi %s217, %s217
                %s233 = sphi %s211, %s211
              $region47: #{ppm_forward.3} parent=43 // loop_header_branch
                %230 = sbr.rel (%p228) target = $region51
              $region48: #{ppm_forward.3} parent=43 // loop_body
                %v234 = vld [vmem:[%s232] sm:%s225]
                %235 = vst [vmem:[%s233] sm:%s225] %v234
                %v236 = vld [vmem:[%s232 + $0x8] sm:%s225]
                %237 = vst [vmem:[%s233 + $0x4] sm:%s225] %v236
                %v238 = vld [vmem:[%s232 + $0x10] sm:%s225]
                %239 = vst [vmem:[%s233 + $0x8] sm:%s225] %v238
                %v240 = vld [vmem:[%s232 + $0x18] sm:%s225]
                %241 = vst [vmem:[%s233 + $0xc] sm:%s225] %v240
                %v242 = vld [vmem:[%s232 + $0x20] sm:%s225]
                %243 = vst [vmem:[%s233 + $0x10] sm:%s225] %v242
                %v244 = vld [vmem:[%s232 + $0x28] sm:%s225]
                %245 = vst [vmem:[%s233 + $0x14] sm:%s225] %v244
                %v246 = vld [vmem:[%s232 + $0x30] sm:%s225]
                %247 = vst [vmem:[%s233 + $0x18] sm:%s225] %v246
                %v248 = vld [vmem:[%s232 + $0x38] sm:%s225]
                %249 = vst [vmem:[%s233 + $0x1c] sm:%s225] %v248
                %v250 = vld [vmem:[%s232 + $0x40] sm:%s225]
                %251 = vst [vmem:[%s233 + $0x20] sm:%s225] %v250
                %v252 = vld [vmem:[%s232 + $0x48] sm:%s225]
                %253 = vst [vmem:[%s233 + $0x24] sm:%s225] %v252
                %v254 = vld [vmem:[%s232 + $0x50] sm:%s225]
                %255 = vst [vmem:[%s233 + $0x28] sm:%s225] %v254
                %v256 = vld [vmem:[%s232 + $0x58] sm:%s225]
                %257 = vst [vmem:[%s233 + $0x2c] sm:%s225] %v256
                %v258 = vld [vmem:[%s232 + $0x60] sm:%s225]
                %259 = vst [vmem:[%s233 + $0x30] sm:%s225] %v258
                %v260 = vld [vmem:[%s232 + $0x68] sm:%s225]
                %261 = vst [vmem:[%s233 + $0x34] sm:%s225] %v260
                %v262 = vld [vmem:[%s232 + $0x70] sm:%s225]
                %263 = vst [vmem:[%s233 + $0x38] sm:%s225] %v262
                %v264 = vld [vmem:[%s232 + $0x78] sm:%s225]
                %265 = vst [vmem:[%s233 + $0x3c] sm:%s225] %v264
                %v266 = vld [vmem:[%s232 + $0x80] sm:%s225]
                %267 = vst [vmem:[%s233 + $0x40] sm:%s225] %v266
                %v268 = vld [vmem:[%s232 + $0x88] sm:%s225]
                %269 = vst [vmem:[%s233 + $0x44] sm:%s225] %v268
                %v270 = vld [vmem:[%s232 + $0x90] sm:%s225]
                %271 = vst [vmem:[%s233 + $0x48] sm:%s225] %v270
                %v272 = vld [vmem:[%s232 + $0x98] sm:%s225]
                %273 = vst [vmem:[%s233 + $0x4c] sm:%s225] %v272
                %v274 = vld [vmem:[%s232 + $0xa0] sm:%s225]
                %275 = vst [vmem:[%s233 + $0x50] sm:%s225] %v274
                %v276 = vld [vmem:[%s232 + $0xa8] sm:%s225]
                %277 = vst [vmem:[%s233 + $0x54] sm:%s225] %v276
                %v278 = vld [vmem:[%s232 + $0xb0] sm:%s225]
                %279 = vst [vmem:[%s233 + $0x58] sm:%s225] %v278
              $region49: #{ppm_forward.3} parent=43 // loop_footer
                %s231 = sadd.s32 1, %s227
              $region50: #{ppm_forward.3} parent=43 // loop_footer_branch
                %226 = sbr.rel target = $region46
              $region51: #{ppm_forward.3} parent=43 // loop_exit
                _
            $region44: #{ppm_forward.3} parent=35 // pred_fallthru
              _
          $region36: #{ppm_forward.3} parent=31 // pred_fallthru
            _
          %346 = vnop
        $region32: #{ppm_forward.3} parent=27 // pred_fallthru
          _
        // Predicated region
        $region70: #{ppm_forward.3} parent=27 // pred_check
          %p347 = pneg %p80
        $region71: #{ppm_forward.3} parent=27 // pred_check_branch
          %349 = sbr.rel (%p347) target = $region73
        $region72: #{ppm_forward.3} parent=27 // pred_region
          %s350 = sand.u32 %s70, 1
          %s351 = sand.u32 %s70, 1
          %s352 = smul.addr %s351, 576
          %s353 = scalar_lea.vmem [#allocation4], %s352
          %s354 = smul.u32 16, %s20
          %s355 = smul.addr %s354, 4
          %s356 = scalar_lea.vmem %s1, %s355
          // Predicated region
          $region74: #{ppm_forward.3} parent=72 // pred_check
            _
          $region75: #{ppm_forward.3} parent=72 // pred_check_branch
            %358 = sbr.rel (0) target = $region77
          $region76: #{ppm_forward.3} parent=72 // pred_region
            // Predicated region
            $region78: #{ppm_forward.3} parent=76 // pred_check
              _
            $region79: #{ppm_forward.3} parent=76 // pred_check_branch
              %360 = sbr.rel target = $region81
            $region80: #{ppm_forward.3} parent=76 // pred_region
              // Predicated region
              $region93: #{ppm_forward.3} parent=80 // pred_check
                _
              $region94: #{ppm_forward.3} parent=80 // pred_check_branch
                %662 = sbr.rel (0) target = $region96
              $region95: #{ppm_forward.3} parent=80 // pred_region
                loop: start=0, step=1, limit=1
                $region97: #{ppm_forward.3} parent=95 // loop_pre_header
                  _
                $region98: #{ppm_forward.3} parent=95 // loop_header
                  %s664 = sphi 0, %s668
                  %p665 = scmp.ge.s32.totalorder %s664, 1
                  %s669 = sphi %s356, %s356
                  %s670 = sphi %s353, %s353
                $region99: #{ppm_forward.3} parent=95 // loop_header_branch
                  %667 = sbr.rel (%p665) target = $region103
                $region100: #{ppm_forward.3} parent=95 // loop_body
                  _
                $region101: #{ppm_forward.3} parent=95 // loop_footer
                  %s668 = sadd.s32 1, %s664
                $region102: #{ppm_forward.3} parent=95 // loop_footer_branch
                  %663 = sbr.rel target = $region98
                $region103: #{ppm_forward.3} parent=95 // loop_exit
                  _
                %s672 = ssub.s32 16, 1
                loop: start=0, step=1, limit=1
                $region104: #{ppm_forward.3} parent=95 // loop_pre_header
                  _
                $region105: #{ppm_forward.3} parent=95 // loop_header
                  %s674 = sphi 0, %s678
                  %p675 = scmp.ge.s32.totalorder %s674, 1
                  %s679 = sphi %s356, %s356
                  %s680 = sphi %s353, %s353
                $region106: #{ppm_forward.3} parent=95 // loop_header_branch
                  %677 = sbr.rel (%p675) target = $region110
                $region107: #{ppm_forward.3} parent=95 // loop_body
                  %v681 = vld [vmem:[%s679] sm:%s672]
                  %682 = vst [vmem:[%s680] sm:%s672] %v681
                  %v683 = vld [vmem:[%s679 + $0x4] sm:%s672]
                  %684 = vst [vmem:[%s680 + $0x4] sm:%s672] %v683
                  %v685 = vld [vmem:[%s679 + $0x8] sm:%s672]
                  %686 = vst [vmem:[%s680 + $0x8] sm:%s672] %v685
                  %v687 = vld [vmem:[%s679 + $0xc] sm:%s672]
                  %688 = vst [vmem:[%s680 + $0xc] sm:%s672] %v687
                  %v689 = vld [vmem:[%s679 + $0x10] sm:%s672]
                  %690 = vst [vmem:[%s680 + $0x10] sm:%s672] %v689
                  %v691 = vld [vmem:[%s679 + $0x14] sm:%s672]
                  %692 = vst [vmem:[%s680 + $0x14] sm:%s672] %v691
                  %v693 = vld [vmem:[%s679 + $0x18] sm:%s672]
                  %694 = vst [vmem:[%s680 + $0x18] sm:%s672] %v693
                  %v695 = vld [vmem:[%s679 + $0x1c] sm:%s672]
                  %696 = vst [vmem:[%s680 + $0x1c] sm:%s672] %v695
                  %v697 = vld [vmem:[%s679 + $0x20] sm:%s672]
                  %698 = vst [vmem:[%s680 + $0x20] sm:%s672] %v697
                  %v699 = vld [vmem:[%s679 + $0x24] sm:%s672]
                  %700 = vst [vmem:[%s680 + $0x24] sm:%s672] %v699
                  %v701 = vld [vmem:[%s679 + $0x28] sm:%s672]
                  %702 = vst [vmem:[%s680 + $0x28] sm:%s672] %v701
                  %v703 = vld [vmem:[%s679 + $0x2c] sm:%s672]
                  %704 = vst [vmem:[%s680 + $0x2c] sm:%s672] %v703
                  %v705 = vld [vmem:[%s679 + $0x30] sm:%s672]
                  %706 = vst [vmem:[%s680 + $0x30] sm:%s672] %v705
                  %v707 = vld [vmem:[%s679 + $0x34] sm:%s672]
                  %708 = vst [vmem:[%s680 + $0x34] sm:%s672] %v707
                  %v709 = vld [vmem:[%s679 + $0x38] sm:%s672]
                  %710 = vst [vmem:[%s680 + $0x38] sm:%s672] %v709
                  %v711 = vld [vmem:[%s679 + $0x3c] sm:%s672]
                  %712 = vst [vmem:[%s680 + $0x3c] sm:%s672] %v711
                  %v713 = vld [vmem:[%s679 + $0x80] sm:%s672]
                  %714 = vst [vmem:[%s680 + $0x40] sm:%s672] %v713
                  %v715 = vld [vmem:[%s679 + $0x84] sm:%s672]
                  %716 = vst [vmem:[%s680 + $0x44] sm:%s672] %v715
                  %v717 = vld [vmem:[%s679 + $0x88] sm:%s672]
                  %718 = vst [vmem:[%s680 + $0x48] sm:%s672] %v717
                  %v719 = vld [vmem:[%s679 + $0x8c] sm:%s672]
                  %720 = vst [vmem:[%s680 + $0x4c] sm:%s672] %v719
                  %v721 = vld [vmem:[%s679 + $0x90] sm:%s672]
                  %722 = vst [vmem:[%s680 + $0x50] sm:%s672] %v721
                  %v723 = vld [vmem:[%s679 + $0x94] sm:%s672]
                  %724 = vst [vmem:[%s680 + $0x54] sm:%s672] %v723
                  %v725 = vld [vmem:[%s679 + $0x98] sm:%s672]
                  %726 = vst [vmem:[%s680 + $0x58] sm:%s672] %v725
                  %v727 = vld [vmem:[%s679 + $0x9c] sm:%s672]
                  %728 = vst [vmem:[%s680 + $0x5c] sm:%s672] %v727
                  %v729 = vld [vmem:[%s679 + $0xa0] sm:%s672]
                  %730 = vst [vmem:[%s680 + $0x60] sm:%s672] %v729
                  %v731 = vld [vmem:[%s679 + $0xa4] sm:%s672]
                  %732 = vst [vmem:[%s680 + $0x64] sm:%s672] %v731
                  %v733 = vld [vmem:[%s679 + $0xa8] sm:%s672]
                  %734 = vst [vmem:[%s680 + $0x68] sm:%s672] %v733
                  %v735 = vld [vmem:[%s679 + $0xac] sm:%s672]
                  %736 = vst [vmem:[%s680 + $0x6c] sm:%s672] %v735
                  %v737 = vld [vmem:[%s679 + $0xb0] sm:%s672]
                  %738 = vst [vmem:[%s680 + $0x70] sm:%s672] %v737
                  %v739 = vld [vmem:[%s679 + $0xb4] sm:%s672]
                  %740 = vst [vmem:[%s680 + $0x74] sm:%s672] %v739
                  %v741 = vld [vmem:[%s679 + $0xb8] sm:%s672]
                  %742 = vst [vmem:[%s680 + $0x78] sm:%s672] %v741
                  %v743 = vld [vmem:[%s679 + $0xbc] sm:%s672]
                  %744 = vst [vmem:[%s680 + $0x7c] sm:%s672] %v743
                  %v745 = vld [vmem:[%s679 + $0x100] sm:%s672]
                  %746 = vst [vmem:[%s680 + $0x80] sm:%s672] %v745
                  %v747 = vld [vmem:[%s679 + $0x104] sm:%s672]
                  %748 = vst [vmem:[%s680 + $0x84] sm:%s672] %v747
                  %v749 = vld [vmem:[%s679 + $0x108] sm:%s672]
                  %750 = vst [vmem:[%s680 + $0x88] sm:%s672] %v749
                  %v751 = vld [vmem:[%s679 + $0x10c] sm:%s672]
                  %752 = vst [vmem:[%s680 + $0x8c] sm:%s672] %v751
                  %v753 = vld [vmem:[%s679 + $0x110] sm:%s672]
                  %754 = vst [vmem:[%s680 + $0x90] sm:%s672] %v753
                  %v755 = vld [vmem:[%s679 + $0x114] sm:%s672]
                  %756 = vst [vmem:[%s680 + $0x94] sm:%s672] %v755
                  %v757 = vld [vmem:[%s679 + $0x118] sm:%s672]
                  %758 = vst [vmem:[%s680 + $0x98] sm:%s672] %v757
                  %v759 = vld [vmem:[%s679 + $0x11c] sm:%s672]
                  %760 = vst [vmem:[%s680 + $0x9c] sm:%s672] %v759
                  %v761 = vld [vmem:[%s679 + $0x120] sm:%s672]
                  %762 = vst [vmem:[%s680 + $0xa0] sm:%s672] %v761
                  %v763 = vld [vmem:[%s679 + $0x124] sm:%s672]
                  %764 = vst [vmem:[%s680 + $0xa4] sm:%s672] %v763
                  %v765 = vld [vmem:[%s679 + $0x128] sm:%s672]
                  %766 = vst [vmem:[%s680 + $0xa8] sm:%s672] %v765
                  %v767 = vld [vmem:[%s679 + $0x12c] sm:%s672]
                  %768 = vst [vmem:[%s680 + $0xac] sm:%s672] %v767
                  %v769 = vld [vmem:[%s679 + $0x130] sm:%s672]
                  %770 = vst [vmem:[%s680 + $0xb0] sm:%s672] %v769
                  %v771 = vld [vmem:[%s679 + $0x134] sm:%s672]
                  %772 = vst [vmem:[%s680 + $0xb4] sm:%s672] %v771
                  %v773 = vld [vmem:[%s679 + $0x138] sm:%s672]
                  %774 = vst [vmem:[%s680 + $0xb8] sm:%s672] %v773
                  %v775 = vld [vmem:[%s679 + $0x13c] sm:%s672]
                  %776 = vst [vmem:[%s680 + $0xbc] sm:%s672] %v775
                  %v777 = vld [vmem:[%s679 + $0x180] sm:%s672]
                  %778 = vst [vmem:[%s680 + $0xc0] sm:%s672] %v777
                  %v779 = vld [vmem:[%s679 + $0x184] sm:%s672]
                  %780 = vst [vmem:[%s680 + $0xc4] sm:%s672] %v779
                  %v781 = vld [vmem:[%s679 + $0x188] sm:%s672]
                  %782 = vst [vmem:[%s680 + $0xc8] sm:%s672] %v781
                  %v783 = vld [vmem:[%s679 + $0x18c] sm:%s672]
                  %784 = vst [vmem:[%s680 + $0xcc] sm:%s672] %v783
                  %v785 = vld [vmem:[%s679 + $0x190] sm:%s672]
                  %786 = vst [vmem:[%s680 + $0xd0] sm:%s672] %v785
                  %v787 = vld [vmem:[%s679 + $0x194] sm:%s672]
                  %788 = vst [vmem:[%s680 + $0xd4] sm:%s672] %v787
                  %v789 = vld [vmem:[%s679 + $0x198] sm:%s672]
                  %790 = vst [vmem:[%s680 + $0xd8] sm:%s672] %v789
                  %v791 = vld [vmem:[%s679 + $0x19c] sm:%s672]
                  %792 = vst [vmem:[%s680 + $0xdc] sm:%s672] %v791
                  %v793 = vld [vmem:[%s679 + $0x1a0] sm:%s672]
                  %794 = vst [vmem:[%s680 + $0xe0] sm:%s672] %v793
                  %v795 = vld [vmem:[%s679 + $0x1a4] sm:%s672]
                  %796 = vst [vmem:[%s680 + $0xe4] sm:%s672] %v795
                  %v797 = vld [vmem:[%s679 + $0x1a8] sm:%s672]
                  %798 = vst [vmem:[%s680 + $0xe8] sm:%s672] %v797
                  %v799 = vld [vmem:[%s679 + $0x1ac] sm:%s672]
                  %800 = vst [vmem:[%s680 + $0xec] sm:%s672] %v799
                  %v801 = vld [vmem:[%s679 + $0x1b0] sm:%s672]
                  %802 = vst [vmem:[%s680 + $0xf0] sm:%s672] %v801
                  %v803 = vld [vmem:[%s679 + $0x1b4] sm:%s672]
                  %804 = vst [vmem:[%s680 + $0xf4] sm:%s672] %v803
                  %v805 = vld [vmem:[%s679 + $0x1b8] sm:%s672]
                  %806 = vst [vmem:[%s680 + $0xf8] sm:%s672] %v805
                  %v807 = vld [vmem:[%s679 + $0x1bc] sm:%s672]
                  %808 = vst [vmem:[%s680 + $0xfc] sm:%s672] %v807
                  %v809 = vld [vmem:[%s679 + $0x200] sm:%s672]
                  %810 = vst [vmem:[%s680 + $0x100] sm:%s672] %v809
                  %v811 = vld [vmem:[%s679 + $0x204] sm:%s672]
                  %812 = vst [vmem:[%s680 + $0x104] sm:%s672] %v811
                  %v813 = vld [vmem:[%s679 + $0x208] sm:%s672]
                  %814 = vst [vmem:[%s680 + $0x108] sm:%s672] %v813
                  %v815 = vld [vmem:[%s679 + $0x20c] sm:%s672]
                  %816 = vst [vmem:[%s680 + $0x10c] sm:%s672] %v815
                  %v817 = vld [vmem:[%s679 + $0x210] sm:%s672]
                  %818 = vst [vmem:[%s680 + $0x110] sm:%s672] %v817
                  %v819 = vld [vmem:[%s679 + $0x214] sm:%s672]
                  %820 = vst [vmem:[%s680 + $0x114] sm:%s672] %v819
                  %v821 = vld [vmem:[%s679 + $0x218] sm:%s672]
                  %822 = vst [vmem:[%s680 + $0x118] sm:%s672] %v821
                  %v823 = vld [vmem:[%s679 + $0x21c] sm:%s672]
                  %824 = vst [vmem:[%s680 + $0x11c] sm:%s672] %v823
                  %v825 = vld [vmem:[%s679 + $0x220] sm:%s672]
                  %826 = vst [vmem:[%s680 + $0x120] sm:%s672] %v825
                  %v827 = vld [vmem:[%s679 + $0x224] sm:%s672]
                  %828 = vst [vmem:[%s680 + $0x124] sm:%s672] %v827
                  %v829 = vld [vmem:[%s679 + $0x228] sm:%s672]
                  %830 = vst [vmem:[%s680 + $0x128] sm:%s672] %v829
                  %v831 = vld [vmem:[%s679 + $0x22c] sm:%s672]
                  %832 = vst [vmem:[%s680 + $0x12c] sm:%s672] %v831
                  %v833 = vld [vmem:[%s679 + $0x230] sm:%s672]
                  %834 = vst [vmem:[%s680 + $0x130] sm:%s672] %v833
                  %v835 = vld [vmem:[%s679 + $0x234] sm:%s672]
                  %836 = vst [vmem:[%s680 + $0x134] sm:%s672] %v835
                  %v837 = vld [vmem:[%s679 + $0x238] sm:%s672]
                  %838 = vst [vmem:[%s680 + $0x138] sm:%s672] %v837
                  %v839 = vld [vmem:[%s679 + $0x23c] sm:%s672]
                  %840 = vst [vmem:[%s680 + $0x13c] sm:%s672] %v839
                  %v841 = vld [vmem:[%s679 + $0x280] sm:%s672]
                  %842 = vst [vmem:[%s680 + $0x140] sm:%s672] %v841
                  %v843 = vld [vmem:[%s679 + $0x284] sm:%s672]
                  %844 = vst [vmem:[%s680 + $0x144] sm:%s672] %v843
                  %v845 = vld [vmem:[%s679 + $0x288] sm:%s672]
                  %846 = vst [vmem:[%s680 + $0x148] sm:%s672] %v845
                  %v847 = vld [vmem:[%s679 + $0x28c] sm:%s672]
                  %848 = vst [vmem:[%s680 + $0x14c] sm:%s672] %v847
                  %v849 = vld [vmem:[%s679 + $0x290] sm:%s672]
                  %850 = vst [vmem:[%s680 + $0x150] sm:%s672] %v849
                  %v851 = vld [vmem:[%s679 + $0x294] sm:%s672]
                  %852 = vst [vmem:[%s680 + $0x154] sm:%s672] %v851
                  %v853 = vld [vmem:[%s679 + $0x298] sm:%s672]
                  %854 = vst [vmem:[%s680 + $0x158] sm:%s672] %v853
                  %v855 = vld [vmem:[%s679 + $0x29c] sm:%s672]
                  %856 = vst [vmem:[%s680 + $0x15c] sm:%s672] %v855
                  %v857 = vld [vmem:[%s679 + $0x2a0] sm:%s672]
                  %858 = vst [vmem:[%s680 + $0x160] sm:%s672] %v857
                  %v859 = vld [vmem:[%s679 + $0x2a4] sm:%s672]
                  %860 = vst [vmem:[%s680 + $0x164] sm:%s672] %v859
                  %v861 = vld [vmem:[%s679 + $0x2a8] sm:%s672]
                  %862 = vst [vmem:[%s680 + $0x168] sm:%s672] %v861
                  %v863 = vld [vmem:[%s679 + $0x2ac] sm:%s672]
                  %864 = vst [vmem:[%s680 + $0x16c] sm:%s672] %v863
                  %v865 = vld [vmem:[%s679 + $0x2b0] sm:%s672]
                  %866 = vst [vmem:[%s680 + $0x170] sm:%s672] %v865
                  %v867 = vld [vmem:[%s679 + $0x2b4] sm:%s672]
                  %868 = vst [vmem:[%s680 + $0x174] sm:%s672] %v867
                  %v869 = vld [vmem:[%s679 + $0x2b8] sm:%s672]
                  %870 = vst [vmem:[%s680 + $0x178] sm:%s672] %v869
                  %v871 = vld [vmem:[%s679 + $0x2bc] sm:%s672]
                  %872 = vst [vmem:[%s680 + $0x17c] sm:%s672] %v871
                  %v873 = vld [vmem:[%s679 + $0x300] sm:%s672]
                  %874 = vst [vmem:[%s680 + $0x180] sm:%s672] %v873
                  %v875 = vld [vmem:[%s679 + $0x304] sm:%s672]
                  %876 = vst [vmem:[%s680 + $0x184] sm:%s672] %v875
                  %v877 = vld [vmem:[%s679 + $0x308] sm:%s672]
                  %878 = vst [vmem:[%s680 + $0x188] sm:%s672] %v877
                  %v879 = vld [vmem:[%s679 + $0x30c] sm:%s672]
                  %880 = vst [vmem:[%s680 + $0x18c] sm:%s672] %v879
                  %v881 = vld [vmem:[%s679 + $0x310] sm:%s672]
                  %882 = vst [vmem:[%s680 + $0x190] sm:%s672] %v881
                  %v883 = vld [vmem:[%s679 + $0x314] sm:%s672]
                  %884 = vst [vmem:[%s680 + $0x194] sm:%s672] %v883
                  %v885 = vld [vmem:[%s679 + $0x318] sm:%s672]
                  %886 = vst [vmem:[%s680 + $0x198] sm:%s672] %v885
                  %v887 = vld [vmem:[%s679 + $0x31c] sm:%s672]
                  %888 = vst [vmem:[%s680 + $0x19c] sm:%s672] %v887
                  %v889 = vld [vmem:[%s679 + $0x320] sm:%s672]
                  %890 = vst [vmem:[%s680 + $0x1a0] sm:%s672] %v889
                  %v891 = vld [vmem:[%s679 + $0x324] sm:%s672]
                  %892 = vst [vmem:[%s680 + $0x1a4] sm:%s672] %v891
                  %v893 = vld [vmem:[%s679 + $0x328] sm:%s672]
                  %894 = vst [vmem:[%s680 + $0x1a8] sm:%s672] %v893
                  %v895 = vld [vmem:[%s679 + $0x32c] sm:%s672]
                  %896 = vst [vmem:[%s680 + $0x1ac] sm:%s672] %v895
                  %v897 = vld [vmem:[%s679 + $0x330] sm:%s672]
                  %898 = vst [vmem:[%s680 + $0x1b0] sm:%s672] %v897
                  %v899 = vld [vmem:[%s679 + $0x334] sm:%s672]
                  %900 = vst [vmem:[%s680 + $0x1b4] sm:%s672] %v899
                  %v901 = vld [vmem:[%s679 + $0x338] sm:%s672]
                  %902 = vst [vmem:[%s680 + $0x1b8] sm:%s672] %v901
                  %v903 = vld [vmem:[%s679 + $0x33c] sm:%s672]
                  %904 = vst [vmem:[%s680 + $0x1bc] sm:%s672] %v903
                  %v905 = vld [vmem:[%s679 + $0x380] sm:%s672]
                  %906 = vst [vmem:[%s680 + $0x1c0] sm:%s672] %v905
                  %v907 = vld [vmem:[%s679 + $0x384] sm:%s672]
                  %908 = vst [vmem:[%s680 + $0x1c4] sm:%s672] %v907
                  %v909 = vld [vmem:[%s679 + $0x388] sm:%s672]
                  %910 = vst [vmem:[%s680 + $0x1c8] sm:%s672] %v909
                  %v911 = vld [vmem:[%s679 + $0x38c] sm:%s672]
                  %912 = vst [vmem:[%s680 + $0x1cc] sm:%s672] %v911
                  %v913 = vld [vmem:[%s679 + $0x390] sm:%s672]
                  %914 = vst [vmem:[%s680 + $0x1d0] sm:%s672] %v913
                  %v915 = vld [vmem:[%s679 + $0x394] sm:%s672]
                  %916 = vst [vmem:[%s680 + $0x1d4] sm:%s672] %v915
                  %v917 = vld [vmem:[%s679 + $0x398] sm:%s672]
                  %918 = vst [vmem:[%s680 + $0x1d8] sm:%s672] %v917
                  %v919 = vld [vmem:[%s679 + $0x39c] sm:%s672]
                  %920 = vst [vmem:[%s680 + $0x1dc] sm:%s672] %v919
                  %v921 = vld [vmem:[%s679 + $0x3a0] sm:%s672]
                  %922 = vst [vmem:[%s680 + $0x1e0] sm:%s672] %v921
                  %v923 = vld [vmem:[%s679 + $0x3a4] sm:%s672]
                  %924 = vst [vmem:[%s680 + $0x1e4] sm:%s672] %v923
                  %v925 = vld [vmem:[%s679 + $0x3a8] sm:%s672]
                  %926 = vst [vmem:[%s680 + $0x1e8] sm:%s672] %v925
                  %v927 = vld [vmem:[%s679 + $0x3ac] sm:%s672]
                  %928 = vst [vmem:[%s680 + $0x1ec] sm:%s672] %v927
                  %v929 = vld [vmem:[%s679 + $0x3b0] sm:%s672]
                  %930 = vst [vmem:[%s680 + $0x1f0] sm:%s672] %v929
                  %v931 = vld [vmem:[%s679 + $0x3b4] sm:%s672]
                  %932 = vst [vmem:[%s680 + $0x1f4] sm:%s672] %v931
                  %v933 = vld [vmem:[%s679 + $0x3b8] sm:%s672]
                  %934 = vst [vmem:[%s680 + $0x1f8] sm:%s672] %v933
                  %v935 = vld [vmem:[%s679 + $0x3bc] sm:%s672]
                  %936 = vst [vmem:[%s680 + $0x1fc] sm:%s672] %v935
                  %v937 = vld [vmem:[%s679 + $0x400] sm:%s672]
                  %938 = vst [vmem:[%s680 + $0x200] sm:%s672] %v937
                  %v939 = vld [vmem:[%s679 + $0x404] sm:%s672]
                  %940 = vst [vmem:[%s680 + $0x204] sm:%s672] %v939
                  %v941 = vld [vmem:[%s679 + $0x408] sm:%s672]
                  %942 = vst [vmem:[%s680 + $0x208] sm:%s672] %v941
                  %v943 = vld [vmem:[%s679 + $0x40c] sm:%s672]
                  %944 = vst [vmem:[%s680 + $0x20c] sm:%s672] %v943
                  %v945 = vld [vmem:[%s679 + $0x410] sm:%s672]
                  %946 = vst [vmem:[%s680 + $0x210] sm:%s672] %v945
                  %v947 = vld [vmem:[%s679 + $0x414] sm:%s672]
                  %948 = vst [vmem:[%s680 + $0x214] sm:%s672] %v947
                  %v949 = vld [vmem:[%s679 + $0x418] sm:%s672]
                  %950 = vst [vmem:[%s680 + $0x218] sm:%s672] %v949
                  %v951 = vld [vmem:[%s679 + $0x41c] sm:%s672]
                  %952 = vst [vmem:[%s680 + $0x21c] sm:%s672] %v951
                  %v953 = vld [vmem:[%s679 + $0x420] sm:%s672]
                  %954 = vst [vmem:[%s680 + $0x220] sm:%s672] %v953
                  %v955 = vld [vmem:[%s679 + $0x424] sm:%s672]
                  %956 = vst [vmem:[%s680 + $0x224] sm:%s672] %v955
                  %v957 = vld [vmem:[%s679 + $0x428] sm:%s672]
                  %958 = vst [vmem:[%s680 + $0x228] sm:%s672] %v957
                  %v959 = vld [vmem:[%s679 + $0x42c] sm:%s672]
                  %960 = vst [vmem:[%s680 + $0x22c] sm:%s672] %v959
                  %v961 = vld [vmem:[%s679 + $0x430] sm:%s672]
                  %962 = vst [vmem:[%s680 + $0x230] sm:%s672] %v961
                  %v963 = vld [vmem:[%s679 + $0x434] sm:%s672]
                  %964 = vst [vmem:[%s680 + $0x234] sm:%s672] %v963
                  %v965 = vld [vmem:[%s679 + $0x438] sm:%s672]
                  %966 = vst [vmem:[%s680 + $0x238] sm:%s672] %v965
                  %v967 = vld [vmem:[%s679 + $0x43c] sm:%s672]
                  %968 = vst [vmem:[%s680 + $0x23c] sm:%s672] %v967
                $region108: #{ppm_forward.3} parent=95 // loop_footer
                  %s678 = sadd.s32 1, %s674
                $region109: #{ppm_forward.3} parent=95 // loop_footer_branch
                  %673 = sbr.rel target = $region105
                $region110: #{ppm_forward.3} parent=95 // loop_exit
                  _
              $region96: #{ppm_forward.3} parent=80 // pred_fallthru
                _
            $region81: #{ppm_forward.3} parent=76 // pred_fallthru
              _
            // Predicated region
            $region82: #{ppm_forward.3} parent=76 // pred_check
              _
            $region83: #{ppm_forward.3} parent=76 // pred_check_branch
              %362 = sbr.rel (0) target = $region85
            $region84: #{ppm_forward.3} parent=76 // pred_region
              %s364 = ssub.s32 16, 1
              loop: start=0, step=1, limit=1
              $region86: #{ppm_forward.3} parent=84 // loop_pre_header
                _
              $region87: #{ppm_forward.3} parent=84 // loop_header
                %s366 = sphi 0, %s370
                %p367 = scmp.ge.s32.totalorder %s366, 1
                %s371 = sphi %s356, %s356
                %s372 = sphi %s353, %s353
              $region88: #{ppm_forward.3} parent=84 // loop_header_branch
                %369 = sbr.rel (%p367) target = $region92
              $region89: #{ppm_forward.3} parent=84 // loop_body
                %v373 = vld [vmem:[%s371] sm:%s364]
                %374 = vst [vmem:[%s372] sm:%s364] %v373
                %v375 = vld [vmem:[%s371 + $0x4] sm:%s364]
                %376 = vst [vmem:[%s372 + $0x4] sm:%s364] %v375
                %v377 = vld [vmem:[%s371 + $0x8] sm:%s364]
                %378 = vst [vmem:[%s372 + $0x8] sm:%s364] %v377
                %v379 = vld [vmem:[%s371 + $0xc] sm:%s364]
                %380 = vst [vmem:[%s372 + $0xc] sm:%s364] %v379
                %v381 = vld [vmem:[%s371 + $0x10] sm:%s364]
                %382 = vst [vmem:[%s372 + $0x10] sm:%s364] %v381
                %v383 = vld [vmem:[%s371 + $0x14] sm:%s364]
                %384 = vst [vmem:[%s372 + $0x14] sm:%s364] %v383
                %v385 = vld [vmem:[%s371 + $0x18] sm:%s364]
                %386 = vst [vmem:[%s372 + $0x18] sm:%s364] %v385
                %v387 = vld [vmem:[%s371 + $0x1c] sm:%s364]
                %388 = vst [vmem:[%s372 + $0x1c] sm:%s364] %v387
                %v389 = vld [vmem:[%s371 + $0x20] sm:%s364]
                %390 = vst [vmem:[%s372 + $0x20] sm:%s364] %v389
                %v391 = vld [vmem:[%s371 + $0x24] sm:%s364]
                %392 = vst [vmem:[%s372 + $0x24] sm:%s364] %v391
                %v393 = vld [vmem:[%s371 + $0x28] sm:%s364]
                %394 = vst [vmem:[%s372 + $0x28] sm:%s364] %v393
                %v395 = vld [vmem:[%s371 + $0x2c] sm:%s364]
                %396 = vst [vmem:[%s372 + $0x2c] sm:%s364] %v395
                %v397 = vld [vmem:[%s371 + $0x30] sm:%s364]
                %398 = vst [vmem:[%s372 + $0x30] sm:%s364] %v397
                %v399 = vld [vmem:[%s371 + $0x34] sm:%s364]
                %400 = vst [vmem:[%s372 + $0x34] sm:%s364] %v399
                %v401 = vld [vmem:[%s371 + $0x38] sm:%s364]
                %402 = vst [vmem:[%s372 + $0x38] sm:%s364] %v401
                %v403 = vld [vmem:[%s371 + $0x3c] sm:%s364]
                %404 = vst [vmem:[%s372 + $0x3c] sm:%s364] %v403
                %v405 = vld [vmem:[%s371 + $0x80] sm:%s364]
                %406 = vst [vmem:[%s372 + $0x40] sm:%s364] %v405
                %v407 = vld [vmem:[%s371 + $0x84] sm:%s364]
                %408 = vst [vmem:[%s372 + $0x44] sm:%s364] %v407
                %v409 = vld [vmem:[%s371 + $0x88] sm:%s364]
                %410 = vst [vmem:[%s372 + $0x48] sm:%s364] %v409
                %v411 = vld [vmem:[%s371 + $0x8c] sm:%s364]
                %412 = vst [vmem:[%s372 + $0x4c] sm:%s364] %v411
                %v413 = vld [vmem:[%s371 + $0x90] sm:%s364]
                %414 = vst [vmem:[%s372 + $0x50] sm:%s364] %v413
                %v415 = vld [vmem:[%s371 + $0x94] sm:%s364]
                %416 = vst [vmem:[%s372 + $0x54] sm:%s364] %v415
                %v417 = vld [vmem:[%s371 + $0x98] sm:%s364]
                %418 = vst [vmem:[%s372 + $0x58] sm:%s364] %v417
                %v419 = vld [vmem:[%s371 + $0x9c] sm:%s364]
                %420 = vst [vmem:[%s372 + $0x5c] sm:%s364] %v419
                %v421 = vld [vmem:[%s371 + $0xa0] sm:%s364]
                %422 = vst [vmem:[%s372 + $0x60] sm:%s364] %v421
                %v423 = vld [vmem:[%s371 + $0xa4] sm:%s364]
                %424 = vst [vmem:[%s372 + $0x64] sm:%s364] %v423
                %v425 = vld [vmem:[%s371 + $0xa8] sm:%s364]
                %426 = vst [vmem:[%s372 + $0x68] sm:%s364] %v425
                %v427 = vld [vmem:[%s371 + $0xac] sm:%s364]
                %428 = vst [vmem:[%s372 + $0x6c] sm:%s364] %v427
                %v429 = vld [vmem:[%s371 + $0xb0] sm:%s364]
                %430 = vst [vmem:[%s372 + $0x70] sm:%s364] %v429
                %v431 = vld [vmem:[%s371 + $0xb4] sm:%s364]
                %432 = vst [vmem:[%s372 + $0x74] sm:%s364] %v431
                %v433 = vld [vmem:[%s371 + $0xb8] sm:%s364]
                %434 = vst [vmem:[%s372 + $0x78] sm:%s364] %v433
                %v435 = vld [vmem:[%s371 + $0xbc] sm:%s364]
                %436 = vst [vmem:[%s372 + $0x7c] sm:%s364] %v435
                %v437 = vld [vmem:[%s371 + $0x100] sm:%s364]
                %438 = vst [vmem:[%s372 + $0x80] sm:%s364] %v437
                %v439 = vld [vmem:[%s371 + $0x104] sm:%s364]
                %440 = vst [vmem:[%s372 + $0x84] sm:%s364] %v439
                %v441 = vld [vmem:[%s371 + $0x108] sm:%s364]
                %442 = vst [vmem:[%s372 + $0x88] sm:%s364] %v441
                %v443 = vld [vmem:[%s371 + $0x10c] sm:%s364]
                %444 = vst [vmem:[%s372 + $0x8c] sm:%s364] %v443
                %v445 = vld [vmem:[%s371 + $0x110] sm:%s364]
                %446 = vst [vmem:[%s372 + $0x90] sm:%s364] %v445
                %v447 = vld [vmem:[%s371 + $0x114] sm:%s364]
                %448 = vst [vmem:[%s372 + $0x94] sm:%s364] %v447
                %v449 = vld [vmem:[%s371 + $0x118] sm:%s364]
                %450 = vst [vmem:[%s372 + $0x98] sm:%s364] %v449
                %v451 = vld [vmem:[%s371 + $0x11c] sm:%s364]
                %452 = vst [vmem:[%s372 + $0x9c] sm:%s364] %v451
                %v453 = vld [vmem:[%s371 + $0x120] sm:%s364]
                %454 = vst [vmem:[%s372 + $0xa0] sm:%s364] %v453
                %v455 = vld [vmem:[%s371 + $0x124] sm:%s364]
                %456 = vst [vmem:[%s372 + $0xa4] sm:%s364] %v455
                %v457 = vld [vmem:[%s371 + $0x128] sm:%s364]
                %458 = vst [vmem:[%s372 + $0xa8] sm:%s364] %v457
                %v459 = vld [vmem:[%s371 + $0x12c] sm:%s364]
                %460 = vst [vmem:[%s372 + $0xac] sm:%s364] %v459
                %v461 = vld [vmem:[%s371 + $0x130] sm:%s364]
                %462 = vst [vmem:[%s372 + $0xb0] sm:%s364] %v461
                %v463 = vld [vmem:[%s371 + $0x134] sm:%s364]
                %464 = vst [vmem:[%s372 + $0xb4] sm:%s364] %v463
                %v465 = vld [vmem:[%s371 + $0x138] sm:%s364]
                %466 = vst [vmem:[%s372 + $0xb8] sm:%s364] %v465
                %v467 = vld [vmem:[%s371 + $0x13c] sm:%s364]
                %468 = vst [vmem:[%s372 + $0xbc] sm:%s364] %v467
                %v469 = vld [vmem:[%s371 + $0x180] sm:%s364]
                %470 = vst [vmem:[%s372 + $0xc0] sm:%s364] %v469
                %v471 = vld [vmem:[%s371 + $0x184] sm:%s364]
                %472 = vst [vmem:[%s372 + $0xc4] sm:%s364] %v471
                %v473 = vld [vmem:[%s371 + $0x188] sm:%s364]
                %474 = vst [vmem:[%s372 + $0xc8] sm:%s364] %v473
                %v475 = vld [vmem:[%s371 + $0x18c] sm:%s364]
                %476 = vst [vmem:[%s372 + $0xcc] sm:%s364] %v475
                %v477 = vld [vmem:[%s371 + $0x190] sm:%s364]
                %478 = vst [vmem:[%s372 + $0xd0] sm:%s364] %v477
                %v479 = vld [vmem:[%s371 + $0x194] sm:%s364]
                %480 = vst [vmem:[%s372 + $0xd4] sm:%s364] %v479
                %v481 = vld [vmem:[%s371 + $0x198] sm:%s364]
                %482 = vst [vmem:[%s372 + $0xd8] sm:%s364] %v481
                %v483 = vld [vmem:[%s371 + $0x19c] sm:%s364]
                %484 = vst [vmem:[%s372 + $0xdc] sm:%s364] %v483
                %v485 = vld [vmem:[%s371 + $0x1a0] sm:%s364]
                %486 = vst [vmem:[%s372 + $0xe0] sm:%s364] %v485
                %v487 = vld [vmem:[%s371 + $0x1a4] sm:%s364]
                %488 = vst [vmem:[%s372 + $0xe4] sm:%s364] %v487
                %v489 = vld [vmem:[%s371 + $0x1a8] sm:%s364]
                %490 = vst [vmem:[%s372 + $0xe8] sm:%s364] %v489
                %v491 = vld [vmem:[%s371 + $0x1ac] sm:%s364]
                %492 = vst [vmem:[%s372 + $0xec] sm:%s364] %v491
                %v493 = vld [vmem:[%s371 + $0x1b0] sm:%s364]
                %494 = vst [vmem:[%s372 + $0xf0] sm:%s364] %v493
                %v495 = vld [vmem:[%s371 + $0x1b4] sm:%s364]
                %496 = vst [vmem:[%s372 + $0xf4] sm:%s364] %v495
                %v497 = vld [vmem:[%s371 + $0x1b8] sm:%s364]
                %498 = vst [vmem:[%s372 + $0xf8] sm:%s364] %v497
                %v499 = vld [vmem:[%s371 + $0x1bc] sm:%s364]
                %500 = vst [vmem:[%s372 + $0xfc] sm:%s364] %v499
                %v501 = vld [vmem:[%s371 + $0x200] sm:%s364]
                %502 = vst [vmem:[%s372 + $0x100] sm:%s364] %v501
                %v503 = vld [vmem:[%s371 + $0x204] sm:%s364]
                %504 = vst [vmem:[%s372 + $0x104] sm:%s364] %v503
                %v505 = vld [vmem:[%s371 + $0x208] sm:%s364]
                %506 = vst [vmem:[%s372 + $0x108] sm:%s364] %v505
                %v507 = vld [vmem:[%s371 + $0x20c] sm:%s364]
                %508 = vst [vmem:[%s372 + $0x10c] sm:%s364] %v507
                %v509 = vld [vmem:[%s371 + $0x210] sm:%s364]
                %510 = vst [vmem:[%s372 + $0x110] sm:%s364] %v509
                %v511 = vld [vmem:[%s371 + $0x214] sm:%s364]
                %512 = vst [vmem:[%s372 + $0x114] sm:%s364] %v511
                %v513 = vld [vmem:[%s371 + $0x218] sm:%s364]
                %514 = vst [vmem:[%s372 + $0x118] sm:%s364] %v513
                %v515 = vld [vmem:[%s371 + $0x21c] sm:%s364]
                %516 = vst [vmem:[%s372 + $0x11c] sm:%s364] %v515
                %v517 = vld [vmem:[%s371 + $0x220] sm:%s364]
                %518 = vst [vmem:[%s372 + $0x120] sm:%s364] %v517
                %v519 = vld [vmem:[%s371 + $0x224] sm:%s364]
                %520 = vst [vmem:[%s372 + $0x124] sm:%s364] %v519
                %v521 = vld [vmem:[%s371 + $0x228] sm:%s364]
                %522 = vst [vmem:[%s372 + $0x128] sm:%s364] %v521
                %v523 = vld [vmem:[%s371 + $0x22c] sm:%s364]
                %524 = vst [vmem:[%s372 + $0x12c] sm:%s364] %v523
                %v525 = vld [vmem:[%s371 + $0x230] sm:%s364]
                %526 = vst [vmem:[%s372 + $0x130] sm:%s364] %v525
                %v527 = vld [vmem:[%s371 + $0x234] sm:%s364]
                %528 = vst [vmem:[%s372 + $0x134] sm:%s364] %v527
                %v529 = vld [vmem:[%s371 + $0x238] sm:%s364]
                %530 = vst [vmem:[%s372 + $0x138] sm:%s364] %v529
                %v531 = vld [vmem:[%s371 + $0x23c] sm:%s364]
                %532 = vst [vmem:[%s372 + $0x13c] sm:%s364] %v531
                %v533 = vld [vmem:[%s371 + $0x280] sm:%s364]
                %534 = vst [vmem:[%s372 + $0x140] sm:%s364] %v533
                %v535 = vld [vmem:[%s371 + $0x284] sm:%s364]
                %536 = vst [vmem:[%s372 + $0x144] sm:%s364] %v535
                %v537 = vld [vmem:[%s371 + $0x288] sm:%s364]
                %538 = vst [vmem:[%s372 + $0x148] sm:%s364] %v537
                %v539 = vld [vmem:[%s371 + $0x28c] sm:%s364]
                %540 = vst [vmem:[%s372 + $0x14c] sm:%s364] %v539
                %v541 = vld [vmem:[%s371 + $0x290] sm:%s364]
                %542 = vst [vmem:[%s372 + $0x150] sm:%s364] %v541
                %v543 = vld [vmem:[%s371 + $0x294] sm:%s364]
                %544 = vst [vmem:[%s372 + $0x154] sm:%s364] %v543
                %v545 = vld [vmem:[%s371 + $0x298] sm:%s364]
                %546 = vst [vmem:[%s372 + $0x158] sm:%s364] %v545
                %v547 = vld [vmem:[%s371 + $0x29c] sm:%s364]
                %548 = vst [vmem:[%s372 + $0x15c] sm:%s364] %v547
                %v549 = vld [vmem:[%s371 + $0x2a0] sm:%s364]
                %550 = vst [vmem:[%s372 + $0x160] sm:%s364] %v549
                %v551 = vld [vmem:[%s371 + $0x2a4] sm:%s364]
                %552 = vst [vmem:[%s372 + $0x164] sm:%s364] %v551
                %v553 = vld [vmem:[%s371 + $0x2a8] sm:%s364]
                %554 = vst [vmem:[%s372 + $0x168] sm:%s364] %v553
                %v555 = vld [vmem:[%s371 + $0x2ac] sm:%s364]
                %556 = vst [vmem:[%s372 + $0x16c] sm:%s364] %v555
                %v557 = vld [vmem:[%s371 + $0x2b0] sm:%s364]
                %558 = vst [vmem:[%s372 + $0x170] sm:%s364] %v557
                %v559 = vld [vmem:[%s371 + $0x2b4] sm:%s364]
                %560 = vst [vmem:[%s372 + $0x174] sm:%s364] %v559
                %v561 = vld [vmem:[%s371 + $0x2b8] sm:%s364]
                %562 = vst [vmem:[%s372 + $0x178] sm:%s364] %v561
                %v563 = vld [vmem:[%s371 + $0x2bc] sm:%s364]
                %564 = vst [vmem:[%s372 + $0x17c] sm:%s364] %v563
                %v565 = vld [vmem:[%s371 + $0x300] sm:%s364]
                %566 = vst [vmem:[%s372 + $0x180] sm:%s364] %v565
                %v567 = vld [vmem:[%s371 + $0x304] sm:%s364]
                %568 = vst [vmem:[%s372 + $0x184] sm:%s364] %v567
                %v569 = vld [vmem:[%s371 + $0x308] sm:%s364]
                %570 = vst [vmem:[%s372 + $0x188] sm:%s364] %v569
                %v571 = vld [vmem:[%s371 + $0x30c] sm:%s364]
                %572 = vst [vmem:[%s372 + $0x18c] sm:%s364] %v571
                %v573 = vld [vmem:[%s371 + $0x310] sm:%s364]
                %574 = vst [vmem:[%s372 + $0x190] sm:%s364] %v573
                %v575 = vld [vmem:[%s371 + $0x314] sm:%s364]
                %576 = vst [vmem:[%s372 + $0x194] sm:%s364] %v575
                %v577 = vld [vmem:[%s371 + $0x318] sm:%s364]
                %578 = vst [vmem:[%s372 + $0x198] sm:%s364] %v577
                %v579 = vld [vmem:[%s371 + $0x31c] sm:%s364]
                %580 = vst [vmem:[%s372 + $0x19c] sm:%s364] %v579
                %v581 = vld [vmem:[%s371 + $0x320] sm:%s364]
                %582 = vst [vmem:[%s372 + $0x1a0] sm:%s364] %v581
                %v583 = vld [vmem:[%s371 + $0x324] sm:%s364]
                %584 = vst [vmem:[%s372 + $0x1a4] sm:%s364] %v583
                %v585 = vld [vmem:[%s371 + $0x328] sm:%s364]
                %586 = vst [vmem:[%s372 + $0x1a8] sm:%s364] %v585
                %v587 = vld [vmem:[%s371 + $0x32c] sm:%s364]
                %588 = vst [vmem:[%s372 + $0x1ac] sm:%s364] %v587
                %v589 = vld [vmem:[%s371 + $0x330] sm:%s364]
                %590 = vst [vmem:[%s372 + $0x1b0] sm:%s364] %v589
                %v591 = vld [vmem:[%s371 + $0x334] sm:%s364]
                %592 = vst [vmem:[%s372 + $0x1b4] sm:%s364] %v591
                %v593 = vld [vmem:[%s371 + $0x338] sm:%s364]
                %594 = vst [vmem:[%s372 + $0x1b8] sm:%s364] %v593
                %v595 = vld [vmem:[%s371 + $0x33c] sm:%s364]
                %596 = vst [vmem:[%s372 + $0x1bc] sm:%s364] %v595
                %v597 = vld [vmem:[%s371 + $0x380] sm:%s364]
                %598 = vst [vmem:[%s372 + $0x1c0] sm:%s364] %v597
                %v599 = vld [vmem:[%s371 + $0x384] sm:%s364]
                %600 = vst [vmem:[%s372 + $0x1c4] sm:%s364] %v599
                %v601 = vld [vmem:[%s371 + $0x388] sm:%s364]
                %602 = vst [vmem:[%s372 + $0x1c8] sm:%s364] %v601
                %v603 = vld [vmem:[%s371 + $0x38c] sm:%s364]
                %604 = vst [vmem:[%s372 + $0x1cc] sm:%s364] %v603
                %v605 = vld [vmem:[%s371 + $0x390] sm:%s364]
                %606 = vst [vmem:[%s372 + $0x1d0] sm:%s364] %v605
                %v607 = vld [vmem:[%s371 + $0x394] sm:%s364]
                %608 = vst [vmem:[%s372 + $0x1d4] sm:%s364] %v607
                %v609 = vld [vmem:[%s371 + $0x398] sm:%s364]
                %610 = vst [vmem:[%s372 + $0x1d8] sm:%s364] %v609
                %v611 = vld [vmem:[%s371 + $0x39c] sm:%s364]
                %612 = vst [vmem:[%s372 + $0x1dc] sm:%s364] %v611
                %v613 = vld [vmem:[%s371 + $0x3a0] sm:%s364]
                %614 = vst [vmem:[%s372 + $0x1e0] sm:%s364] %v613
                %v615 = vld [vmem:[%s371 + $0x3a4] sm:%s364]
                %616 = vst [vmem:[%s372 + $0x1e4] sm:%s364] %v615
                %v617 = vld [vmem:[%s371 + $0x3a8] sm:%s364]
                %618 = vst [vmem:[%s372 + $0x1e8] sm:%s364] %v617
                %v619 = vld [vmem:[%s371 + $0x3ac] sm:%s364]
                %620 = vst [vmem:[%s372 + $0x1ec] sm:%s364] %v619
                %v621 = vld [vmem:[%s371 + $0x3b0] sm:%s364]
                %622 = vst [vmem:[%s372 + $0x1f0] sm:%s364] %v621
                %v623 = vld [vmem:[%s371 + $0x3b4] sm:%s364]
                %624 = vst [vmem:[%s372 + $0x1f4] sm:%s364] %v623
                %v625 = vld [vmem:[%s371 + $0x3b8] sm:%s364]
                %626 = vst [vmem:[%s372 + $0x1f8] sm:%s364] %v625
                %v627 = vld [vmem:[%s371 + $0x3bc] sm:%s364]
                %628 = vst [vmem:[%s372 + $0x1fc] sm:%s364] %v627
                %v629 = vld [vmem:[%s371 + $0x400] sm:%s364]
                %630 = vst [vmem:[%s372 + $0x200] sm:%s364] %v629
                %v631 = vld [vmem:[%s371 + $0x404] sm:%s364]
                %632 = vst [vmem:[%s372 + $0x204] sm:%s364] %v631
                %v633 = vld [vmem:[%s371 + $0x408] sm:%s364]
                %634 = vst [vmem:[%s372 + $0x208] sm:%s364] %v633
                %v635 = vld [vmem:[%s371 + $0x40c] sm:%s364]
                %636 = vst [vmem:[%s372 + $0x20c] sm:%s364] %v635
                %v637 = vld [vmem:[%s371 + $0x410] sm:%s364]
                %638 = vst [vmem:[%s372 + $0x210] sm:%s364] %v637
                %v639 = vld [vmem:[%s371 + $0x414] sm:%s364]
                %640 = vst [vmem:[%s372 + $0x214] sm:%s364] %v639
                %v641 = vld [vmem:[%s371 + $0x418] sm:%s364]
                %642 = vst [vmem:[%s372 + $0x218] sm:%s364] %v641
                %v643 = vld [vmem:[%s371 + $0x41c] sm:%s364]
                %644 = vst [vmem:[%s372 + $0x21c] sm:%s364] %v643
                %v645 = vld [vmem:[%s371 + $0x420] sm:%s364]
                %646 = vst [vmem:[%s372 + $0x220] sm:%s364] %v645
                %v647 = vld [vmem:[%s371 + $0x424] sm:%s364]
                %648 = vst [vmem:[%s372 + $0x224] sm:%s364] %v647
                %v649 = vld [vmem:[%s371 + $0x428] sm:%s364]
                %650 = vst [vmem:[%s372 + $0x228] sm:%s364] %v649
                %v651 = vld [vmem:[%s371 + $0x42c] sm:%s364]
                %652 = vst [vmem:[%s372 + $0x22c] sm:%s364] %v651
                %v653 = vld [vmem:[%s371 + $0x430] sm:%s364]
                %654 = vst [vmem:[%s372 + $0x230] sm:%s364] %v653
                %v655 = vld [vmem:[%s371 + $0x434] sm:%s364]
                %656 = vst [vmem:[%s372 + $0x234] sm:%s364] %v655
                %v657 = vld [vmem:[%s371 + $0x438] sm:%s364]
                %658 = vst [vmem:[%s372 + $0x238] sm:%s364] %v657
                %v659 = vld [vmem:[%s371 + $0x43c] sm:%s364]
                %660 = vst [vmem:[%s372 + $0x23c] sm:%s364] %v659
              $region90: #{ppm_forward.3} parent=84 // loop_footer
                %s370 = sadd.s32 1, %s366
              $region91: #{ppm_forward.3} parent=84 // loop_footer_branch
                %365 = sbr.rel target = $region87
              $region92: #{ppm_forward.3} parent=84 // loop_exit
                _
            $region85: #{ppm_forward.3} parent=76 // pred_fallthru
              _
          $region77: #{ppm_forward.3} parent=72 // pred_fallthru
            _
          %969 = vnop
        $region73: #{ppm_forward.3} parent=27 // pred_fallthru
          _
      $region28: #{ppm_forward.3} parent=5 // pred_fallthru
        _
      %p970 = scmp.le.s32.totalorder 1, %s11
      %p971 = scmp.lt.s32.totalorder %s11, 9
      %p972 = pnand %p970, %p971
      %p973 = pneg %p972
      // Predicated region
      $region111: #{ppm_forward.3} parent=5 // pred_check
        _
      $region112: #{ppm_forward.3} parent=5 // pred_check_branch
        %975 = sbr.rel (%p972) target = $region114
      $region113: #{ppm_forward.3} parent=5 // pred_region
        %s976 = ssub.s32 %s11, 1
        %s977 = sand.u32 %s47, 1
        %s978 = sand.u32 %s47, 1
        %s979 = smul.addr %s978, 92
        %s980 = scalar_lea.vmem [#allocation3], %s979
        // Predicated region
        $region115: #{ppm_forward.3} parent=113 // pred_check
          %p981 = pneg %p60
        $region116: #{ppm_forward.3} parent=113 // pred_check_branch
          %983 = sbr.rel (%p981) target = $region118
        $region117: #{ppm_forward.3} parent=113 // pred_region
          _
        $region118: #{ppm_forward.3} parent=113 // pred_fallthru
          _
        %s984 = sand.u32 %s73, 1
        %s985 = sand.u32 %s73, 1
        %s986 = smul.addr %s985, 576
        %s987 = scalar_lea.vmem [#allocation4], %s986
        // Predicated region
        $region119: #{ppm_forward.3} parent=113 // pred_check
          %p988 = pneg %p86
        $region120: #{ppm_forward.3} parent=113 // pred_check_branch
          %990 = sbr.rel (%p988) target = $region122
        $region121: #{ppm_forward.3} parent=113 // pred_region
          _
        $region122: #{ppm_forward.3} parent=113 // pred_fallthru
          _
        %s991 = sand.u32 %s47, 1
        %s992 = sand.u32 %s47, 1
        %s993 = smul.addr %s992, 92
        %s994 = scalar_lea.vmem [#allocation3], %s993
        %p995 = pneg %p60
        %p996 = pneg %p57
        %s997 = sand.u32 %s73, 1
        %s998 = sand.u32 %s73, 1
        %s999 = smul.addr %s998, 576
        %s1000 = scalar_lea.vmem [#allocation4], %s999
        %p1001 = pneg %p86
        %p1002 = pneg %p83
        %p1003 = pneg %p107
        %p1004 = pneg %p104
        %p1005 = pneg %p128
        %p1006 = pneg %p125
        %p1007 = pneg %p149
        %p1008 = pneg %p146
        %p1009 = pneg %p177
        %p1010 = pneg %p174
        %p1011 = scmp.lt.s32.totalorder %s21, 1
        %s1012 = scalar_select %p1011, %s21, 1
        %p1013 = scmp.lt.s32.totalorder %s22, 1
        %s1014 = scalar_select %p1013, %s22, 1
        %s1015 = smul.addr %s1014, 18
        %s1016 = smul.addr %s1012, 36
        %s1017 = sadd.s32 %s1015, %s1016
        %s1018 = smul.addr %s1017, 8
        %s1019 = scalar_lea.vmem %s5, %s1018
        %s1020 = smul.u32 16, %s23
        %p1021 = scmp.lt.s32.totalorder %s21, 1
        %s1022 = scalar_select %p1021, %s21, 1
        %p1023 = scmp.lt.s32.totalorder %s22, 1
        %s1024 = scalar_select %p1023, %s22, 1
        %s1025 = smul.addr %s1024, 18
        %s1026 = smul.addr %s1022, 36
        %s1027 = sadd.s32 %s1025, %s1026
        %s1028 = smul.addr %s1027, 8
        %s1029 = scalar_lea.vmem %s5, %s1028
        %p1031 = scmp.eq.s32.totalorder %s23, 0
        // Predicated region
        $region123: #{ppm_forward.3} parent=113 // pred_check
          %p1032 = pneg %p1031
        $region124: #{ppm_forward.3} parent=113 // pred_check_branch
          %1034 = sbr.rel (%p1032) target = $region126
        $region125: #{ppm_forward.3} parent=113 // pred_region
          %vm1035 = vcmask 261120
          %1036 = vst.msk [vmem:[#allocation2] sm:$0xff] %vm1035, 0.0
          %1037 = vst.msk [vmem:[#allocation2 + $0x8] sm:$0xff] %vm1035, 0.0
          %1038 = vst.msk [vmem:[#allocation2 + $0x10] sm:$0xff] %vm1035, 0.0
          %1039 = vst.msk [vmem:[#allocation2 + $0x18] sm:$0xff] %vm1035, 0.0
          %1040 = vst.msk [vmem:[#allocation2 + $0x20] sm:$0xff] %vm1035, 0.0
          %1041 = vst.msk [vmem:[#allocation2 + $0x28] sm:$0xff] %vm1035, 0.0
          %1042 = vst.msk [vmem:[#allocation2 + $0x30] sm:$0xff] %vm1035, 0.0
          %1043 = vst.msk [vmem:[#allocation2 + $0x38] sm:$0xff] %vm1035, 0.0
          %1044 = vst.msk [vmem:[#allocation2 + $0x40] sm:$0xff] %vm1035, 0.0
          %1045 = vst.msk [vmem:[#allocation2 + $0x48] sm:$0xff] %vm1035, 0.0
          %1046 = vst.msk [vmem:[#allocation2 + $0x50] sm:$0xff] %vm1035, 0.0
          %1047 = vst.msk [vmem:[#allocation2 + $0x58] sm:$0xff] %vm1035, 0.0
          %1048 = vst.msk [vmem:[#allocation2 + $0x60] sm:$0xff] %vm1035, 0.0
          %1049 = vst.msk [vmem:[#allocation2 + $0x68] sm:$0xff] %vm1035, 0.0
          %1050 = vst.msk [vmem:[#allocation2 + $0x70] sm:$0xff] %vm1035, 0.0
          %1051 = vst.msk [vmem:[#allocation2 + $0x78] sm:$0xff] %vm1035, 0.0
          %1052 = vst.msk [vmem:[#allocation2 + $0x80] sm:$0xff] %vm1035, 0.0
          %1053 = vst.msk [vmem:[#allocation2 + $0x88] sm:$0xff] %vm1035, 0.0
        $region126: #{ppm_forward.3} parent=113 // pred_fallthru
          _
        %v1054 = vld [vmem:[%s980] sm:$0xf]
        %v1055 = vld [vmem:[%s980 + $0x4] sm:$0xf]
        %v1056 = vld [vmem:[%s980 + $0x8] sm:$0xf]
        %v1057 = vld [vmem:[%s980 + $0xc] sm:$0xf]
        %v1058 = vld [vmem:[%s980 + $0x10] sm:$0xf]
        %v1059 = vld [vmem:[%s980 + $0x14] sm:$0xf]
        %v1060 = vld [vmem:[%s980 + $0x18] sm:$0xf]
        %v1061 = vld [vmem:[%s980 + $0x1c] sm:$0xf]
        %v1062 = vld [vmem:[%s980 + $0x20] sm:$0xf]
        %v1063 = vld [vmem:[%s980 + $0x24] sm:$0xf]
        %v1064 = vld [vmem:[%s980 + $0x28] sm:$0xf]
        %v1065 = vld [vmem:[%s980 + $0x2c] sm:$0xf]
        %v1066 = vld [vmem:[%s980 + $0x30] sm:$0xf]
        %v1067 = vld [vmem:[%s980 + $0x34] sm:$0xf]
        %v1068 = vld [vmem:[%s980 + $0x38] sm:$0xf]
        %v1069 = vld [vmem:[%s980 + $0x3c] sm:$0xf]
        %v1070 = vld [vmem:[%s980 + $0x40] sm:$0xf]
        %v1071 = vld [vmem:[%s980 + $0x44] sm:$0xf]
        %v1072 = vld [vmem:[%s980 + $0x48] sm:$0xf]
        %v1073 = vld [vmem:[%s980 + $0x4c] sm:$0xf]
        %v1074 = vld [vmem:[%s980 + $0x50] sm:$0xf]
        %v1075 = vld [vmem:[%s980 + $0x54] sm:$0xf]
        %v1076 = vld [vmem:[%s980 + $0x58] sm:$0xf]
        %v1077 = vld [vmem:[#allocation2] sm:$0xff]
        %v1078 = vld [vmem:[#allocation2 + $0x8] sm:$0xff]
        %v1079 = vld [vmem:[#allocation2 + $0x10] sm:$0xff]
        %v1080 = vld [vmem:[#allocation2 + $0x18] sm:$0xff]
        %v1081 = vld [vmem:[#allocation2 + $0x20] sm:$0xff]
        %v1082 = vld [vmem:[#allocation2 + $0x28] sm:$0xff]
        %v1083 = vld [vmem:[#allocation2 + $0x30] sm:$0xff]
        %v1084 = vld [vmem:[#allocation2 + $0x38] sm:$0xff]
        %v1085 = vld [vmem:[#allocation2 + $0x40] sm:$0xff]
        %v1086 = vld [vmem:[#allocation2 + $0x48] sm:$0xff]
        %v1087 = vld [vmem:[#allocation2 + $0x50] sm:$0xff]
        %v1088 = vld [vmem:[#allocation2 + $0x58] sm:$0xff]
        %v1089 = vld [vmem:[#allocation2 + $0x60] sm:$0xff]
        %v1090 = vld [vmem:[#allocation2 + $0x68] sm:$0xff]
        %v1091 = vld [vmem:[#allocation2 + $0x70] sm:$0xff]
        %v1092 = vld [vmem:[#allocation2 + $0x78] sm:$0xff]
        %v1093 = vld [vmem:[#allocation2 + $0x80] sm:$0xff]
        %v1094 = vld [vmem:[#allocation2 + $0x88] sm:$0xff]
        %v1095 = vld [vmem:[%s987] sm:$0xf]
        %v1096 = vld [vmem:[%s987 + $0x4] sm:$0xf]
        %v1097 = vld [vmem:[%s987 + $0x8] sm:$0xf]
        %v1098 = vld [vmem:[%s987 + $0xc] sm:$0xf]
        %v1099 = vld [vmem:[%s987 + $0x10] sm:$0xf]
        %v1100 = vld [vmem:[%s987 + $0x14] sm:$0xf]
        %v1101 = vld [vmem:[%s987 + $0x18] sm:$0xf]
        %v1102 = vld [vmem:[%s987 + $0x1c] sm:$0xf]
        %v1103 = vld [vmem:[%s987 + $0x20] sm:$0xf]
        %v1104 = vld [vmem:[%s987 + $0x24] sm:$0xf]
        %v1105 = vld [vmem:[%s987 + $0x28] sm:$0xf]
        %v1106 = vld [vmem:[%s987 + $0x2c] sm:$0xf]
        %v1107 = vld [vmem:[%s987 + $0x30] sm:$0xf]
        %v1108 = vld [vmem:[%s987 + $0x34] sm:$0xf]
        %v1109 = vld [vmem:[%s987 + $0x38] sm:$0xf]
        %v1110 = vld [vmem:[%s987 + $0x3c] sm:$0xf]
        %v1129 = vunpack.c.l.b16 %v1054
        %v1130 = vunpack.c.l.b16 %v1055
        %v1131 = vunpack.c.l.b16 %v1056
        %v1132 = vunpack.c.l.b16 %v1057
        %v1133 = vunpack.c.l.b16 %v1058
        %v1134 = vunpack.c.l.b16 %v1059
        %v1135 = vunpack.c.l.b16 %v1060
        %v1136 = vunpack.c.l.b16 %v1061
        %v1137 = vunpack.c.l.b16 %v1062
        %v1138 = vunpack.c.l.b16 %v1063
        %v1139 = vunpack.c.l.b16 %v1064
        %v1140 = vunpack.c.l.b16 %v1065
        %v1141 = vunpack.c.l.b16 %v1066
        %v1142 = vunpack.c.l.b16 %v1067
        %v1143 = vunpack.c.l.b16 %v1068
        %v1144 = vunpack.c.l.b16 %v1069
        %v1145 = vunpack.c.l.b16 %v1070
        %v1146 = vunpack.c.l.b16 %v1071
        %v1147 = vpack.c.b16 %v1130, %v1129
        %v1148 = vpack.c.b16 %v1132, %v1131
        %v1149 = vpack.c.b16 %v1134, %v1133
        %v1150 = vpack.c.b16 %v1136, %v1135
        %v1151 = vpack.c.b16 %v1138, %v1137
        %v1152 = vpack.c.b16 %v1140, %v1139
        %v1153 = vpack.c.b16 %v1142, %v1141
        %v1154 = vpack.c.b16 %v1144, %v1143
        %v1155 = vpack.c.b16 %v1146, %v1145
        %v1181 = vunpack.c.l.b16 %v1095
        %v1182 = vunpack.c.l.b16 %v1096
        %v1183 = vunpack.c.l.b16 %v1097
        %v1184 = vunpack.c.l.b16 %v1098
        %v1185 = vunpack.c.l.b16 %v1099
        %v1186 = vunpack.c.l.b16 %v1100
        %v1187 = vunpack.c.l.b16 %v1101
        %v1188 = vunpack.c.l.b16 %v1102
        %v1189 = vunpack.c.l.b16 %v1103
        %v1190 = vunpack.c.l.b16 %v1104
        %v1191 = vunpack.c.l.b16 %v1105
        %v1192 = vunpack.c.l.b16 %v1106
        %v1193 = vunpack.c.l.b16 %v1107
        %v1194 = vunpack.c.l.b16 %v1108
        %v1195 = vunpack.c.l.b16 %v1109
        %v1196 = vunpack.c.l.b16 %v1110
        %v1197 = vpack.c.b16 %v1182, %v1181
        %v1198 = vpack.c.b16 %v1184, %v1183
        %v1199 = vpack.c.b16 %v1186, %v1185
        %v1200 = vpack.c.b16 %v1188, %v1187
        %v1201 = vpack.c.b16 %v1190, %v1189
        %v1202 = vpack.c.b16 %v1192, %v1191
        %v1203 = vpack.c.b16 %v1194, %v1193
        %v1204 = vpack.c.b16 %v1196, %v1195
        %1213 = vmatpush.bf16.msra.mxu0 %v1204
        %1214 = vmatpush.bf16.msra.mxu0 %v1203
        %1215 = vmatpush.bf16.msra.mxu0 %v1202
        %1216 = vmatpush.bf16.msra.mxu0 %v1201
        %1217 = vmatpush.bf16.msra.mxu0 %v1200
        %1218 = vmatpush.bf16.msra.mxu0 %v1199
        %1219 = vmatpush.bf16.msra.mxu0 %v1198
        %1220 = vmatpush.bf16.msra.mxu0 %v1197
        %1221 = vmatmul.bf16.gmra.mxu0 %v1147
        %v1222 = vpop.f32.mrf.mxu0
        %v1223 = vadd.f32 0.0, %v1222
        %v1224 = vpop.f32.mrf.mxu0
        %v1225 = vadd.f32 0.0, %v1224
        %1226 = vmatmul.bf16.gmra.mxu0 %v1148
        %v1227 = vpop.f32.mrf.mxu0
        %v1228 = vadd.f32 0.0, %v1227
        %v1229 = vpop.f32.mrf.mxu0
        %v1230 = vadd.f32 0.0, %v1229
        %1231 = vmatmul.bf16.gmra.mxu0 %v1149
        %v1232 = vpop.f32.mrf.mxu0
        %v1233 = vadd.f32 0.0, %v1232
        %v1234 = vpop.f32.mrf.mxu0
        %v1235 = vadd.f32 0.0, %v1234
        %1236 = vmatmul.bf16.gmra.mxu0 %v1150
        %v1237 = vpop.f32.mrf.mxu0
        %v1238 = vadd.f32 0.0, %v1237
        %v1239 = vpop.f32.mrf.mxu0
        %v1240 = vadd.f32 0.0, %v1239
        %1241 = vmatmul.bf16.gmra.mxu0 %v1151
        %v1242 = vpop.f32.mrf.mxu0
        %v1243 = vadd.f32 0.0, %v1242
        %v1244 = vpop.f32.mrf.mxu0
        %v1245 = vadd.f32 0.0, %v1244
        %1246 = vmatmul.bf16.gmra.mxu0 %v1152
        %v1247 = vpop.f32.mrf.mxu0
        %v1248 = vadd.f32 0.0, %v1247
        %v1249 = vpop.f32.mrf.mxu0
        %v1250 = vadd.f32 0.0, %v1249
        %1251 = vmatmul.bf16.gmra.mxu0 %v1153
        %v1252 = vpop.f32.mrf.mxu0
        %v1253 = vadd.f32 0.0, %v1252
        %v1254 = vpop.f32.mrf.mxu0
        %v1255 = vadd.f32 0.0, %v1254
        %1256 = vmatmul.bf16.gmra.mxu0 %v1154
        %v1257 = vpop.f32.mrf.mxu0
        %v1258 = vadd.f32 0.0, %v1257
        %v1259 = vpop.f32.mrf.mxu0
        %v1260 = vadd.f32 0.0, %v1259
        %1261 = vmatmul.bf16.gmra.mxu0 %v1155
        %v1262 = vpop.f32.mrf.mxu0
        %v1263 = vadd.f32 0.0, %v1262
        %v1264 = vpop.f32.mrf.mxu0
        %v1265 = vadd.f32 0.0, %v1264
        %1266 = vdwg.mxu0
        %v1267 = vadd.f32 %v1077, %v1223
        %v1268 = vadd.f32 %v1078, %v1225
        %v1269 = vadd.f32 %v1079, %v1228
        %v1270 = vadd.f32 %v1080, %v1230
        %v1271 = vadd.f32 %v1081, %v1233
        %v1272 = vadd.f32 %v1082, %v1235
        %v1273 = vadd.f32 %v1083, %v1238
        %v1274 = vadd.f32 %v1084, %v1240
        %v1275 = vadd.f32 %v1085, %v1243
        %v1276 = vadd.f32 %v1086, %v1245
        %v1277 = vadd.f32 %v1087, %v1248
        %v1278 = vadd.f32 %v1088, %v1250
        %v1279 = vadd.f32 %v1089, %v1253
        %v1280 = vadd.f32 %v1090, %v1255
        %v1281 = vadd.f32 %v1091, %v1258
        %v1282 = vadd.f32 %v1092, %v1260
        %v1283 = vadd.f32 %v1093, %v1263
        %v1284 = vadd.f32 %v1094, %v1265
        %s1285 = scalar_lea.vmem %s987, 64 [#allocation4]
        %v1286 = vld [vmem:[%s1285] sm:$0xf]
        %v1287 = vld [vmem:[%s1285 + $0x4] sm:$0xf]
        %v1288 = vld [vmem:[%s1285 + $0x8] sm:$0xf]
        %v1289 = vld [vmem:[%s1285 + $0xc] sm:$0xf]
        %v1290 = vld [vmem:[%s1285 + $0x10] sm:$0xf]
        %v1291 = vld [vmem:[%s1285 + $0x14] sm:$0xf]
        %v1292 = vld [vmem:[%s1285 + $0x18] sm:$0xf]
        %v1293 = vld [vmem:[%s1285 + $0x1c] sm:$0xf]
        %v1294 = vld [vmem:[%s1285 + $0x20] sm:$0xf]
        %v1295 = vld [vmem:[%s1285 + $0x24] sm:$0xf]
        %v1296 = vld [vmem:[%s1285 + $0x28] sm:$0xf]
        %v1297 = vld [vmem:[%s1285 + $0x2c] sm:$0xf]
        %v1298 = vld [vmem:[%s1285 + $0x30] sm:$0xf]
        %v1299 = vld [vmem:[%s1285 + $0x34] sm:$0xf]
        %v1300 = vld [vmem:[%s1285 + $0x38] sm:$0xf]
        %v1301 = vld [vmem:[%s1285 + $0x3c] sm:$0xf]
        %v1303 = vunpack.c.l.b16 %v1072
        %v1304 = vpack.c.b16 %v1303, %v1303
        %vm1305 = vsmask.f32 7424
        %v1307 = vshrl.u32 %v1147, 16
        %v1309 = vshll.u32 %v1147, 16
        %v1311 = vrot.slane %v1309, 1
        %v1312 = vor.u32 %v1307, %v1311
        %v1314 = vshll.u32 %v1148, 16
        %v1316 = vrot.slane %v1314, 1
        %v1317 = vsel %vm1305, %v1312, %v1316
        %v1318 = vshrl.u32 %v1148, 16
        %v1320 = vor.u32 %v1318, %v1316
        %v1322 = vshll.u32 %v1149, 16
        %v1324 = vrot.slane %v1322, 1
        %v1325 = vsel %vm1305, %v1320, %v1324
        %v1326 = vshrl.u32 %v1149, 16
        %v1328 = vor.u32 %v1326, %v1324
        %v1330 = vshll.u32 %v1150, 16
        %v1332 = vrot.slane %v1330, 1
        %v1333 = vsel %vm1305, %v1328, %v1332
        %v1334 = vshrl.u32 %v1150, 16
        %v1336 = vor.u32 %v1334, %v1332
        %v1338 = vshll.u32 %v1151, 16
        %v1340 = vrot.slane %v1338, 1
        %v1341 = vsel %vm1305, %v1336, %v1340
        %v1342 = vshrl.u32 %v1151, 16
        %v1344 = vor.u32 %v1342, %v1340
        %v1346 = vshll.u32 %v1152, 16
        %v1348 = vrot.slane %v1346, 1
        %v1349 = vsel %vm1305, %v1344, %v1348
        %v1350 = vshrl.u32 %v1152, 16
        %v1352 = vor.u32 %v1350, %v1348
        %v1354 = vshll.u32 %v1153, 16
        %v1356 = vrot.slane %v1354, 1
        %v1357 = vsel %vm1305, %v1352, %v1356
        %v1358 = vshrl.u32 %v1153, 16
        %v1360 = vor.u32 %v1358, %v1356
        %v1362 = vshll.u32 %v1154, 16
        %v1364 = vrot.slane %v1362, 1
        %v1365 = vsel %vm1305, %v1360, %v1364
        %v1366 = vshrl.u32 %v1154, 16
        %v1368 = vor.u32 %v1366, %v1364
        %v1370 = vshll.u32 %v1155, 16
        %v1372 = vrot.slane %v1370, 1
        %v1373 = vsel %vm1305, %v1368, %v1372
        %v1374 = vshrl.u32 %v1155, 16
        %v1376 = vor.u32 %v1374, %v1372
        %v1378 = vshll.u32 %v1304, 16
        %v1380 = vrot.slane %v1378, 1
        %v1381 = vsel %vm1305, %v1376, %v1380
        %v1407 = vunpack.c.l.b16 %v1286
        %v1408 = vunpack.c.l.b16 %v1287
        %v1409 = vunpack.c.l.b16 %v1288
        %v1410 = vunpack.c.l.b16 %v1289
        %v1411 = vunpack.c.l.b16 %v1290
        %v1412 = vunpack.c.l.b16 %v1291
        %v1413 = vunpack.c.l.b16 %v1292
        %v1414 = vunpack.c.l.b16 %v1293
        %v1415 = vunpack.c.l.b16 %v1294
        %v1416 = vunpack.c.l.b16 %v1295
        %v1417 = vunpack.c.l.b16 %v1296
        %v1418 = vunpack.c.l.b16 %v1297
        %v1419 = vunpack.c.l.b16 %v1298
        %v1420 = vunpack.c.l.b16 %v1299
        %v1421 = vunpack.c.l.b16 %v1300
        %v1422 = vunpack.c.l.b16 %v1301
        %v1423 = vpack.c.b16 %v1408, %v1407
        %v1424 = vpack.c.b16 %v1410, %v1409
        %v1425 = vpack.c.b16 %v1412, %v1411
        %v1426 = vpack.c.b16 %v1414, %v1413
        %v1427 = vpack.c.b16 %v1416, %v1415
        %v1428 = vpack.c.b16 %v1418, %v1417
        %v1429 = vpack.c.b16 %v1420, %v1419
        %v1430 = vpack.c.b16 %v1422, %v1421
        %1439 = vmatpush.bf16.msra.mxu0 %v1430
        %1440 = vmatpush.bf16.msra.mxu0 %v1429
        %1441 = vmatpush.bf16.msra.mxu0 %v1428
        %1442 = vmatpush.bf16.msra.mxu0 %v1427
        %1443 = vmatpush.bf16.msra.mxu0 %v1426
        %1444 = vmatpush.bf16.msra.mxu0 %v1425
        %1445 = vmatpush.bf16.msra.mxu0 %v1424
        %1446 = vmatpush.bf16.msra.mxu0 %v1423
        %1447 = vmatmul.bf16.gmra.mxu0 %v1317
        %v1448 = vpop.f32.mrf.mxu0
        %v1449 = vadd.f32 0.0, %v1448
        %v1450 = vpop.f32.mrf.mxu0
        %v1451 = vadd.f32 0.0, %v1450
        %1452 = vmatmul.bf16.gmra.mxu0 %v1325
        %v1453 = vpop.f32.mrf.mxu0
        %v1454 = vadd.f32 0.0, %v1453
        %v1455 = vpop.f32.mrf.mxu0
        %v1456 = vadd.f32 0.0, %v1455
        %1457 = vmatmul.bf16.gmra.mxu0 %v1333
        %v1458 = vpop.f32.mrf.mxu0
        %v1459 = vadd.f32 0.0, %v1458
        %v1460 = vpop.f32.mrf.mxu0
        %v1461 = vadd.f32 0.0, %v1460
        %1462 = vmatmul.bf16.gmra.mxu0 %v1341
        %v1463 = vpop.f32.mrf.mxu0
        %v1464 = vadd.f32 0.0, %v1463
        %v1465 = vpop.f32.mrf.mxu0
        %v1466 = vadd.f32 0.0, %v1465
        %1467 = vmatmul.bf16.gmra.mxu0 %v1349
        %v1468 = vpop.f32.mrf.mxu0
        %v1469 = vadd.f32 0.0, %v1468
        %v1470 = vpop.f32.mrf.mxu0
        %v1471 = vadd.f32 0.0, %v1470
        %1472 = vmatmul.bf16.gmra.mxu0 %v1357
        %v1473 = vpop.f32.mrf.mxu0
        %v1474 = vadd.f32 0.0, %v1473
        %v1475 = vpop.f32.mrf.mxu0
        %v1476 = vadd.f32 0.0, %v1475
        %1477 = vmatmul.bf16.gmra.mxu0 %v1365
        %v1478 = vpop.f32.mrf.mxu0
        %v1479 = vadd.f32 0.0, %v1478
        %v1480 = vpop.f32.mrf.mxu0
        %v1481 = vadd.f32 0.0, %v1480
        %1482 = vmatmul.bf16.gmra.mxu0 %v1373
        %v1483 = vpop.f32.mrf.mxu0
        %v1484 = vadd.f32 0.0, %v1483
        %v1485 = vpop.f32.mrf.mxu0
        %v1486 = vadd.f32 0.0, %v1485
        %1487 = vmatmul.bf16.gmra.mxu0 %v1381
        %v1488 = vpop.f32.mrf.mxu0
        %v1489 = vadd.f32 0.0, %v1488
        %v1490 = vpop.f32.mrf.mxu0
        %v1491 = vadd.f32 0.0, %v1490
        %1492 = vdwg.mxu0
        %v1493 = vadd.f32 %v1267, %v1449
        %v1494 = vadd.f32 %v1268, %v1451
        %v1495 = vadd.f32 %v1269, %v1454
        %v1496 = vadd.f32 %v1270, %v1456
        %v1497 = vadd.f32 %v1271, %v1459
        %v1498 = vadd.f32 %v1272, %v1461
        %v1499 = vadd.f32 %v1273, %v1464
        %v1500 = vadd.f32 %v1274, %v1466
        %v1501 = vadd.f32 %v1275, %v1469
        %v1502 = vadd.f32 %v1276, %v1471
        %v1503 = vadd.f32 %v1277, %v1474
        %v1504 = vadd.f32 %v1278, %v1476
        %v1505 = vadd.f32 %v1279, %v1479
        %v1506 = vadd.f32 %v1280, %v1481
        %v1507 = vadd.f32 %v1281, %v1484
        %v1508 = vadd.f32 %v1282, %v1486
        %v1509 = vadd.f32 %v1283, %v1489
        %v1510 = vadd.f32 %v1284, %v1491
        %s1511 = scalar_lea.vmem %s987, 128 [#allocation4]
        %v1512 = vld [vmem:[%s1511] sm:$0xf]
        %v1513 = vld [vmem:[%s1511 + $0x4] sm:$0xf]
        %v1514 = vld [vmem:[%s1511 + $0x8] sm:$0xf]
        %v1515 = vld [vmem:[%s1511 + $0xc] sm:$0xf]
        %v1516 = vld [vmem:[%s1511 + $0x10] sm:$0xf]
        %v1517 = vld [vmem:[%s1511 + $0x14] sm:$0xf]
        %v1518 = vld [vmem:[%s1511 + $0x18] sm:$0xf]
        %v1519 = vld [vmem:[%s1511 + $0x1c] sm:$0xf]
        %v1520 = vld [vmem:[%s1511 + $0x20] sm:$0xf]
        %v1521 = vld [vmem:[%s1511 + $0x24] sm:$0xf]
        %v1522 = vld [vmem:[%s1511 + $0x28] sm:$0xf]
        %v1523 = vld [vmem:[%s1511 + $0x2c] sm:$0xf]
        %v1524 = vld [vmem:[%s1511 + $0x30] sm:$0xf]
        %v1525 = vld [vmem:[%s1511 + $0x34] sm:$0xf]
        %v1526 = vld [vmem:[%s1511 + $0x38] sm:$0xf]
        %v1527 = vld [vmem:[%s1511 + $0x3c] sm:$0xf]
        %vm1528 = vcmask 1046528
        %v1529 = vrot.slane %v1147, 1
        %v1530 = vrot.slane %v1148, 1
        %v1531 = vsel %vm1528, %v1529, %v1530
        %v1532 = vrot.slane %v1149, 1
        %v1533 = vsel %vm1528, %v1530, %v1532
        %v1534 = vrot.slane %v1150, 1
        %v1535 = vsel %vm1528, %v1532, %v1534
        %v1536 = vrot.slane %v1151, 1
        %v1537 = vsel %vm1528, %v1534, %v1536
        %v1538 = vrot.slane %v1152, 1
        %v1539 = vsel %vm1528, %v1536, %v1538
        %v1540 = vrot.slane %v1153, 1
        %v1541 = vsel %vm1528, %v1538, %v1540
        %v1542 = vrot.slane %v1154, 1
        %v1543 = vsel %vm1528, %v1540, %v1542
        %v1544 = vrot.slane %v1155, 1
        %v1545 = vsel %vm1528, %v1542, %v1544
        %v1546 = vrot.slane %v1304, 1
        %v1547 = vsel %vm1528, %v1544, %v1546
        %v1573 = vunpack.c.l.b16 %v1512
        %v1574 = vunpack.c.l.b16 %v1513
        %v1575 = vunpack.c.l.b16 %v1514
        %v1576 = vunpack.c.l.b16 %v1515
        %v1577 = vunpack.c.l.b16 %v1516
        %v1578 = vunpack.c.l.b16 %v1517
        %v1579 = vunpack.c.l.b16 %v1518
        %v1580 = vunpack.c.l.b16 %v1519
        %v1581 = vunpack.c.l.b16 %v1520
        %v1582 = vunpack.c.l.b16 %v1521
        %v1583 = vunpack.c.l.b16 %v1522
        %v1584 = vunpack.c.l.b16 %v1523
        %v1585 = vunpack.c.l.b16 %v1524
        %v1586 = vunpack.c.l.b16 %v1525
        %v1587 = vunpack.c.l.b16 %v1526
        %v1588 = vunpack.c.l.b16 %v1527
        %v1589 = vpack.c.b16 %v1574, %v1573
        %v1590 = vpack.c.b16 %v1576, %v1575
        %v1591 = vpack.c.b16 %v1578, %v1577
        %v1592 = vpack.c.b16 %v1580, %v1579
        %v1593 = vpack.c.b16 %v1582, %v1581
        %v1594 = vpack.c.b16 %v1584, %v1583
        %v1595 = vpack.c.b16 %v1586, %v1585
        %v1596 = vpack.c.b16 %v1588, %v1587
        %1605 = vmatpush.bf16.msra.mxu0 %v1596
        %1606 = vmatpush.bf16.msra.mxu0 %v1595
        %1607 = vmatpush.bf16.msra.mxu0 %v1594
        %1608 = vmatpush.bf16.msra.mxu0 %v1593
        %1609 = vmatpush.bf16.msra.mxu0 %v1592
        %1610 = vmatpush.bf16.msra.mxu0 %v1591
        %1611 = vmatpush.bf16.msra.mxu0 %v1590
        %1612 = vmatpush.bf16.msra.mxu0 %v1589
        %1613 = vmatmul.bf16.gmra.mxu0 %v1531
        %v1614 = vpop.f32.mrf.mxu0
        %v1615 = vadd.f32 0.0, %v1614
        %v1616 = vpop.f32.mrf.mxu0
        %v1617 = vadd.f32 0.0, %v1616
        %1618 = vmatmul.bf16.gmra.mxu0 %v1533
        %v1619 = vpop.f32.mrf.mxu0
        %v1620 = vadd.f32 0.0, %v1619
        %v1621 = vpop.f32.mrf.mxu0
        %v1622 = vadd.f32 0.0, %v1621
        %1623 = vmatmul.bf16.gmra.mxu0 %v1535
        %v1624 = vpop.f32.mrf.mxu0
        %v1625 = vadd.f32 0.0, %v1624
        %v1626 = vpop.f32.mrf.mxu0
        %v1627 = vadd.f32 0.0, %v1626
        %1628 = vmatmul.bf16.gmra.mxu0 %v1537
        %v1629 = vpop.f32.mrf.mxu0
        %v1630 = vadd.f32 0.0, %v1629
        %v1631 = vpop.f32.mrf.mxu0
        %v1632 = vadd.f32 0.0, %v1631
        %1633 = vmatmul.bf16.gmra.mxu0 %v1539
        %v1634 = vpop.f32.mrf.mxu0
        %v1635 = vadd.f32 0.0, %v1634
        %v1636 = vpop.f32.mrf.mxu0
        %v1637 = vadd.f32 0.0, %v1636
        %1638 = vmatmul.bf16.gmra.mxu0 %v1541
        %v1639 = vpop.f32.mrf.mxu0
        %v1640 = vadd.f32 0.0, %v1639
        %v1641 = vpop.f32.mrf.mxu0
        %v1642 = vadd.f32 0.0, %v1641
        %1643 = vmatmul.bf16.gmra.mxu0 %v1543
        %v1644 = vpop.f32.mrf.mxu0
        %v1645 = vadd.f32 0.0, %v1644
        %v1646 = vpop.f32.mrf.mxu0
        %v1647 = vadd.f32 0.0, %v1646
        %1648 = vmatmul.bf16.gmra.mxu0 %v1545
        %v1649 = vpop.f32.mrf.mxu0
        %v1650 = vadd.f32 0.0, %v1649
        %v1651 = vpop.f32.mrf.mxu0
        %v1652 = vadd.f32 0.0, %v1651
        %1653 = vmatmul.bf16.gmra.mxu0 %v1547
        %v1654 = vpop.f32.mrf.mxu0
        %v1655 = vadd.f32 0.0, %v1654
        %v1656 = vpop.f32.mrf.mxu0
        %v1657 = vadd.f32 0.0, %v1656
        %1658 = vdwg.mxu0
        %v1659 = vadd.f32 %v1493, %v1615
        %v1660 = vadd.f32 %v1494, %v1617
        %v1661 = vadd.f32 %v1495, %v1620
        %v1662 = vadd.f32 %v1496, %v1622
        %v1663 = vadd.f32 %v1497, %v1625
        %v1664 = vadd.f32 %v1498, %v1627
        %v1665 = vadd.f32 %v1499, %v1630
        %v1666 = vadd.f32 %v1500, %v1632
        %v1667 = vadd.f32 %v1501, %v1635
        %v1668 = vadd.f32 %v1502, %v1637
        %v1669 = vadd.f32 %v1503, %v1640
        %v1670 = vadd.f32 %v1504, %v1642
        %v1671 = vadd.f32 %v1505, %v1645
        %v1672 = vadd.f32 %v1506, %v1647
        %v1673 = vadd.f32 %v1507, %v1650
        %v1674 = vadd.f32 %v1508, %v1652
        %v1675 = vadd.f32 %v1509, %v1655
        %v1676 = vadd.f32 %v1510, %v1657
        %s1677 = scalar_lea.vmem %s987, 192 [#allocation4]
        %v1678 = vld [vmem:[%s1677] sm:$0xf]
        %v1679 = vld [vmem:[%s1677 + $0x4] sm:$0xf]
        %v1680 = vld [vmem:[%s1677 + $0x8] sm:$0xf]
        %v1681 = vld [vmem:[%s1677 + $0xc] sm:$0xf]
        %v1682 = vld [vmem:[%s1677 + $0x10] sm:$0xf]
        %v1683 = vld [vmem:[%s1677 + $0x14] sm:$0xf]
        %v1684 = vld [vmem:[%s1677 + $0x18] sm:$0xf]
        %v1685 = vld [vmem:[%s1677 + $0x1c] sm:$0xf]
        %v1686 = vld [vmem:[%s1677 + $0x20] sm:$0xf]
        %v1687 = vld [vmem:[%s1677 + $0x24] sm:$0xf]
        %v1688 = vld [vmem:[%s1677 + $0x28] sm:$0xf]
        %v1689 = vld [vmem:[%s1677 + $0x2c] sm:$0xf]
        %v1690 = vld [vmem:[%s1677 + $0x30] sm:$0xf]
        %v1691 = vld [vmem:[%s1677 + $0x34] sm:$0xf]
        %v1692 = vld [vmem:[%s1677 + $0x38] sm:$0xf]
        %v1693 = vld [vmem:[%s1677 + $0x3c] sm:$0xf]
        %v1696 = vunpack.c.l.b16 %v1073
        %v1697 = vunpack.c.l.b16 %v1074
        %v1698 = vpack.c.b16 %v1696, %v1303
        %v1699 = vpack.c.b16 %v1697, %v1697
        %v1700 = vrot.slane %v1698, 1
        %v1701 = vsel %vm1528, %v1544, %v1700
        %v1702 = vrot.slane %v1699, 1
        %v1703 = vsel %vm1528, %v1700, %v1702
        %v1722 = vunpack.c.l.b16 %v1678
        %v1723 = vunpack.c.l.b16 %v1679
        %v1724 = vunpack.c.l.b16 %v1680
        %v1725 = vunpack.c.l.b16 %v1681
        %v1726 = vunpack.c.l.b16 %v1682
        %v1727 = vunpack.c.l.b16 %v1683
        %v1728 = vunpack.c.l.b16 %v1684
        %v1729 = vunpack.c.l.b16 %v1685
        %v1730 = vunpack.c.l.b16 %v1686
        %v1731 = vunpack.c.l.b16 %v1687
        %v1732 = vunpack.c.l.b16 %v1688
        %v1733 = vunpack.c.l.b16 %v1689
        %v1734 = vunpack.c.l.b16 %v1690
        %v1735 = vunpack.c.l.b16 %v1691
        %v1736 = vunpack.c.l.b16 %v1692
        %v1737 = vunpack.c.l.b16 %v1693
        %v1738 = vpack.c.b16 %v1723, %v1722
        %v1739 = vpack.c.b16 %v1725, %v1724
        %v1740 = vpack.c.b16 %v1727, %v1726
        %v1741 = vpack.c.b16 %v1729, %v1728
        %v1742 = vpack.c.b16 %v1731, %v1730
        %v1743 = vpack.c.b16 %v1733, %v1732
        %v1744 = vpack.c.b16 %v1735, %v1734
        %v1745 = vpack.c.b16 %v1737, %v1736
        %1754 = vmatpush.bf16.msra.mxu0 %v1745
        %1755 = vmatpush.bf16.msra.mxu0 %v1744
        %1756 = vmatpush.bf16.msra.mxu0 %v1743
        %1757 = vmatpush.bf16.msra.mxu0 %v1742
        %1758 = vmatpush.bf16.msra.mxu0 %v1741
        %1759 = vmatpush.bf16.msra.mxu0 %v1740
        %1760 = vmatpush.bf16.msra.mxu0 %v1739
        %1761 = vmatpush.bf16.msra.mxu0 %v1738
        %1762 = vmatmul.bf16.gmra.mxu0 %v1533
        %v1763 = vpop.f32.mrf.mxu0
        %v1764 = vadd.f32 0.0, %v1763
        %v1765 = vpop.f32.mrf.mxu0
        %v1766 = vadd.f32 0.0, %v1765
        %1767 = vmatmul.bf16.gmra.mxu0 %v1535
        %v1768 = vpop.f32.mrf.mxu0
        %v1769 = vadd.f32 0.0, %v1768
        %v1770 = vpop.f32.mrf.mxu0
        %v1771 = vadd.f32 0.0, %v1770
        %1772 = vmatmul.bf16.gmra.mxu0 %v1537
        %v1773 = vpop.f32.mrf.mxu0
        %v1774 = vadd.f32 0.0, %v1773
        %v1775 = vpop.f32.mrf.mxu0
        %v1776 = vadd.f32 0.0, %v1775
        %1777 = vmatmul.bf16.gmra.mxu0 %v1539
        %v1778 = vpop.f32.mrf.mxu0
        %v1779 = vadd.f32 0.0, %v1778
        %v1780 = vpop.f32.mrf.mxu0
        %v1781 = vadd.f32 0.0, %v1780
        %1782 = vmatmul.bf16.gmra.mxu0 %v1541
        %v1783 = vpop.f32.mrf.mxu0
        %v1784 = vadd.f32 0.0, %v1783
        %v1785 = vpop.f32.mrf.mxu0
        %v1786 = vadd.f32 0.0, %v1785
        %1787 = vmatmul.bf16.gmra.mxu0 %v1543
        %v1788 = vpop.f32.mrf.mxu0
        %v1789 = vadd.f32 0.0, %v1788
        %v1790 = vpop.f32.mrf.mxu0
        %v1791 = vadd.f32 0.0, %v1790
        %1792 = vmatmul.bf16.gmra.mxu0 %v1545
        %v1793 = vpop.f32.mrf.mxu0
        %v1794 = vadd.f32 0.0, %v1793
        %v1795 = vpop.f32.mrf.mxu0
        %v1796 = vadd.f32 0.0, %v1795
        %1797 = vmatmul.bf16.gmra.mxu0 %v1701
        %v1798 = vpop.f32.mrf.mxu0
        %v1799 = vadd.f32 0.0, %v1798
        %v1800 = vpop.f32.mrf.mxu0
        %v1801 = vadd.f32 0.0, %v1800
        %1802 = vmatmul.bf16.gmra.mxu0 %v1703
        %v1803 = vpop.f32.mrf.mxu0
        %v1804 = vadd.f32 0.0, %v1803
        %v1805 = vpop.f32.mrf.mxu0
        %v1806 = vadd.f32 0.0, %v1805
        %1807 = vdwg.mxu0
        %v1808 = vadd.f32 %v1659, %v1764
        %v1809 = vadd.f32 %v1660, %v1766
        %v1810 = vadd.f32 %v1661, %v1769
        %v1811 = vadd.f32 %v1662, %v1771
        %v1812 = vadd.f32 %v1663, %v1774
        %v1813 = vadd.f32 %v1664, %v1776
        %v1814 = vadd.f32 %v1665, %v1779
        %v1815 = vadd.f32 %v1666, %v1781
        %v1816 = vadd.f32 %v1667, %v1784
        %v1817 = vadd.f32 %v1668, %v1786
        %v1818 = vadd.f32 %v1669, %v1789
        %v1819 = vadd.f32 %v1670, %v1791
        %v1820 = vadd.f32 %v1671, %v1794
        %v1821 = vadd.f32 %v1672, %v1796
        %v1822 = vadd.f32 %v1673, %v1799
        %v1823 = vadd.f32 %v1674, %v1801
        %v1824 = vadd.f32 %v1675, %v1804
        %v1825 = vadd.f32 %v1676, %v1806
        %s1826 = scalar_lea.vmem %s987, 256 [#allocation4]
        %v1827 = vld [vmem:[%s1826] sm:$0xf]
        %v1828 = vld [vmem:[%s1826 + $0x4] sm:$0xf]
        %v1829 = vld [vmem:[%s1826 + $0x8] sm:$0xf]
        %v1830 = vld [vmem:[%s1826 + $0xc] sm:$0xf]
        %v1831 = vld [vmem:[%s1826 + $0x10] sm:$0xf]
        %v1832 = vld [vmem:[%s1826 + $0x14] sm:$0xf]
        %v1833 = vld [vmem:[%s1826 + $0x18] sm:$0xf]
        %v1834 = vld [vmem:[%s1826 + $0x1c] sm:$0xf]
        %v1835 = vld [vmem:[%s1826 + $0x20] sm:$0xf]
        %v1836 = vld [vmem:[%s1826 + $0x24] sm:$0xf]
        %v1837 = vld [vmem:[%s1826 + $0x28] sm:$0xf]
        %v1838 = vld [vmem:[%s1826 + $0x2c] sm:$0xf]
        %v1839 = vld [vmem:[%s1826 + $0x30] sm:$0xf]
        %v1840 = vld [vmem:[%s1826 + $0x34] sm:$0xf]
        %v1841 = vld [vmem:[%s1826 + $0x38] sm:$0xf]
        %v1842 = vld [vmem:[%s1826 + $0x3c] sm:$0xf]
        %vm1843 = vsmask.f32 6400
        %v1844 = vrot.slane %v1318, 1
        %v1845 = vrot.slane %v1314, 2
        %v1846 = vor.u32 %v1844, %v1845
        %v1847 = vrot.slane %v1326, 1
        %v1848 = vrot.slane %v1322, 2
        %v1849 = vor.u32 %v1847, %v1848
        %v1850 = vsel %vm1843, %v1846, %v1849
        %v1851 = vrot.slane %v1334, 1
        %v1852 = vrot.slane %v1330, 2
        %v1853 = vor.u32 %v1851, %v1852
        %v1854 = vsel %vm1843, %v1849, %v1853
        %v1855 = vrot.slane %v1342, 1
        %v1856 = vrot.slane %v1338, 2
        %v1857 = vor.u32 %v1855, %v1856
        %v1858 = vsel %vm1843, %v1853, %v1857
        %v1859 = vrot.slane %v1350, 1
        %v1860 = vrot.slane %v1346, 2
        %v1861 = vor.u32 %v1859, %v1860
        %v1862 = vsel %vm1843, %v1857, %v1861
        %v1863 = vrot.slane %v1358, 1
        %v1864 = vrot.slane %v1354, 2
        %v1865 = vor.u32 %v1863, %v1864
        %v1866 = vsel %vm1843, %v1861, %v1865
        %v1867 = vrot.slane %v1366, 1
        %v1868 = vrot.slane %v1362, 2
        %v1869 = vor.u32 %v1867, %v1868
        %v1870 = vsel %vm1843, %v1865, %v1869
        %v1871 = vrot.slane %v1374, 1
        %v1872 = vrot.slane %v1370, 2
        %v1873 = vor.u32 %v1871, %v1872
        %v1874 = vsel %vm1843, %v1869, %v1873
        %v1876 = vshrl.u32 %v1698, 16
        %v1878 = vrot.slane %v1876, 1
        %v1879 = vshll.u32 %v1698, 16
        %v1881 = vrot.slane %v1879, 2
        %v1882 = vor.u32 %v1878, %v1881
        %v1883 = vsel %vm1843, %v1873, %v1882
        %v1885 = vshrl.u32 %v1699, 16
        %v1887 = vrot.slane %v1885, 1
        %v1888 = vshll.u32 %v1699, 16
        %v1890 = vrot.slane %v1888, 2
        %v1891 = vor.u32 %v1887, %v1890
        %v1892 = vsel %vm1843, %v1882, %v1891
        %v1918 = vunpack.c.l.b16 %v1827
        %v1919 = vunpack.c.l.b16 %v1828
        %v1920 = vunpack.c.l.b16 %v1829
        %v1921 = vunpack.c.l.b16 %v1830
        %v1922 = vunpack.c.l.b16 %v1831
        %v1923 = vunpack.c.l.b16 %v1832
        %v1924 = vunpack.c.l.b16 %v1833
        %v1925 = vunpack.c.l.b16 %v1834
        %v1926 = vunpack.c.l.b16 %v1835
        %v1927 = vunpack.c.l.b16 %v1836
        %v1928 = vunpack.c.l.b16 %v1837
        %v1929 = vunpack.c.l.b16 %v1838
        %v1930 = vunpack.c.l.b16 %v1839
        %v1931 = vunpack.c.l.b16 %v1840
        %v1932 = vunpack.c.l.b16 %v1841
        %v1933 = vunpack.c.l.b16 %v1842
        %v1934 = vpack.c.b16 %v1919, %v1918
        %v1935 = vpack.c.b16 %v1921, %v1920
        %v1936 = vpack.c.b16 %v1923, %v1922
        %v1937 = vpack.c.b16 %v1925, %v1924
        %v1938 = vpack.c.b16 %v1927, %v1926
        %v1939 = vpack.c.b16 %v1929, %v1928
        %v1940 = vpack.c.b16 %v1931, %v1930
        %v1941 = vpack.c.b16 %v1933, %v1932
        %1950 = vmatpush.bf16.msra.mxu0 %v1941
        %1951 = vmatpush.bf16.msra.mxu0 %v1940
        %1952 = vmatpush.bf16.msra.mxu0 %v1939
        %1953 = vmatpush.bf16.msra.mxu0 %v1938
        %1954 = vmatpush.bf16.msra.mxu0 %v1937
        %1955 = vmatpush.bf16.msra.mxu0 %v1936
        %1956 = vmatpush.bf16.msra.mxu0 %v1935
        %1957 = vmatpush.bf16.msra.mxu0 %v1934
        %1958 = vmatmul.bf16.gmra.mxu0 %v1850
        %v1959 = vpop.f32.mrf.mxu0
        %v1960 = vadd.f32 0.0, %v1959
        %v1961 = vpop.f32.mrf.mxu0
        %v1962 = vadd.f32 0.0, %v1961
        %1963 = vmatmul.bf16.gmra.mxu0 %v1854
        %v1964 = vpop.f32.mrf.mxu0
        %v1965 = vadd.f32 0.0, %v1964
        %v1966 = vpop.f32.mrf.mxu0
        %v1967 = vadd.f32 0.0, %v1966
        %1968 = vmatmul.bf16.gmra.mxu0 %v1858
        %v1969 = vpop.f32.mrf.mxu0
        %v1970 = vadd.f32 0.0, %v1969
        %v1971 = vpop.f32.mrf.mxu0
        %v1972 = vadd.f32 0.0, %v1971
        %1973 = vmatmul.bf16.gmra.mxu0 %v1862
        %v1974 = vpop.f32.mrf.mxu0
        %v1975 = vadd.f32 0.0, %v1974
        %v1976 = vpop.f32.mrf.mxu0
        %v1977 = vadd.f32 0.0, %v1976
        %1978 = vmatmul.bf16.gmra.mxu0 %v1866
        %v1979 = vpop.f32.mrf.mxu0
        %v1980 = vadd.f32 0.0, %v1979
        %v1981 = vpop.f32.mrf.mxu0
        %v1982 = vadd.f32 0.0, %v1981
        %1983 = vmatmul.bf16.gmra.mxu0 %v1870
        %v1984 = vpop.f32.mrf.mxu0
        %v1985 = vadd.f32 0.0, %v1984
        %v1986 = vpop.f32.mrf.mxu0
        %v1987 = vadd.f32 0.0, %v1986
        %1988 = vmatmul.bf16.gmra.mxu0 %v1874
        %v1989 = vpop.f32.mrf.mxu0
        %v1990 = vadd.f32 0.0, %v1989
        %v1991 = vpop.f32.mrf.mxu0
        %v1992 = vadd.f32 0.0, %v1991
        %1993 = vmatmul.bf16.gmra.mxu0 %v1883
        %v1994 = vpop.f32.mrf.mxu0
        %v1995 = vadd.f32 0.0, %v1994
        %v1996 = vpop.f32.mrf.mxu0
        %v1997 = vadd.f32 0.0, %v1996
        %1998 = vmatmul.bf16.gmra.mxu0 %v1892
        %v1999 = vpop.f32.mrf.mxu0
        %v2000 = vadd.f32 0.0, %v1999
        %v2001 = vpop.f32.mrf.mxu0
        %v2002 = vadd.f32 0.0, %v2001
        %2003 = vdwg.mxu0
        %v2004 = vadd.f32 %v1808, %v1960
        %v2005 = vadd.f32 %v1809, %v1962
        %v2006 = vadd.f32 %v1810, %v1965
        %v2007 = vadd.f32 %v1811, %v1967
        %v2008 = vadd.f32 %v1812, %v1970
        %v2009 = vadd.f32 %v1813, %v1972
        %v2010 = vadd.f32 %v1814, %v1975
        %v2011 = vadd.f32 %v1815, %v1977
        %v2012 = vadd.f32 %v1816, %v1980
        %v2013 = vadd.f32 %v1817, %v1982
        %v2014 = vadd.f32 %v1818, %v1985
        %v2015 = vadd.f32 %v1819, %v1987
        %v2016 = vadd.f32 %v1820, %v1990
        %v2017 = vadd.f32 %v1821, %v1992
        %v2018 = vadd.f32 %v1822, %v1995
        %v2019 = vadd.f32 %v1823, %v1997
        %v2020 = vadd.f32 %v1824, %v2000
        %v2021 = vadd.f32 %v1825, %v2002
        %s2022 = scalar_lea.vmem %s987, 320 [#allocation4]
        %v2023 = vld [vmem:[%s2022] sm:$0xf]
        %v2024 = vld [vmem:[%s2022 + $0x4] sm:$0xf]
        %v2025 = vld [vmem:[%s2022 + $0x8] sm:$0xf]
        %v2026 = vld [vmem:[%s2022 + $0xc] sm:$0xf]
        %v2027 = vld [vmem:[%s2022 + $0x10] sm:$0xf]
        %v2028 = vld [vmem:[%s2022 + $0x14] sm:$0xf]
        %v2029 = vld [vmem:[%s2022 + $0x18] sm:$0xf]
        %v2030 = vld [vmem:[%s2022 + $0x1c] sm:$0xf]
        %v2031 = vld [vmem:[%s2022 + $0x20] sm:$0xf]
        %v2032 = vld [vmem:[%s2022 + $0x24] sm:$0xf]
        %v2033 = vld [vmem:[%s2022 + $0x28] sm:$0xf]
        %v2034 = vld [vmem:[%s2022 + $0x2c] sm:$0xf]
        %v2035 = vld [vmem:[%s2022 + $0x30] sm:$0xf]
        %v2036 = vld [vmem:[%s2022 + $0x34] sm:$0xf]
        %v2037 = vld [vmem:[%s2022 + $0x38] sm:$0xf]
        %v2038 = vld [vmem:[%s2022 + $0x3c] sm:$0xf]
        %vm2039 = vcmask 1045504
        %v2040 = vrot.slane %v1148, 2
        %v2041 = vrot.slane %v1149, 2
        %v2042 = vsel %vm2039, %v2040, %v2041
        %v2043 = vrot.slane %v1150, 2
        %v2044 = vsel %vm2039, %v2041, %v2043
        %v2045 = vrot.slane %v1151, 2
        %v2046 = vsel %vm2039, %v2043, %v2045
        %v2047 = vrot.slane %v1152, 2
        %v2048 = vsel %vm2039, %v2045, %v2047
        %v2049 = vrot.slane %v1153, 2
        %v2050 = vsel %vm2039, %v2047, %v2049
        %v2051 = vrot.slane %v1154, 2
        %v2052 = vsel %vm2039, %v2049, %v2051
        %v2053 = vrot.slane %v1155, 2
        %v2054 = vsel %vm2039, %v2051, %v2053
        %v2055 = vrot.slane %v1698, 2
        %v2056 = vsel %vm2039, %v2053, %v2055
        %v2057 = vrot.slane %v1699, 2
        %v2058 = vsel %vm2039, %v2055, %v2057
        %v2084 = vunpack.c.l.b16 %v2023
        %v2085 = vunpack.c.l.b16 %v2024
        %v2086 = vunpack.c.l.b16 %v2025
        %v2087 = vunpack.c.l.b16 %v2026
        %v2088 = vunpack.c.l.b16 %v2027
        %v2089 = vunpack.c.l.b16 %v2028
        %v2090 = vunpack.c.l.b16 %v2029
        %v2091 = vunpack.c.l.b16 %v2030
        %v2092 = vunpack.c.l.b16 %v2031
        %v2093 = vunpack.c.l.b16 %v2032
        %v2094 = vunpack.c.l.b16 %v2033
        %v2095 = vunpack.c.l.b16 %v2034
        %v2096 = vunpack.c.l.b16 %v2035
        %v2097 = vunpack.c.l.b16 %v2036
        %v2098 = vunpack.c.l.b16 %v2037
        %v2099 = vunpack.c.l.b16 %v2038
        %v2100 = vpack.c.b16 %v2085, %v2084
        %v2101 = vpack.c.b16 %v2087, %v2086
        %v2102 = vpack.c.b16 %v2089, %v2088
        %v2103 = vpack.c.b16 %v2091, %v2090
        %v2104 = vpack.c.b16 %v2093, %v2092
        %v2105 = vpack.c.b16 %v2095, %v2094
        %v2106 = vpack.c.b16 %v2097, %v2096
        %v2107 = vpack.c.b16 %v2099, %v2098
        %2116 = vmatpush.bf16.msra.mxu0 %v2107
        %2117 = vmatpush.bf16.msra.mxu0 %v2106
        %2118 = vmatpush.bf16.msra.mxu0 %v2105
        %2119 = vmatpush.bf16.msra.mxu0 %v2104
        %2120 = vmatpush.bf16.msra.mxu0 %v2103
        %2121 = vmatpush.bf16.msra.mxu0 %v2102
        %2122 = vmatpush.bf16.msra.mxu0 %v2101
        %2123 = vmatpush.bf16.msra.mxu0 %v2100
        %2124 = vmatmul.bf16.gmra.mxu0 %v2042
        %v2125 = vpop.f32.mrf.mxu0
        %v2126 = vadd.f32 0.0, %v2125
        %v2127 = vpop.f32.mrf.mxu0
        %v2128 = vadd.f32 0.0, %v2127
        %2129 = vmatmul.bf16.gmra.mxu0 %v2044
        %v2130 = vpop.f32.mrf.mxu0
        %v2131 = vadd.f32 0.0, %v2130
        %v2132 = vpop.f32.mrf.mxu0
        %v2133 = vadd.f32 0.0, %v2132
        %2134 = vmatmul.bf16.gmra.mxu0 %v2046
        %v2135 = vpop.f32.mrf.mxu0
        %v2136 = vadd.f32 0.0, %v2135
        %v2137 = vpop.f32.mrf.mxu0
        %v2138 = vadd.f32 0.0, %v2137
        %2139 = vmatmul.bf16.gmra.mxu0 %v2048
        %v2140 = vpop.f32.mrf.mxu0
        %v2141 = vadd.f32 0.0, %v2140
        %v2142 = vpop.f32.mrf.mxu0
        %v2143 = vadd.f32 0.0, %v2142
        %2144 = vmatmul.bf16.gmra.mxu0 %v2050
        %v2145 = vpop.f32.mrf.mxu0
        %v2146 = vadd.f32 0.0, %v2145
        %v2147 = vpop.f32.mrf.mxu0
        %v2148 = vadd.f32 0.0, %v2147
        %2149 = vmatmul.bf16.gmra.mxu0 %v2052
        %v2150 = vpop.f32.mrf.mxu0
        %v2151 = vadd.f32 0.0, %v2150
        %v2152 = vpop.f32.mrf.mxu0
        %v2153 = vadd.f32 0.0, %v2152
        %2154 = vmatmul.bf16.gmra.mxu0 %v2054
        %v2155 = vpop.f32.mrf.mxu0
        %v2156 = vadd.f32 0.0, %v2155
        %v2157 = vpop.f32.mrf.mxu0
        %v2158 = vadd.f32 0.0, %v2157
        %2159 = vmatmul.bf16.gmra.mxu0 %v2056
        %v2160 = vpop.f32.mrf.mxu0
        %v2161 = vadd.f32 0.0, %v2160
        %v2162 = vpop.f32.mrf.mxu0
        %v2163 = vadd.f32 0.0, %v2162
        %2164 = vmatmul.bf16.gmra.mxu0 %v2058
        %v2165 = vpop.f32.mrf.mxu0
        %v2166 = vadd.f32 0.0, %v2165
        %v2167 = vpop.f32.mrf.mxu0
        %v2168 = vadd.f32 0.0, %v2167
        %2169 = vdwg.mxu0
        %v2170 = vadd.f32 %v2004, %v2126
        %v2171 = vadd.f32 %v2005, %v2128
        %v2172 = vadd.f32 %v2006, %v2131
        %v2173 = vadd.f32 %v2007, %v2133
        %v2174 = vadd.f32 %v2008, %v2136
        %v2175 = vadd.f32 %v2009, %v2138
        %v2176 = vadd.f32 %v2010, %v2141
        %v2177 = vadd.f32 %v2011, %v2143
        %v2178 = vadd.f32 %v2012, %v2146
        %v2179 = vadd.f32 %v2013, %v2148
        %v2180 = vadd.f32 %v2014, %v2151
        %v2181 = vadd.f32 %v2015, %v2153
        %v2182 = vadd.f32 %v2016, %v2156
        %v2183 = vadd.f32 %v2017, %v2158
        %v2184 = vadd.f32 %v2018, %v2161
        %v2185 = vadd.f32 %v2019, %v2163
        %v2186 = vadd.f32 %v2020, %v2166
        %v2187 = vadd.f32 %v2021, %v2168
        %s2188 = scalar_lea.vmem %s987, 384 [#allocation4]
        %v2189 = vld [vmem:[%s2188] sm:$0xf]
        %v2190 = vld [vmem:[%s2188 + $0x4] sm:$0xf]
        %v2191 = vld [vmem:[%s2188 + $0x8] sm:$0xf]
        %v2192 = vld [vmem:[%s2188 + $0xc] sm:$0xf]
        %v2193 = vld [vmem:[%s2188 + $0x10] sm:$0xf]
        %v2194 = vld [vmem:[%s2188 + $0x14] sm:$0xf]
        %v2195 = vld [vmem:[%s2188 + $0x18] sm:$0xf]
        %v2196 = vld [vmem:[%s2188 + $0x1c] sm:$0xf]
        %v2197 = vld [vmem:[%s2188 + $0x20] sm:$0xf]
        %v2198 = vld [vmem:[%s2188 + $0x24] sm:$0xf]
        %v2199 = vld [vmem:[%s2188 + $0x28] sm:$0xf]
        %v2200 = vld [vmem:[%s2188 + $0x2c] sm:$0xf]
        %v2201 = vld [vmem:[%s2188 + $0x30] sm:$0xf]
        %v2202 = vld [vmem:[%s2188 + $0x34] sm:$0xf]
        %v2203 = vld [vmem:[%s2188 + $0x38] sm:$0xf]
        %v2204 = vld [vmem:[%s2188 + $0x3c] sm:$0xf]
        %v2207 = vunpack.c.l.b16 %v1075
        %v2208 = vunpack.c.l.b16 %v1076
        %v2209 = vpack.c.b16 %v2207, %v1697
        %v2210 = vpack.c.b16 %v2208, %v2208
        %v2211 = vrot.slane %v2209, 2
        %v2212 = vsel %vm2039, %v2055, %v2211
        %v2213 = vrot.slane %v2210, 2
        %v2214 = vsel %vm2039, %v2211, %v2213
        %v2233 = vunpack.c.l.b16 %v2189
        %v2234 = vunpack.c.l.b16 %v2190
        %v2235 = vunpack.c.l.b16 %v2191
        %v2236 = vunpack.c.l.b16 %v2192
        %v2237 = vunpack.c.l.b16 %v2193
        %v2238 = vunpack.c.l.b16 %v2194
        %v2239 = vunpack.c.l.b16 %v2195
        %v2240 = vunpack.c.l.b16 %v2196
        %v2241 = vunpack.c.l.b16 %v2197
        %v2242 = vunpack.c.l.b16 %v2198
        %v2243 = vunpack.c.l.b16 %v2199
        %v2244 = vunpack.c.l.b16 %v2200
        %v2245 = vunpack.c.l.b16 %v2201
        %v2246 = vunpack.c.l.b16 %v2202
        %v2247 = vunpack.c.l.b16 %v2203
        %v2248 = vunpack.c.l.b16 %v2204
        %v2249 = vpack.c.b16 %v2234, %v2233
        %v2250 = vpack.c.b16 %v2236, %v2235
        %v2251 = vpack.c.b16 %v2238, %v2237
        %v2252 = vpack.c.b16 %v2240, %v2239
        %v2253 = vpack.c.b16 %v2242, %v2241
        %v2254 = vpack.c.b16 %v2244, %v2243
        %v2255 = vpack.c.b16 %v2246, %v2245
        %v2256 = vpack.c.b16 %v2248, %v2247
        %2265 = vmatpush.bf16.msra.mxu0 %v2256
        %2266 = vmatpush.bf16.msra.mxu0 %v2255
        %2267 = vmatpush.bf16.msra.mxu0 %v2254
        %2268 = vmatpush.bf16.msra.mxu0 %v2253
        %2269 = vmatpush.bf16.msra.mxu0 %v2252
        %2270 = vmatpush.bf16.msra.mxu0 %v2251
        %2271 = vmatpush.bf16.msra.mxu0 %v2250
        %2272 = vmatpush.bf16.msra.mxu0 %v2249
        %2273 = vmatmul.bf16.gmra.mxu0 %v2044
        %v2274 = vpop.f32.mrf.mxu0
        %v2275 = vadd.f32 0.0, %v2274
        %v2276 = vpop.f32.mrf.mxu0
        %v2277 = vadd.f32 0.0, %v2276
        %2278 = vmatmul.bf16.gmra.mxu0 %v2046
        %v2279 = vpop.f32.mrf.mxu0
        %v2280 = vadd.f32 0.0, %v2279
        %v2281 = vpop.f32.mrf.mxu0
        %v2282 = vadd.f32 0.0, %v2281
        %2283 = vmatmul.bf16.gmra.mxu0 %v2048
        %v2284 = vpop.f32.mrf.mxu0
        %v2285 = vadd.f32 0.0, %v2284
        %v2286 = vpop.f32.mrf.mxu0
        %v2287 = vadd.f32 0.0, %v2286
        %2288 = vmatmul.bf16.gmra.mxu0 %v2050
        %v2289 = vpop.f32.mrf.mxu0
        %v2290 = vadd.f32 0.0, %v2289
        %v2291 = vpop.f32.mrf.mxu0
        %v2292 = vadd.f32 0.0, %v2291
        %2293 = vmatmul.bf16.gmra.mxu0 %v2052
        %v2294 = vpop.f32.mrf.mxu0
        %v2295 = vadd.f32 0.0, %v2294
        %v2296 = vpop.f32.mrf.mxu0
        %v2297 = vadd.f32 0.0, %v2296
        %2298 = vmatmul.bf16.gmra.mxu0 %v2054
        %v2299 = vpop.f32.mrf.mxu0
        %v2300 = vadd.f32 0.0, %v2299
        %v2301 = vpop.f32.mrf.mxu0
        %v2302 = vadd.f32 0.0, %v2301
        %2303 = vmatmul.bf16.gmra.mxu0 %v2056
        %v2304 = vpop.f32.mrf.mxu0
        %v2305 = vadd.f32 0.0, %v2304
        %v2306 = vpop.f32.mrf.mxu0
        %v2307 = vadd.f32 0.0, %v2306
        %2308 = vmatmul.bf16.gmra.mxu0 %v2212
        %v2309 = vpop.f32.mrf.mxu0
        %v2310 = vadd.f32 0.0, %v2309
        %v2311 = vpop.f32.mrf.mxu0
        %v2312 = vadd.f32 0.0, %v2311
        %2313 = vmatmul.bf16.gmra.mxu0 %v2214
        %v2314 = vpop.f32.mrf.mxu0
        %v2315 = vadd.f32 0.0, %v2314
        %v2316 = vpop.f32.mrf.mxu0
        %v2317 = vadd.f32 0.0, %v2316
        %2318 = vdwg.mxu0
        %v2319 = vadd.f32 %v2170, %v2275
        %v2320 = vadd.f32 %v2171, %v2277
        %v2321 = vadd.f32 %v2172, %v2280
        %v2322 = vadd.f32 %v2173, %v2282
        %v2323 = vadd.f32 %v2174, %v2285
        %v2324 = vadd.f32 %v2175, %v2287
        %v2325 = vadd.f32 %v2176, %v2290
        %v2326 = vadd.f32 %v2177, %v2292
        %v2327 = vadd.f32 %v2178, %v2295
        %v2328 = vadd.f32 %v2179, %v2297
        %v2329 = vadd.f32 %v2180, %v2300
        %v2330 = vadd.f32 %v2181, %v2302
        %v2331 = vadd.f32 %v2182, %v2305
        %v2332 = vadd.f32 %v2183, %v2307
        %v2333 = vadd.f32 %v2184, %v2310
        %v2334 = vadd.f32 %v2185, %v2312
        %v2335 = vadd.f32 %v2186, %v2315
        %v2336 = vadd.f32 %v2187, %v2317
        %s2337 = scalar_lea.vmem %s987, 448 [#allocation4]
        %v2338 = vld [vmem:[%s2337] sm:$0xf]
        %v2339 = vld [vmem:[%s2337 + $0x4] sm:$0xf]
        %v2340 = vld [vmem:[%s2337 + $0x8] sm:$0xf]
        %v2341 = vld [vmem:[%s2337 + $0xc] sm:$0xf]
        %v2342 = vld [vmem:[%s2337 + $0x10] sm:$0xf]
        %v2343 = vld [vmem:[%s2337 + $0x14] sm:$0xf]
        %v2344 = vld [vmem:[%s2337 + $0x18] sm:$0xf]
        %v2345 = vld [vmem:[%s2337 + $0x1c] sm:$0xf]
        %v2346 = vld [vmem:[%s2337 + $0x20] sm:$0xf]
        %v2347 = vld [vmem:[%s2337 + $0x24] sm:$0xf]
        %v2348 = vld [vmem:[%s2337 + $0x28] sm:$0xf]
        %v2349 = vld [vmem:[%s2337 + $0x2c] sm:$0xf]
        %v2350 = vld [vmem:[%s2337 + $0x30] sm:$0xf]
        %v2351 = vld [vmem:[%s2337 + $0x34] sm:$0xf]
        %v2352 = vld [vmem:[%s2337 + $0x38] sm:$0xf]
        %v2353 = vld [vmem:[%s2337 + $0x3c] sm:$0xf]
        %vm2354 = vsmask.f32 5376
        %v2355 = vrot.slane %v1326, 2
        %v2356 = vrot.slane %v1322, 3
        %v2357 = vor.u32 %v2355, %v2356
        %v2358 = vrot.slane %v1334, 2
        %v2359 = vrot.slane %v1330, 3
        %v2360 = vor.u32 %v2358, %v2359
        %v2361 = vsel %vm2354, %v2357, %v2360
        %v2362 = vrot.slane %v1342, 2
        %v2363 = vrot.slane %v1338, 3
        %v2364 = vor.u32 %v2362, %v2363
        %v2365 = vsel %vm2354, %v2360, %v2364
        %v2366 = vrot.slane %v1350, 2
        %v2367 = vrot.slane %v1346, 3
        %v2368 = vor.u32 %v2366, %v2367
        %v2369 = vsel %vm2354, %v2364, %v2368
        %v2370 = vrot.slane %v1358, 2
        %v2371 = vrot.slane %v1354, 3
        %v2372 = vor.u32 %v2370, %v2371
        %v2373 = vsel %vm2354, %v2368, %v2372
        %v2374 = vrot.slane %v1366, 2
        %v2375 = vrot.slane %v1362, 3
        %v2376 = vor.u32 %v2374, %v2375
        %v2377 = vsel %vm2354, %v2372, %v2376
        %v2378 = vrot.slane %v1374, 2
        %v2379 = vrot.slane %v1370, 3
        %v2380 = vor.u32 %v2378, %v2379
        %v2381 = vsel %vm2354, %v2376, %v2380
        %v2382 = vrot.slane %v1876, 2
        %v2383 = vrot.slane %v1879, 3
        %v2384 = vor.u32 %v2382, %v2383
        %v2385 = vsel %vm2354, %v2380, %v2384
        %v2387 = vshrl.u32 %v2209, 16
        %v2389 = vrot.slane %v2387, 2
        %v2390 = vshll.u32 %v2209, 16
        %v2392 = vrot.slane %v2390, 3
        %v2393 = vor.u32 %v2389, %v2392
        %v2394 = vsel %vm2354, %v2384, %v2393
        %v2396 = vshrl.u32 %v2210, 16
        %v2398 = vrot.slane %v2396, 2
        %v2399 = vshll.u32 %v2210, 16
        %v2401 = vrot.slane %v2399, 3
        %v2402 = vor.u32 %v2398, %v2401
        %v2403 = vsel %vm2354, %v2393, %v2402
        %v2429 = vunpack.c.l.b16 %v2338
        %v2430 = vunpack.c.l.b16 %v2339
        %v2431 = vunpack.c.l.b16 %v2340
        %v2432 = vunpack.c.l.b16 %v2341
        %v2433 = vunpack.c.l.b16 %v2342
        %v2434 = vunpack.c.l.b16 %v2343
        %v2435 = vunpack.c.l.b16 %v2344
        %v2436 = vunpack.c.l.b16 %v2345
        %v2437 = vunpack.c.l.b16 %v2346
        %v2438 = vunpack.c.l.b16 %v2347
        %v2439 = vunpack.c.l.b16 %v2348
        %v2440 = vunpack.c.l.b16 %v2349
        %v2441 = vunpack.c.l.b16 %v2350
        %v2442 = vunpack.c.l.b16 %v2351
        %v2443 = vunpack.c.l.b16 %v2352
        %v2444 = vunpack.c.l.b16 %v2353
        %v2445 = vpack.c.b16 %v2430, %v2429
        %v2446 = vpack.c.b16 %v2432, %v2431
        %v2447 = vpack.c.b16 %v2434, %v2433
        %v2448 = vpack.c.b16 %v2436, %v2435
        %v2449 = vpack.c.b16 %v2438, %v2437
        %v2450 = vpack.c.b16 %v2440, %v2439
        %v2451 = vpack.c.b16 %v2442, %v2441
        %v2452 = vpack.c.b16 %v2444, %v2443
        %2461 = vmatpush.bf16.msra.mxu0 %v2452
        %2462 = vmatpush.bf16.msra.mxu0 %v2451
        %2463 = vmatpush.bf16.msra.mxu0 %v2450
        %2464 = vmatpush.bf16.msra.mxu0 %v2449
        %2465 = vmatpush.bf16.msra.mxu0 %v2448
        %2466 = vmatpush.bf16.msra.mxu0 %v2447
        %2467 = vmatpush.bf16.msra.mxu0 %v2446
        %2468 = vmatpush.bf16.msra.mxu0 %v2445
        %2469 = vmatmul.bf16.gmra.mxu0 %v2361
        %v2470 = vpop.f32.mrf.mxu0
        %v2471 = vadd.f32 0.0, %v2470
        %v2472 = vpop.f32.mrf.mxu0
        %v2473 = vadd.f32 0.0, %v2472
        %2474 = vmatmul.bf16.gmra.mxu0 %v2365
        %v2475 = vpop.f32.mrf.mxu0
        %v2476 = vadd.f32 0.0, %v2475
        %v2477 = vpop.f32.mrf.mxu0
        %v2478 = vadd.f32 0.0, %v2477
        %2479 = vmatmul.bf16.gmra.mxu0 %v2369
        %v2480 = vpop.f32.mrf.mxu0
        %v2481 = vadd.f32 0.0, %v2480
        %v2482 = vpop.f32.mrf.mxu0
        %v2483 = vadd.f32 0.0, %v2482
        %2484 = vmatmul.bf16.gmra.mxu0 %v2373
        %v2485 = vpop.f32.mrf.mxu0
        %v2486 = vadd.f32 0.0, %v2485
        %v2487 = vpop.f32.mrf.mxu0
        %v2488 = vadd.f32 0.0, %v2487
        %2489 = vmatmul.bf16.gmra.mxu0 %v2377
        %v2490 = vpop.f32.mrf.mxu0
        %v2491 = vadd.f32 0.0, %v2490
        %v2492 = vpop.f32.mrf.mxu0
        %v2493 = vadd.f32 0.0, %v2492
        %2494 = vmatmul.bf16.gmra.mxu0 %v2381
        %v2495 = vpop.f32.mrf.mxu0
        %v2496 = vadd.f32 0.0, %v2495
        %v2497 = vpop.f32.mrf.mxu0
        %v2498 = vadd.f32 0.0, %v2497
        %2499 = vmatmul.bf16.gmra.mxu0 %v2385
        %v2500 = vpop.f32.mrf.mxu0
        %v2501 = vadd.f32 0.0, %v2500
        %v2502 = vpop.f32.mrf.mxu0
        %v2503 = vadd.f32 0.0, %v2502
        %2504 = vmatmul.bf16.gmra.mxu0 %v2394
        %v2505 = vpop.f32.mrf.mxu0
        %v2506 = vadd.f32 0.0, %v2505
        %v2507 = vpop.f32.mrf.mxu0
        %v2508 = vadd.f32 0.0, %v2507
        %2509 = vmatmul.bf16.gmra.mxu0 %v2403
        %v2510 = vpop.f32.mrf.mxu0
        %v2511 = vadd.f32 0.0, %v2510
        %v2512 = vpop.f32.mrf.mxu0
        %v2513 = vadd.f32 0.0, %v2512
        %2514 = vdwg.mxu0
        %v2515 = vadd.f32 %v2319, %v2471
        %v2516 = vadd.f32 %v2320, %v2473
        %v2517 = vadd.f32 %v2321, %v2476
        %v2518 = vadd.f32 %v2322, %v2478
        %v2519 = vadd.f32 %v2323, %v2481
        %v2520 = vadd.f32 %v2324, %v2483
        %v2521 = vadd.f32 %v2325, %v2486
        %v2522 = vadd.f32 %v2326, %v2488
        %v2523 = vadd.f32 %v2327, %v2491
        %v2524 = vadd.f32 %v2328, %v2493
        %v2525 = vadd.f32 %v2329, %v2496
        %v2526 = vadd.f32 %v2330, %v2498
        %v2527 = vadd.f32 %v2331, %v2501
        %v2528 = vadd.f32 %v2332, %v2503
        %v2529 = vadd.f32 %v2333, %v2506
        %v2530 = vadd.f32 %v2334, %v2508
        %v2531 = vadd.f32 %v2335, %v2511
        %v2532 = vadd.f32 %v2336, %v2513
        %s2533 = scalar_lea.vmem %s987, 512 [#allocation4]
        %v2534 = vld [vmem:[%s2533] sm:$0xf]
        %v2535 = vld [vmem:[%s2533 + $0x4] sm:$0xf]
        %v2536 = vld [vmem:[%s2533 + $0x8] sm:$0xf]
        %v2537 = vld [vmem:[%s2533 + $0xc] sm:$0xf]
        %v2538 = vld [vmem:[%s2533 + $0x10] sm:$0xf]
        %v2539 = vld [vmem:[%s2533 + $0x14] sm:$0xf]
        %v2540 = vld [vmem:[%s2533 + $0x18] sm:$0xf]
        %v2541 = vld [vmem:[%s2533 + $0x1c] sm:$0xf]
        %v2542 = vld [vmem:[%s2533 + $0x20] sm:$0xf]
        %v2543 = vld [vmem:[%s2533 + $0x24] sm:$0xf]
        %v2544 = vld [vmem:[%s2533 + $0x28] sm:$0xf]
        %v2545 = vld [vmem:[%s2533 + $0x2c] sm:$0xf]
        %v2546 = vld [vmem:[%s2533 + $0x30] sm:$0xf]
        %v2547 = vld [vmem:[%s2533 + $0x34] sm:$0xf]
        %v2548 = vld [vmem:[%s2533 + $0x38] sm:$0xf]
        %v2549 = vld [vmem:[%s2533 + $0x3c] sm:$0xf]
        %vm2550 = vcmask 1044480
        %v2551 = vrot.slane %v1149, 3
        %v2552 = vrot.slane %v1150, 3
        %v2553 = vsel %vm2550, %v2551, %v2552
        %v2554 = vrot.slane %v1151, 3
        %v2555 = vsel %vm2550, %v2552, %v2554
        %v2556 = vrot.slane %v1152, 3
        %v2557 = vsel %vm2550, %v2554, %v2556
        %v2558 = vrot.slane %v1153, 3
        %v2559 = vsel %vm2550, %v2556, %v2558
        %v2560 = vrot.slane %v1154, 3
        %v2561 = vsel %vm2550, %v2558, %v2560
        %v2562 = vrot.slane %v1155, 3
        %v2563 = vsel %vm2550, %v2560, %v2562
        %v2564 = vrot.slane %v1698, 3
        %v2565 = vsel %vm2550, %v2562, %v2564
        %v2566 = vrot.slane %v2209, 3
        %v2567 = vsel %vm2550, %v2564, %v2566
        %v2568 = vrot.slane %v2210, 3
        %v2569 = vsel %vm2550, %v2566, %v2568
        %v2595 = vunpack.c.l.b16 %v2534
        %v2596 = vunpack.c.l.b16 %v2535
        %v2597 = vunpack.c.l.b16 %v2536
        %v2598 = vunpack.c.l.b16 %v2537
        %v2599 = vunpack.c.l.b16 %v2538
        %v2600 = vunpack.c.l.b16 %v2539
        %v2601 = vunpack.c.l.b16 %v2540
        %v2602 = vunpack.c.l.b16 %v2541
        %v2603 = vunpack.c.l.b16 %v2542
        %v2604 = vunpack.c.l.b16 %v2543
        %v2605 = vunpack.c.l.b16 %v2544
        %v2606 = vunpack.c.l.b16 %v2545
        %v2607 = vunpack.c.l.b16 %v2546
        %v2608 = vunpack.c.l.b16 %v2547
        %v2609 = vunpack.c.l.b16 %v2548
        %v2610 = vunpack.c.l.b16 %v2549
        %v2611 = vpack.c.b16 %v2596, %v2595
        %v2612 = vpack.c.b16 %v2598, %v2597
        %v2613 = vpack.c.b16 %v2600, %v2599
        %v2614 = vpack.c.b16 %v2602, %v2601
        %v2615 = vpack.c.b16 %v2604, %v2603
        %v2616 = vpack.c.b16 %v2606, %v2605
        %v2617 = vpack.c.b16 %v2608, %v2607
        %v2618 = vpack.c.b16 %v2610, %v2609
        %2627 = vmatpush.bf16.msra.mxu0 %v2618
        %2628 = vmatpush.bf16.msra.mxu0 %v2617
        %2629 = vmatpush.bf16.msra.mxu0 %v2616
        %2630 = vmatpush.bf16.msra.mxu0 %v2615
        %2631 = vmatpush.bf16.msra.mxu0 %v2614
        %2632 = vmatpush.bf16.msra.mxu0 %v2613
        %2633 = vmatpush.bf16.msra.mxu0 %v2612
        %2634 = vmatpush.bf16.msra.mxu0 %v2611
        %2635 = vmatmul.bf16.gmra.mxu0 %v2553
        %v2636 = vpop.f32.mrf.mxu0
        %v2637 = vadd.f32 0.0, %v2636
        %v2638 = vpop.f32.mrf.mxu0
        %v2639 = vadd.f32 0.0, %v2638
        %2640 = vmatmul.bf16.gmra.mxu0 %v2555
        %v2641 = vpop.f32.mrf.mxu0
        %v2642 = vadd.f32 0.0, %v2641
        %v2643 = vpop.f32.mrf.mxu0
        %v2644 = vadd.f32 0.0, %v2643
        %2645 = vmatmul.bf16.gmra.mxu0 %v2557
        %v2646 = vpop.f32.mrf.mxu0
        %v2647 = vadd.f32 0.0, %v2646
        %v2648 = vpop.f32.mrf.mxu0
        %v2649 = vadd.f32 0.0, %v2648
        %2650 = vmatmul.bf16.gmra.mxu0 %v2559
        %v2651 = vpop.f32.mrf.mxu0
        %v2652 = vadd.f32 0.0, %v2651
        %v2653 = vpop.f32.mrf.mxu0
        %v2654 = vadd.f32 0.0, %v2653
        %2655 = vmatmul.bf16.gmra.mxu0 %v2561
        %v2656 = vpop.f32.mrf.mxu0
        %v2657 = vadd.f32 0.0, %v2656
        %v2658 = vpop.f32.mrf.mxu0
        %v2659 = vadd.f32 0.0, %v2658
        %2660 = vmatmul.bf16.gmra.mxu0 %v2563
        %v2661 = vpop.f32.mrf.mxu0
        %v2662 = vadd.f32 0.0, %v2661
        %v2663 = vpop.f32.mrf.mxu0
        %v2664 = vadd.f32 0.0, %v2663
        %2665 = vmatmul.bf16.gmra.mxu0 %v2565
        %v2666 = vpop.f32.mrf.mxu0
        %v2667 = vadd.f32 0.0, %v2666
        %v2668 = vpop.f32.mrf.mxu0
        %v2669 = vadd.f32 0.0, %v2668
        %2670 = vmatmul.bf16.gmra.mxu0 %v2567
        %v2671 = vpop.f32.mrf.mxu0
        %v2672 = vadd.f32 0.0, %v2671
        %v2673 = vpop.f32.mrf.mxu0
        %v2674 = vadd.f32 0.0, %v2673
        %2675 = vmatmul.bf16.gmra.mxu0 %v2569
        %v2676 = vpop.f32.mrf.mxu0
        %v2677 = vadd.f32 0.0, %v2676
        %v2678 = vpop.f32.mrf.mxu0
        %v2679 = vadd.f32 0.0, %v2678
        %2680 = vdwg.mxu0
        %v2681 = vadd.f32 %v2515, %v2637
        %v2682 = vadd.f32 %v2516, %v2639
        %v2683 = vadd.f32 %v2517, %v2642
        %v2684 = vadd.f32 %v2518, %v2644
        %v2685 = vadd.f32 %v2519, %v2647
        %v2686 = vadd.f32 %v2520, %v2649
        %v2687 = vadd.f32 %v2521, %v2652
        %v2688 = vadd.f32 %v2522, %v2654
        %v2689 = vadd.f32 %v2523, %v2657
        %v2690 = vadd.f32 %v2524, %v2659
        %v2691 = vadd.f32 %v2525, %v2662
        %v2692 = vadd.f32 %v2526, %v2664
        %v2693 = vadd.f32 %v2527, %v2667
        %v2694 = vadd.f32 %v2528, %v2669
        %v2695 = vadd.f32 %v2529, %v2672
        %v2696 = vadd.f32 %v2530, %v2674
        %v2697 = vadd.f32 %v2531, %v2677
        %v2698 = vadd.f32 %v2532, %v2679
        %vm2699 = vcmask 261120
        %2700 = vst.msk [vmem:[#allocation2] sm:$0xff] %vm2699, %v2681
        %2701 = vst.msk [vmem:[#allocation2 + $0x8] sm:$0xff] %vm2699, %v2682
        %2702 = vst.msk [vmem:[#allocation2 + $0x10] sm:$0xff] %vm2699, %v2683
        %2703 = vst.msk [vmem:[#allocation2 + $0x18] sm:$0xff] %vm2699, %v2684
        %2704 = vst.msk [vmem:[#allocation2 + $0x20] sm:$0xff] %vm2699, %v2685
        %2705 = vst.msk [vmem:[#allocation2 + $0x28] sm:$0xff] %vm2699, %v2686
        %2706 = vst.msk [vmem:[#allocation2 + $0x30] sm:$0xff] %vm2699, %v2687
        %2707 = vst.msk [vmem:[#allocation2 + $0x38] sm:$0xff] %vm2699, %v2688
        %2708 = vst.msk [vmem:[#allocation2 + $0x40] sm:$0xff] %vm2699, %v2689
        %2709 = vst.msk [vmem:[#allocation2 + $0x48] sm:$0xff] %vm2699, %v2690
        %2710 = vst.msk [vmem:[#allocation2 + $0x50] sm:$0xff] %vm2699, %v2691
        %2711 = vst.msk [vmem:[#allocation2 + $0x58] sm:$0xff] %vm2699, %v2692
        %2712 = vst.msk [vmem:[#allocation2 + $0x60] sm:$0xff] %vm2699, %v2693
        %2713 = vst.msk [vmem:[#allocation2 + $0x68] sm:$0xff] %vm2699, %v2694
        %2714 = vst.msk [vmem:[#allocation2 + $0x70] sm:$0xff] %vm2699, %v2695
        %2715 = vst.msk [vmem:[#allocation2 + $0x78] sm:$0xff] %vm2699, %v2696
        %2716 = vst.msk [vmem:[#allocation2 + $0x80] sm:$0xff] %vm2699, %v2697
        %2717 = vst.msk [vmem:[#allocation2 + $0x88] sm:$0xff] %vm2699, %v2698
        %p2718 = scmp.eq.s32.totalorder %s23, 1
        // Predicated region
        $region127: #{ppm_forward.3} parent=113 // pred_check
          %p2719 = pneg %p2718
        $region128: #{ppm_forward.3} parent=113 // pred_check_branch
          %2721 = sbr.rel (%p2719) target = $region130
        $region129: #{ppm_forward.3} parent=113 // pred_region
          %v2722 = vld [vmem:[#allocation2] sm:$0xff]
          %v2723 = vld [vmem:[#allocation2 + $0x8] sm:$0xff]
          %v2724 = vld [vmem:[#allocation2 + $0x10] sm:$0xff]
          %v2725 = vld [vmem:[#allocation2 + $0x18] sm:$0xff]
          %v2726 = vld [vmem:[#allocation2 + $0x20] sm:$0xff]
          %v2727 = vld [vmem:[#allocation2 + $0x28] sm:$0xff]
          %v2728 = vld [vmem:[#allocation2 + $0x30] sm:$0xff]
          %v2729 = vld [vmem:[#allocation2 + $0x38] sm:$0xff]
          %v2730 = vld [vmem:[#allocation2 + $0x40] sm:$0xff]
          %v2731 = vld [vmem:[#allocation2 + $0x48] sm:$0xff]
          %v2732 = vld [vmem:[#allocation2 + $0x50] sm:$0xff]
          %v2733 = vld [vmem:[#allocation2 + $0x58] sm:$0xff]
          %v2734 = vld [vmem:[#allocation2 + $0x60] sm:$0xff]
          %v2735 = vld [vmem:[#allocation2 + $0x68] sm:$0xff]
          %v2736 = vld [vmem:[#allocation2 + $0x70] sm:$0xff]
          %v2737 = vld [vmem:[#allocation2 + $0x78] sm:$0xff]
          %v2738 = vld [vmem:[#allocation2 + $0x80] sm:$0xff]
          %v2739 = vld [vmem:[#allocation2 + $0x88] sm:$0xff]
          %v2740 = vld [vmem:[%s2] sm:$0x1]
          %v2742 = vperm.slane %v2740, 0
          %v2744 = vadd.f32 %v2722, %v2742
          %v2745 = vadd.f32 %v2723, %v2742
          %v2746 = vadd.f32 %v2724, %v2742
          %v2747 = vadd.f32 %v2725, %v2742
          %v2748 = vadd.f32 %v2726, %v2742
          %v2749 = vadd.f32 %v2727, %v2742
          %v2750 = vadd.f32 %v2728, %v2742
          %v2751 = vadd.f32 %v2729, %v2742
          %v2752 = vadd.f32 %v2730, %v2742
          %v2753 = vadd.f32 %v2731, %v2742
          %v2754 = vadd.f32 %v2732, %v2742
          %v2755 = vadd.f32 %v2733, %v2742
          %v2756 = vadd.f32 %v2734, %v2742
          %v2757 = vadd.f32 %v2735, %v2742
          %v2758 = vadd.f32 %v2736, %v2742
          %v2759 = vadd.f32 %v2737, %v2742
          %v2760 = vadd.f32 %v2738, %v2742
          %v2761 = vadd.f32 %v2739, %v2742
          %v2762 = vmax.f32 %v2744, 0.0
          %v2763 = vmax.f32 %v2745, 0.0
          %v2764 = vmax.f32 %v2746, 0.0
          %v2765 = vmax.f32 %v2747, 0.0
          %v2766 = vmax.f32 %v2748, 0.0
          %v2767 = vmax.f32 %v2749, 0.0
          %v2768 = vmax.f32 %v2750, 0.0
          %v2769 = vmax.f32 %v2751, 0.0
          %v2770 = vmax.f32 %v2752, 0.0
          %v2771 = vmax.f32 %v2753, 0.0
          %v2772 = vmax.f32 %v2754, 0.0
          %v2773 = vmax.f32 %v2755, 0.0
          %v2774 = vmax.f32 %v2756, 0.0
          %v2775 = vmax.f32 %v2757, 0.0
          %v2776 = vmax.f32 %v2758, 0.0
          %v2777 = vmax.f32 %v2759, 0.0
          %v2778 = vmax.f32 %v2760, 0.0
          %v2779 = vmax.f32 %v2761, 0.0
          %v2780 = vpack.c.bf16 %v2763, %v2762
          %v2781 = vpack.c.bf16 %v2765, %v2764
          %v2782 = vpack.c.bf16 %v2767, %v2766
          %v2783 = vpack.c.bf16 %v2769, %v2768
          %v2784 = vpack.c.bf16 %v2771, %v2770
          %v2785 = vpack.c.bf16 %v2773, %v2772
          %v2786 = vpack.c.bf16 %v2775, %v2774
          %v2787 = vpack.c.bf16 %v2777, %v2776
          %v2788 = vpack.c.bf16 %v2779, %v2778
          %v2789 = vld [vmem:[%s3] sm:$0xf]
          %v2790 = vld [vmem:[%s3 + $0x4] sm:$0xf]
          %v2791 = vld [vmem:[%s3 + $0x8] sm:$0xf]
          %v2792 = vld [vmem:[%s3 + $0xc] sm:$0xf]
          %v2793 = vld [vmem:[%s4] sm:$0x1]
          %v2795 = vperm.slane %v2793, 0
          %v2801 = vunpack.c.l.b16 %v2789
          %v2802 = vunpack.c.l.b16 %v2790
          %v2803 = vunpack.c.l.b16 %v2791
          %v2804 = vunpack.c.l.b16 %v2792
          %v2805 = vpack.c.b16 %v2802, %v2801
          %v2806 = vpack.c.b16 %v2804, %v2803
          %v2810 = vsel %vm2699, %v2780, 0
          %v2813 = vsel %vm2699, %v2781, 0
          %v2816 = vsel %vm2699, %v2782, 0
          %v2819 = vsel %vm2699, %v2783, 0
          %v2822 = vsel %vm2699, %v2784, 0
          %v2825 = vsel %vm2699, %v2785, 0
          %v2828 = vsel %vm2699, %v2786, 0
          %v2831 = vsel %vm2699, %v2787, 0
          %v2834 = vsel %vm2699, %v2788, 0
          %2836 = vmatpush.bf16.msra.mxu0 0
          %2837 = vmatpush.bf16.msra.mxu0 0
          %2838 = vmatpush.bf16.msra.mxu0 0
          %2839 = vmatpush.bf16.msra.mxu0 0
          %2840 = vmatpush.bf16.msra.mxu0 0
          %2841 = vmatpush.bf16.msra.mxu0 0
          %2842 = vmatpush.bf16.msra.mxu0 %v2806
          %2843 = vmatpush.bf16.msra.mxu0 %v2805
          %2844 = vmatmul.bf16.gmra.mxu0 %v2810
          %v2845 = vpop.f32.mrf.mxu0
          %v2846 = vadd.f32 %v2795, %v2845
          %v2847 = vpop.f32.mrf.mxu0
          %v2848 = vadd.f32 %v2795, %v2847
          %2849 = vmatmul.bf16.gmra.mxu0 %v2813
          %v2850 = vpop.f32.mrf.mxu0
          %v2851 = vadd.f32 %v2795, %v2850
          %v2852 = vpop.f32.mrf.mxu0
          %v2853 = vadd.f32 %v2795, %v2852
          %2854 = vmatmul.bf16.gmra.mxu0 %v2816
          %v2855 = vpop.f32.mrf.mxu0
          %v2856 = vadd.f32 %v2795, %v2855
          %v2857 = vpop.f32.mrf.mxu0
          %v2858 = vadd.f32 %v2795, %v2857
          %2859 = vmatmul.bf16.gmra.mxu0 %v2819
          %v2860 = vpop.f32.mrf.mxu0
          %v2861 = vadd.f32 %v2795, %v2860
          %v2862 = vpop.f32.mrf.mxu0
          %v2863 = vadd.f32 %v2795, %v2862
          %2864 = vmatmul.bf16.gmra.mxu0 %v2822
          %v2865 = vpop.f32.mrf.mxu0
          %v2866 = vadd.f32 %v2795, %v2865
          %v2867 = vpop.f32.mrf.mxu0
          %v2868 = vadd.f32 %v2795, %v2867
          %2869 = vmatmul.bf16.gmra.mxu0 %v2825
          %v2870 = vpop.f32.mrf.mxu0
          %v2871 = vadd.f32 %v2795, %v2870
          %v2872 = vpop.f32.mrf.mxu0
          %v2873 = vadd.f32 %v2795, %v2872
          %2874 = vmatmul.bf16.gmra.mxu0 %v2828
          %v2875 = vpop.f32.mrf.mxu0
          %v2876 = vadd.f32 %v2795, %v2875
          %v2877 = vpop.f32.mrf.mxu0
          %v2878 = vadd.f32 %v2795, %v2877
          %2879 = vmatmul.bf16.gmra.mxu0 %v2831
          %v2880 = vpop.f32.mrf.mxu0
          %v2881 = vadd.f32 %v2795, %v2880
          %v2882 = vpop.f32.mrf.mxu0
          %v2883 = vadd.f32 %v2795, %v2882
          %2884 = vmatmul.bf16.gmra.mxu0 %v2834
          %v2885 = vpop.f32.mrf.mxu0
          %v2886 = vadd.f32 %v2795, %v2885
          %v2887 = vpop.f32.mrf.mxu0
          %v2888 = vadd.f32 %v2795, %v2887
          %2889 = vdwg.mxu0
          %2890 = vst [vmem:[%s1029] sm:$0xff] %v2846
          %2891 = vst [vmem:[%s1029 + $0x8] sm:$0xff] %v2848
          %2892 = vst [vmem:[%s1029 + $0x10] sm:$0xff] %v2851
          %2893 = vst [vmem:[%s1029 + $0x18] sm:$0xff] %v2853
          %2894 = vst [vmem:[%s1029 + $0x20] sm:$0xff] %v2856
          %2895 = vst [vmem:[%s1029 + $0x28] sm:$0xff] %v2858
          %2896 = vst [vmem:[%s1029 + $0x30] sm:$0xff] %v2861
          %2897 = vst [vmem:[%s1029 + $0x38] sm:$0xff] %v2863
          %2898 = vst [vmem:[%s1029 + $0x40] sm:$0xff] %v2866
          %2899 = vst [vmem:[%s1029 + $0x48] sm:$0xff] %v2868
          %2900 = vst [vmem:[%s1029 + $0x50] sm:$0xff] %v2871
          %2901 = vst [vmem:[%s1029 + $0x58] sm:$0xff] %v2873
          %2902 = vst [vmem:[%s1029 + $0x60] sm:$0xff] %v2876
          %2903 = vst [vmem:[%s1029 + $0x68] sm:$0xff] %v2878
          %2904 = vst [vmem:[%s1029 + $0x70] sm:$0xff] %v2881
          %2905 = vst [vmem:[%s1029 + $0x78] sm:$0xff] %v2883
          %2906 = vst [vmem:[%s1029 + $0x80] sm:$0xff] %v2886
          %2907 = vst [vmem:[%s1029 + $0x88] sm:$0xff] %v2888
        $region130: #{ppm_forward.3} parent=113 // pred_fallthru
          _
        %p2908 = scmp.lt.s32.totalorder %s21, 1
        %s2909 = scalar_select %p2908, %s21, 1
        %p2910 = scmp.lt.s32.totalorder %s22, 1
        %s2911 = scalar_select %p2910, %s22, 1
        %s2912 = smul.addr %s2911, 18
        %s2913 = smul.addr %s2909, 36
        %s2914 = sadd.s32 %s2912, %s2913
        %s2915 = smul.addr %s2914, 8
        %s2916 = scalar_lea.vmem %s5, %s2915
        // Predicated region
        $region131: #{ppm_forward.3} parent=113 // pred_check
          %p2917 = pneg %p174
        $region132: #{ppm_forward.3} parent=113 // pred_check_branch
          %2919 = sbr.rel (%p2917) target = $region134
        $region133: #{ppm_forward.3} parent=113 // pred_region
          _
        $region134: #{ppm_forward.3} parent=113 // pred_fallthru
          _
      $region114: #{ppm_forward.3} parent=5 // pred_fallthru
        _
      %p2920 = scmp.le.s32.totalorder 2, %s11
      // Predicated region
      $region135: #{ppm_forward.3} parent=5 // pred_check
        %p2921 = pneg %p2920
      $region136: #{ppm_forward.3} parent=5 // pred_check_branch
        %2923 = sbr.rel (%p2921) target = $region138
      $region137: #{ppm_forward.3} parent=5 // pred_region
        %s2924 = ssub.s32 %s11, 2
        // Predicated region
        $region139: #{ppm_forward.3} parent=137 // pred_check
          %p2925 = pneg %p180
        $region140: #{ppm_forward.3} parent=137 // pred_check_branch
          %2927 = sbr.rel (%p2925) target = $region142
        $region141: #{ppm_forward.3} parent=137 // pred_region
          %p2928 = scmp.lt.s32.totalorder %s24, 1
          %s2929 = scalar_select %p2928, %s24, 1
          %p2930 = scmp.lt.s32.totalorder %s25, 1
          %s2931 = scalar_select %p2930, %s25, 1
          %s2932 = smul.addr %s2931, 18
          %s2933 = smul.addr %s2929, 36
          %s2934 = sadd.s32 %s2932, %s2933
          %s2935 = smul.addr %s2934, 8
          %s2936 = scalar_lea.vmem %s5, %s2935
        $region142: #{ppm_forward.3} parent=137 // pred_fallthru
          _
      $region138: #{ppm_forward.3} parent=5 // pred_fallthru
        _
    $region6: #{ppm_forward.3} parent=1 // loop_footer
      %s15 = sadd.s32 1, %s11
    $region7: #{ppm_forward.3} parent=1 // loop_footer_branch
      %10 = sbr.rel target = $region3
    $region8: #{ppm_forward.3} parent=1 // loop_exit
      _

// kernel: ppm_forward.2
$region0: #{ppm_forward.2}
  #allocation0 [shape = 'u32[]', space=smem, size = 0x4, offset = 0x4, fixed_abs, tag = 'smem constant byte address 0x4 - core index']
  #allocation1 [shape = 'u32[72,128]{1,0:T(1,128)}', space=vmem, size = 0x9000, scoped, tag = 'internal scratch']
  %s0 = inlined_call_operand.vmem [shape: f32[2,256,4], index: 0, kind: input, shape index: {}]
  %s1 = inlined_call_operand.vmem [shape: bf16[50,256], index: 1, kind: input, shape index: {}]
  %s2 = inlined_call_operand.vmem [shape: bf16[4,128], index: 2, kind: input, shape index: {}]
  %s3 = inlined_call_operand.vmem [shape: f32[1,128], index: 3, kind: input, shape index: {}]
  %s4 = inlined_call_operand.vmem [shape: f32[50,128], index: 4, kind: input, shape index: {}]
  %s5 = inlined_call_operand.vmem [shape: bf16[256,50], index: 5, kind: input, shape index: {}]
  %s6 = inlined_call_operand.vmem [shape: bf16[2,2,184,256], index: 6, kind: output, shape index: {}]
  %s7 = sld [smem:[#allocation0]]
  $region57: #{ppm_forward.2} parent=0
    _
  %s9 = ssub.s32 1, %s7
  %s10 = scalar_select 0, %s9, %s7
  loop: start=0, step=1, limit=4
  $region2: #{ppm_forward.2} parent=0 // loop_pre_header
    _
  $region3: #{ppm_forward.2} parent=0 // loop_header
    %s12 = sphi 0, %s16
    %p13 = scmp.ge.s32.totalorder %s12, 4
    %s22 = sphi 0, %s24
    %s25 = sphi 0, %s22
    %s26 = sphi 0, %s25
    %s42 = sphi 0, %s26
    %s46 = sphi 0, %s46
    %s48 = sphi 0, %s46
    %s49 = sphi 0, %s48
    %s63 = sphi 0, %s49
    %s67 = sphi 0, %s67
    %s69 = sphi 0, %s67
    %s70 = sphi 0, %s69
    %s84 = sphi 0, %s70
    %s88 = sphi 0, %s88
    %s90 = sphi 0, %s88
    %s91 = sphi 0, %s90
    %s105 = sphi 0, %s91
    %s109 = sphi 0, %s109
    %s111 = sphi 0, %s109
    %s112 = sphi 0, %s111
    %s126 = sphi 0, %s112
    %s130 = sphi 0, %s130
    %s132 = sphi 0, %s130
    %s133 = sphi 0, %s132
    %s147 = sphi 0, %s133
    %s153 = sphi 0, %s155
    %s156 = sphi 0, %s153
    %s157 = sphi 0, %s156
    %s173 = sphi 0, %s157
  $region4: #{ppm_forward.2} parent=0 // loop_header_branch
    %15 = sbr.rel (%p13) target = $region8
  $region5: #{ppm_forward.2} parent=0 // loop_body
    %s17 = ssub.s32 %s12, 1
    %s18 = ssub.s32 %s12, 2
    %s19 = sadd.s32 %s12, 1
    %s20 = ssub.s32 %s12, %s19
    %p21 = scmp.eq.s32.totalorder %s20, 0
    %s23 = sadd.s32 %s22, 1
    %s24 = scalar_select %p21, %s22, %s23
    %p27 = pneg %p21
    %p28 = scmp.eq.s32.totalorder %s12, 1
    %p29 = por %p27, %p28
    %p30 = scmp.ne.s32.totalorder %s22, %s25
    %p31 = scmp.eq.s32.totalorder %s12, 0
    %p32 = por %p30, %p31
    %p33 = scmp.ne.s32.totalorder %s22, %s25
    %p34 = scmp.eq.s32.totalorder %s17, 1
    %p35 = por %p33, %p34
    %p36 = scmp.ne.s32.totalorder %s25, %s26
    %p37 = scmp.eq.s32.totalorder %s17, 0
    %p38 = por %p36, %p37
    %p39 = scmp.ne.s32.totalorder %s25, %s26
    %p40 = scmp.eq.s32.totalorder %s18, 1
    %p41 = por %p39, %p40
    %p43 = scmp.ne.s32.totalorder %s26, %s42
    %p44 = scmp.eq.s32.totalorder %s18, 0
    %p45 = por %p43, %p44
    %s47 = sadd.s32 %s46, 1
    %p50 = scmp.eq.s32.totalorder %s12, 1
    %p51 = scmp.ne.s32.totalorder %s46, %s48
    %p52 = scmp.eq.s32.totalorder %s12, 0
    %p53 = por %p51, %p52
    %p54 = scmp.ne.s32.totalorder %s46, %s48
    %p55 = scmp.eq.s32.totalorder %s17, 1
    %p56 = por %p54, %p55
    %p57 = scmp.ne.s32.totalorder %s48, %s49
    %p58 = scmp.eq.s32.totalorder %s17, 0
    %p59 = por %p57, %p58
    %p60 = scmp.ne.s32.totalorder %s48, %s49
    %p61 = scmp.eq.s32.totalorder %s18, 1
    %p62 = por %p60, %p61
    %p64 = scmp.ne.s32.totalorder %s49, %s63
    %p65 = scmp.eq.s32.totalorder %s18, 0
    %p66 = por %p64, %p65
    %s68 = sadd.s32 %s67, 1
    %p71 = scmp.eq.s32.totalorder %s12, 1
    %p72 = scmp.ne.s32.totalorder %s67, %s69
    %p73 = scmp.eq.s32.totalorder %s12, 0
    %p74 = por %p72, %p73
    %p75 = scmp.ne.s32.totalorder %s67, %s69
    %p76 = scmp.eq.s32.totalorder %s17, 1
    %p77 = por %p75, %p76
    %p78 = scmp.ne.s32.totalorder %s69, %s70
    %p79 = scmp.eq.s32.totalorder %s17, 0
    %p80 = por %p78, %p79
    %p81 = scmp.ne.s32.totalorder %s69, %s70
    %p82 = scmp.eq.s32.totalorder %s18, 1
    %p83 = por %p81, %p82
    %p85 = scmp.ne.s32.totalorder %s70, %s84
    %p86 = scmp.eq.s32.totalorder %s18, 0
    %p87 = por %p85, %p86
    %s89 = sadd.s32 %s88, 1
    %p92 = scmp.eq.s32.totalorder %s12, 1
    %p93 = scmp.ne.s32.totalorder %s88, %s90
    %p94 = scmp.eq.s32.totalorder %s12, 0
    %p95 = por %p93, %p94
    %p96 = scmp.ne.s32.totalorder %s88, %s90
    %p97 = scmp.eq.s32.totalorder %s17, 1
    %p98 = por %p96, %p97
    %p99 = scmp.ne.s32.totalorder %s90, %s91
    %p100 = scmp.eq.s32.totalorder %s17, 0
    %p101 = por %p99, %p100
    %p102 = scmp.ne.s32.totalorder %s90, %s91
    %p103 = scmp.eq.s32.totalorder %s18, 1
    %p104 = por %p102, %p103
    %p106 = scmp.ne.s32.totalorder %s91, %s105
    %p107 = scmp.eq.s32.totalorder %s18, 0
    %p108 = por %p106, %p107
    %s110 = sadd.s32 %s109, 1
    %p113 = scmp.eq.s32.totalorder %s12, 1
    %p114 = scmp.ne.s32.totalorder %s109, %s111
    %p115 = scmp.eq.s32.totalorder %s12, 0
    %p116 = por %p114, %p115
    %p117 = scmp.ne.s32.totalorder %s109, %s111
    %p118 = scmp.eq.s32.totalorder %s17, 1
    %p119 = por %p117, %p118
    %p120 = scmp.ne.s32.totalorder %s111, %s112
    %p121 = scmp.eq.s32.totalorder %s17, 0
    %p122 = por %p120, %p121
    %p123 = scmp.ne.s32.totalorder %s111, %s112
    %p124 = scmp.eq.s32.totalorder %s18, 1
    %p125 = por %p123, %p124
    %p127 = scmp.ne.s32.totalorder %s112, %s126
    %p128 = scmp.eq.s32.totalorder %s18, 0
    %p129 = por %p127, %p128
    %s131 = sadd.s32 %s130, 1
    %p134 = scmp.eq.s32.totalorder %s12, 1
    %p135 = scmp.ne.s32.totalorder %s130, %s132
    %p136 = scmp.eq.s32.totalorder %s12, 0
    %p137 = por %p135, %p136
    %p138 = scmp.ne.s32.totalorder %s130, %s132
    %p139 = scmp.eq.s32.totalorder %s17, 1
    %p140 = por %p138, %p139
    %p141 = scmp.ne.s32.totalorder %s132, %s133
    %p142 = scmp.eq.s32.totalorder %s17, 0
    %p143 = por %p141, %p142
    %p144 = scmp.ne.s32.totalorder %s132, %s133
    %p145 = scmp.eq.s32.totalorder %s18, 1
    %p146 = por %p144, %p145
    %p148 = scmp.ne.s32.totalorder %s133, %s147
    %p149 = scmp.eq.s32.totalorder %s18, 0
    %p150 = por %p148, %p149
    %s151 = ssub.s32 %s12, %s19
    %p152 = scmp.eq.s32.totalorder %s151, 0
    %s154 = sadd.s32 %s153, 1
    %s155 = scalar_select %p152, %s153, %s154
    %p158 = pneg %p152
    %p159 = scmp.eq.s32.totalorder %s12, 1
    %p160 = por %p158, %p159
    %p161 = scmp.ne.s32.totalorder %s153, %s156
    %p162 = scmp.eq.s32.totalorder %s12, 0
    %p163 = por %p161, %p162
    %p164 = scmp.ne.s32.totalorder %s153, %s156
    %p165 = scmp.eq.s32.totalorder %s17, 1
    %p166 = por %p164, %p165
    %p167 = scmp.ne.s32.totalorder %s156, %s157
    %p168 = scmp.eq.s32.totalorder %s17, 0
    %p169 = por %p167, %p168
    %p170 = scmp.ne.s32.totalorder %s156, %s157
    %p171 = scmp.eq.s32.totalorder %s18, 1
    %p172 = por %p170, %p171
    %p174 = scmp.ne.s32.totalorder %s157, %s173
    %p175 = scmp.eq.s32.totalorder %s18, 0
    %p176 = por %p174, %p175
    %p177 = scmp.le.s32.totalorder 1, %s12
    %p178 = scmp.lt.s32.totalorder %s12, 3
    %p179 = pnand %p177, %p178
    %p180 = pneg %p179
    // Predicated region
    $region9: #{ppm_forward.2} parent=5 // pred_check
      _
    $region10: #{ppm_forward.2} parent=5 // pred_check_branch
      %182 = sbr.rel (%p179) target = $region12
    $region11: #{ppm_forward.2} parent=5 // pred_region
      %s183 = ssub.s32 %s12, 1
      // Predicated region
      $region13: #{ppm_forward.2} parent=11 // pred_check
        %p184 = pneg %p59
      $region14: #{ppm_forward.2} parent=11 // pred_check_branch
        %186 = sbr.rel (%p184) target = $region16
      $region15: #{ppm_forward.2} parent=11 // pred_region
        _
      $region16: #{ppm_forward.2} parent=11 // pred_fallthru
        _
      // Predicated region
      $region17: #{ppm_forward.2} parent=11 // pred_check
        %p187 = pneg %p80
      $region18: #{ppm_forward.2} parent=11 // pred_check_branch
        %189 = sbr.rel (%p187) target = $region20
      $region19: #{ppm_forward.2} parent=11 // pred_region
        _
      $region20: #{ppm_forward.2} parent=11 // pred_fallthru
        _
      // Predicated region
      $region21: #{ppm_forward.2} parent=11 // pred_check
        %p190 = pneg %p101
      $region22: #{ppm_forward.2} parent=11 // pred_check_branch
        %192 = sbr.rel (%p190) target = $region24
      $region23: #{ppm_forward.2} parent=11 // pred_region
        _
      $region24: #{ppm_forward.2} parent=11 // pred_fallthru
        _
      // Predicated region
      $region25: #{ppm_forward.2} parent=11 // pred_check
        %p193 = pneg %p122
      $region26: #{ppm_forward.2} parent=11 // pred_check_branch
        %195 = sbr.rel (%p193) target = $region28
      $region27: #{ppm_forward.2} parent=11 // pred_region
        _
      $region28: #{ppm_forward.2} parent=11 // pred_fallthru
        _
      // Predicated region
      $region29: #{ppm_forward.2} parent=11 // pred_check
        %p196 = pneg %p143
      $region30: #{ppm_forward.2} parent=11 // pred_check_branch
        %198 = sbr.rel (%p196) target = $region32
      $region31: #{ppm_forward.2} parent=11 // pred_region
        _
      $region32: #{ppm_forward.2} parent=11 // pred_fallthru
        _
    $region12: #{ppm_forward.2} parent=5 // pred_fallthru
      _
    %p199 = scmp.lt.s32.totalorder %s12, 2
    // Predicated region
    $region33: #{ppm_forward.2} parent=5 // pred_check
      %p200 = pneg %p199
    $region34: #{ppm_forward.2} parent=5 // pred_check_branch
      %202 = sbr.rel (%p200) target = $region36
    $region35: #{ppm_forward.2} parent=5 // pred_region
      // Predicated region
      $region37: #{ppm_forward.2} parent=35 // pred_check
        %p203 = pneg %p32
      $region38: #{ppm_forward.2} parent=35 // pred_check_branch
        %205 = sbr.rel (%p203) target = $region40
      $region39: #{ppm_forward.2} parent=35 // pred_region
        %p206 = scmp.lt.s32.totalorder %s12, 1
        %s207 = scalar_select %p206, %s12, 1
        %s208 = smul.addr %s207, 32
        %s209 = smul.addr %s208, 8
        %s210 = scalar_lea.vmem %s0, %s209
      $region40: #{ppm_forward.2} parent=35 // pred_fallthru
        _
    $region36: #{ppm_forward.2} parent=5 // pred_fallthru
      _
    %p211 = scmp.le.s32.totalorder 1, %s12
    %p212 = scmp.lt.s32.totalorder %s12, 3
    %p213 = pnand %p211, %p212
    %p214 = pneg %p213
    // Predicated region
    $region41: #{ppm_forward.2} parent=5 // pred_check
      _
    $region42: #{ppm_forward.2} parent=5 // pred_check_branch
      %216 = sbr.rel (%p213) target = $region44
    $region43: #{ppm_forward.2} parent=5 // pred_region
      %s217 = ssub.s32 %s12, 1
      %p218 = scmp.lt.s32.totalorder %s17, 1
      %s219 = scalar_select %p218, %s17, 1
      %s220 = smul.addr %s219, 32
      %s221 = smul.addr %s220, 8
      %s222 = scalar_lea.vmem %s0, %s221
      %p223 = pneg %p38
      %p224 = pneg %p35
      %p225 = pneg %p59
      %p226 = pneg %p56
      %p227 = pneg %p80
      %p228 = pneg %p77
      %p229 = pneg %p101
      %p230 = pneg %p98
      %p231 = pneg %p122
      %p232 = pneg %p119
      %p233 = pneg %p143
      %p234 = pneg %p140
      %p235 = pneg %p169
      %p236 = pneg %p166
      %p237 = scmp.lt.s32.totalorder %s17, 1
      %s238 = scalar_select %p237, %s17, 1
      %s239 = smul.addr %s238, 92
      %s240 = smul.addr %s239, 4
      %s241 = scalar_lea.vmem %s6, %s240
      %p242 = scmp.lt.s32.totalorder %s17, 1
      %s243 = scalar_select %p242, %s17, 1
      %s244 = smul.addr %s243, 32
      %s245 = smul.addr %s244, 8
      %s246 = scalar_lea.vmem %s0, %s245
      %p247 = scmp.lt.s32.totalorder %s17, 1
      %s248 = scalar_select %p247, %s17, 1
      %s249 = smul.addr %s248, 92
      %s250 = smul.addr %s249, 4
      %s251 = scalar_lea.vmem %s6, %s250
      %v253 = vld [vmem:[%s246] sm:$0xff]
      %v254 = vld [vmem:[%s246 + $0x8] sm:$0xff]
      %v255 = vld [vmem:[%s246 + $0x10] sm:$0xff]
      %v256 = vld [vmem:[%s246 + $0x18] sm:$0xff]
      %v257 = vld [vmem:[%s246 + $0x20] sm:$0xff]
      %v258 = vld [vmem:[%s246 + $0x28] sm:$0xff]
      %v259 = vld [vmem:[%s246 + $0x30] sm:$0xff]
      %v260 = vld [vmem:[%s246 + $0x38] sm:$0xff]
      %v261 = vld [vmem:[%s246 + $0x40] sm:$0xff]
      %v262 = vld [vmem:[%s246 + $0x48] sm:$0xff]
      %v263 = vld [vmem:[%s246 + $0x50] sm:$0xff]
      %v264 = vld [vmem:[%s246 + $0x58] sm:$0xff]
      %v265 = vld [vmem:[%s246 + $0x60] sm:$0xff]
      %v266 = vld [vmem:[%s246 + $0x68] sm:$0xff]
      %v267 = vld [vmem:[%s246 + $0x70] sm:$0xff]
      %v268 = vld [vmem:[%s246 + $0x78] sm:$0xff]
      %v269 = vld [vmem:[%s246 + $0x80] sm:$0xff]
      %v270 = vld [vmem:[%s246 + $0x88] sm:$0xff]
      %v271 = vld [vmem:[%s246 + $0x90] sm:$0xff]
      %v272 = vld [vmem:[%s246 + $0x98] sm:$0xff]
      %v273 = vld [vmem:[%s246 + $0xa0] sm:$0xff]
      %v274 = vld [vmem:[%s246 + $0xa8] sm:$0xff]
      %v275 = vld [vmem:[%s246 + $0xb0] sm:$0xff]
      %v276 = vld [vmem:[%s246 + $0xb8] sm:$0xff]
      %v277 = vld [vmem:[%s246 + $0xc0] sm:$0xff]
      %v278 = vld [vmem:[%s246 + $0xc8] sm:$0xff]
      %v279 = vld [vmem:[%s246 + $0xd0] sm:$0xff]
      %v280 = vld [vmem:[%s246 + $0xd8] sm:$0xff]
      %v281 = vld [vmem:[%s246 + $0xe0] sm:$0xff]
      %v282 = vld [vmem:[%s246 + $0xe8] sm:$0xff]
      %v283 = vld [vmem:[%s246 + $0xf0] sm:$0xff]
      %v284 = vld [vmem:[%s246 + $0xf8] sm:$0xff]
      %v285 = vpack.c.bf16 %v253, %v253
      %v286 = vpack.c.bf16 %v254, %v254
      %v287 = vpack.c.bf16 %v255, %v255
      %v288 = vpack.c.bf16 %v256, %v256
      %v289 = vpack.c.bf16 %v257, %v257
      %v290 = vpack.c.bf16 %v258, %v258
      %v291 = vpack.c.bf16 %v259, %v259
      %v292 = vpack.c.bf16 %v260, %v260
      %v293 = vpack.c.bf16 %v261, %v261
      %v294 = vpack.c.bf16 %v262, %v262
      %v295 = vpack.c.bf16 %v263, %v263
      %v296 = vpack.c.bf16 %v264, %v264
      %v297 = vpack.c.bf16 %v265, %v265
      %v298 = vpack.c.bf16 %v266, %v266
      %v299 = vpack.c.bf16 %v267, %v267
      %v300 = vpack.c.bf16 %v268, %v268
      %v301 = vpack.c.bf16 %v269, %v269
      %v302 = vpack.c.bf16 %v270, %v270
      %v303 = vpack.c.bf16 %v271, %v271
      %v304 = vpack.c.bf16 %v272, %v272
      %v305 = vpack.c.bf16 %v273, %v273
      %v306 = vpack.c.bf16 %v274, %v274
      %v307 = vpack.c.bf16 %v275, %v275
      %v308 = vpack.c.bf16 %v276, %v276
      %v309 = vpack.c.bf16 %v277, %v277
      %v310 = vpack.c.bf16 %v278, %v278
      %v311 = vpack.c.bf16 %v279, %v279
      %v312 = vpack.c.bf16 %v280, %v280
      %v313 = vpack.c.bf16 %v281, %v281
      %v314 = vpack.c.bf16 %v282, %v282
      %v315 = vpack.c.bf16 %v283, %v283
      %v316 = vpack.c.bf16 %v284, %v284
      %v317 = vld [vmem:[%s1] sm:$0xff]
      %v318 = vld [vmem:[%s1 + $0x8] sm:$0xff]
      %v319 = vld [vmem:[%s1 + $0x10] sm:$0xff]
      %v320 = vld [vmem:[%s1 + $0x18] sm:$0xff]
      %v321 = vld [vmem:[%s1 + $0x20] sm:$0xff]
      %v322 = vld [vmem:[%s1 + $0x28] sm:$0xff]
      %v323 = vld [vmem:[%s1 + $0x30] sm:$0x11]
      %v331 = vunpack.c.l.b16 %v317
      %v332 = vunpack.c.h.b16 %v317
      %v333 = vunpack.c.l.b16 %v318
      %v334 = vunpack.c.h.b16 %v318
      %v335 = vunpack.c.l.b16 %v319
      %v336 = vunpack.c.h.b16 %v319
      %v337 = vunpack.c.l.b16 %v320
      %v338 = vunpack.c.h.b16 %v320
      %v339 = vunpack.c.l.b16 %v321
      %v340 = vunpack.c.h.b16 %v321
      %v341 = vunpack.c.l.b16 %v322
      %v342 = vunpack.c.h.b16 %v322
      %v343 = vunpack.c.l.b16 %v323
      %v344 = vunpack.c.h.b16 %v323
      %v345 = vpack.c.b16 %v333, %v331
      %v346 = vpack.c.b16 %v334, %v332
      %v347 = vpack.c.b16 %v337, %v335
      %v348 = vpack.c.b16 %v338, %v336
      %v349 = vpack.c.b16 %v341, %v339
      %v350 = vpack.c.b16 %v342, %v340
      %v351 = vpack.c.b16 %v343, %v343
      %v352 = vpack.c.b16 %v344, %v344
      %v393 = vunpack.c.l.b16 %v285
      %v394 = vunpack.c.l.b16 %v286
      %v395 = vunpack.c.l.b16 %v287
      %v396 = vunpack.c.l.b16 %v288
      %v397 = vunpack.c.l.b16 %v289
      %v398 = vunpack.c.l.b16 %v290
      %v399 = vunpack.c.l.b16 %v291
      %v400 = vunpack.c.l.b16 %v292
      %v401 = vunpack.c.l.b16 %v293
      %v402 = vunpack.c.l.b16 %v294
      %v403 = vunpack.c.l.b16 %v295
      %v404 = vunpack.c.l.b16 %v296
      %v405 = vunpack.c.l.b16 %v297
      %v406 = vunpack.c.l.b16 %v298
      %v407 = vunpack.c.l.b16 %v299
      %v408 = vunpack.c.l.b16 %v300
      %v409 = vunpack.c.l.b16 %v301
      %v410 = vunpack.c.l.b16 %v302
      %v411 = vunpack.c.l.b16 %v303
      %v412 = vunpack.c.l.b16 %v304
      %v413 = vunpack.c.l.b16 %v305
      %v414 = vunpack.c.l.b16 %v306
      %v415 = vunpack.c.l.b16 %v307
      %v416 = vunpack.c.l.b16 %v308
      %v417 = vunpack.c.l.b16 %v309
      %v418 = vunpack.c.l.b16 %v310
      %v419 = vunpack.c.l.b16 %v311
      %v420 = vunpack.c.l.b16 %v312
      %v421 = vunpack.c.l.b16 %v313
      %v422 = vunpack.c.l.b16 %v314
      %v423 = vunpack.c.l.b16 %v315
      %v424 = vunpack.c.l.b16 %v316
      %v425 = vpack.c.b16 %v394, %v393
      %v426 = vpack.c.b16 %v396, %v395
      %v427 = vpack.c.b16 %v398, %v397
      %v428 = vpack.c.b16 %v400, %v399
      %v429 = vpack.c.b16 %v402, %v401
      %v430 = vpack.c.b16 %v404, %v403
      %v431 = vpack.c.b16 %v406, %v405
      %v432 = vpack.c.b16 %v408, %v407
      %v433 = vpack.c.b16 %v410, %v409
      %v434 = vpack.c.b16 %v412, %v411
      %v435 = vpack.c.b16 %v414, %v413
      %v436 = vpack.c.b16 %v416, %v415
      %v437 = vpack.c.b16 %v418, %v417
      %v438 = vpack.c.b16 %v420, %v419
      %v439 = vpack.c.b16 %v422, %v421
      %v440 = vpack.c.b16 %v424, %v423
      %457 = vmatpush.bf16.msra.mxu0 %v432
      %458 = vmatpush.bf16.msra.mxu0 %v431
      %459 = vmatpush.bf16.msra.mxu0 %v430
      %460 = vmatpush.bf16.msra.mxu0 %v429
      %461 = vmatpush.bf16.msra.mxu0 %v428
      %462 = vmatpush.bf16.msra.mxu0 %v427
      %463 = vmatpush.bf16.msra.mxu0 %v426
      %464 = vmatpush.bf16.msra.mxu0 %v425
      %465 = vmatmul.bf16.gmra.mxu0 %v345
      %v466 = vpop.f32.mrf.mxu0
      %v467 = vadd.f32 0.0, %v466
      %v468 = vpop.f32.mrf.mxu0
      %v469 = vadd.f32 0.0, %v468
      %470 = vmatmul.bf16.gmra.mxu0 %v347
      %v471 = vpop.f32.mrf.mxu0
      %v472 = vadd.f32 0.0, %v471
      %v473 = vpop.f32.mrf.mxu0
      %v474 = vadd.f32 0.0, %v473
      %475 = vmatmul.bf16.gmra.mxu0 %v349
      %v476 = vpop.f32.mrf.mxu0
      %v477 = vadd.f32 0.0, %v476
      %v478 = vpop.f32.mrf.mxu0
      %v479 = vadd.f32 0.0, %v478
      %480 = vmatmul.bf16.gmra.mxu0 %v351
      %v481 = vpop.f32.mrf.mxu0
      %v482 = vadd.f32 0.0, %v481
      %v483 = vpop.f32.mrf.mxu0
      %484 = vdwg.mxu0
      %485 = vmatpush.bf16.msra.mxu0 %v440
      %486 = vmatpush.bf16.msra.mxu0 %v439
      %487 = vmatpush.bf16.msra.mxu0 %v438
      %488 = vmatpush.bf16.msra.mxu0 %v437
      %489 = vmatpush.bf16.msra.mxu0 %v436
      %490 = vmatpush.bf16.msra.mxu0 %v435
      %491 = vmatpush.bf16.msra.mxu0 %v434
      %492 = vmatpush.bf16.msra.mxu0 %v433
      %493 = vmatmul.bf16.gmra.mxu0 %v346
      %v494 = vpop.f32.mrf.mxu0
      %v495 = vadd.f32 %v467, %v494
      %v496 = vpop.f32.mrf.mxu0
      %v497 = vadd.f32 %v469, %v496
      %498 = vmatmul.bf16.gmra.mxu0 %v348
      %v499 = vpop.f32.mrf.mxu0
      %v500 = vadd.f32 %v472, %v499
      %v501 = vpop.f32.mrf.mxu0
      %v502 = vadd.f32 %v474, %v501
      %503 = vmatmul.bf16.gmra.mxu0 %v350
      %v504 = vpop.f32.mrf.mxu0
      %v505 = vadd.f32 %v477, %v504
      %v506 = vpop.f32.mrf.mxu0
      %v507 = vadd.f32 %v479, %v506
      %508 = vmatmul.bf16.gmra.mxu0 %v352
      %v509 = vpop.f32.mrf.mxu0
      %v510 = vadd.f32 %v482, %v509
      %v511 = vpop.f32.mrf.mxu0
      %512 = vdwg.mxu0
      %v513 = vpack.c.bf16 %v497, %v495
      %v514 = vpack.c.bf16 %v502, %v500
      %v515 = vpack.c.bf16 %v507, %v505
      %v516 = vpack.c.bf16 %v510, %v510
      %v517 = vld [vmem:[%s2] sm:$0x3]
      %v518 = vld [vmem:[%s3] sm:$0x1]
      %v520 = vperm.slane %v518, 0
      %vm522 = vcmask 31744
      %v524 = vsel %vm522, %v513, 0
      %v527 = vsel %vm522, %v514, 0
      %v530 = vsel %vm522, %v515, 0
      %v533 = vsel %vm522, %v516, 0
      %vm535 = vcmask 1041408
      %v537 = vsel %vm535, %v517, 0
      %539 = vmatpush.bf16.msra.mxu0 0
      %540 = vmatpush.bf16.msra.mxu0 0
      %541 = vmatpush.bf16.msra.mxu0 0
      %542 = vmatpush.bf16.msra.mxu0 0
      %543 = vmatpush.bf16.msra.mxu0 0
      %544 = vmatpush.bf16.msra.mxu0 0
      %545 = vmatpush.bf16.msra.mxu0 0
      %546 = vmatpush.bf16.msra.mxu0 %v537
      %547 = vmatmul.bf16.gmra.mxu0 %v524
      %v548 = vpop.f32.mrf.mxu0
      %v549 = vadd.f32 %v520, %v548
      %v550 = vpop.f32.mrf.mxu0
      %v551 = vadd.f32 %v520, %v550
      %552 = vmatmul.bf16.gmra.mxu0 %v527
      %v553 = vpop.f32.mrf.mxu0
      %v554 = vadd.f32 %v520, %v553
      %v555 = vpop.f32.mrf.mxu0
      %v556 = vadd.f32 %v520, %v555
      %557 = vmatmul.bf16.gmra.mxu0 %v530
      %v558 = vpop.f32.mrf.mxu0
      %v559 = vadd.f32 %v520, %v558
      %v560 = vpop.f32.mrf.mxu0
      %v561 = vadd.f32 %v520, %v560
      %562 = vmatmul.bf16.gmra.mxu0 %v533
      %v563 = vpop.f32.mrf.mxu0
      %v564 = vadd.f32 %v520, %v563
      %v565 = vpop.f32.mrf.mxu0
      %566 = vdwg.mxu0
      %v567 = vmax.f32 %v549, 0.0
      %v568 = vmax.f32 %v551, 0.0
      %v569 = vmax.f32 %v554, 0.0
      %v570 = vmax.f32 %v556, 0.0
      %v571 = vmax.f32 %v559, 0.0
      %v572 = vmax.f32 %v561, 0.0
      %v573 = vmax.f32 %v564, 0.0
      %v574 = vld [vmem:[%s4] sm:$0xff]
      %v575 = vld [vmem:[%s4 + $0x8] sm:$0xff]
      %v576 = vld [vmem:[%s4 + $0x10] sm:$0xff]
      %v577 = vld [vmem:[%s4 + $0x18] sm:$0xff]
      %v578 = vld [vmem:[%s4 + $0x20] sm:$0xff]
      %v579 = vld [vmem:[%s4 + $0x28] sm:$0xff]
      %v580 = vld [vmem:[%s4 + $0x30] sm:$0x3]
      %v581 = vmul.f32 %v567, %v574
      %v582 = vmul.f32 %v568, %v575
      %v583 = vmul.f32 %v569, %v576
      %v584 = vmul.f32 %v570, %v577
      %v585 = vmul.f32 %v571, %v578
      %v586 = vmul.f32 %v572, %v579
      %v587 = vmul.f32 %v573, %v580
      %v588 = vld [vmem:[%s5] sm:$0xf]
      %v589 = vld [vmem:[%s5 + $0x4] sm:$0xf]
      %v590 = vld [vmem:[%s5 + $0x8] sm:$0xf]
      %v591 = vld [vmem:[%s5 + $0xc] sm:$0xf]
      %v592 = vld [vmem:[%s5 + $0x10] sm:$0xf]
      %v593 = vld [vmem:[%s5 + $0x14] sm:$0xf]
      %v594 = vld [vmem:[%s5 + $0x18] sm:$0xf]
      %v595 = vld [vmem:[%s5 + $0x1c] sm:$0xf]
      %v596 = vld [vmem:[%s5 + $0x20] sm:$0xf]
      %v597 = vld [vmem:[%s5 + $0x24] sm:$0xf]
      %v598 = vld [vmem:[%s5 + $0x28] sm:$0xf]
      %v599 = vld [vmem:[%s5 + $0x2c] sm:$0xf]
      %v600 = vld [vmem:[%s5 + $0x30] sm:$0xf]
      %v601 = vld [vmem:[%s5 + $0x34] sm:$0xf]
      %v602 = vld [vmem:[%s5 + $0x38] sm:$0xf]
      %v603 = vld [vmem:[%s5 + $0x3c] sm:$0xf]
      %v604 = vld [vmem:[%s5 + $0x40] sm:$0xf]
      %v605 = vld [vmem:[%s5 + $0x44] sm:$0xf]
      %v606 = vld [vmem:[%s5 + $0x48] sm:$0xf]
      %v607 = vld [vmem:[%s5 + $0x4c] sm:$0xf]
      %v608 = vld [vmem:[%s5 + $0x50] sm:$0xf]
      %v609 = vld [vmem:[%s5 + $0x54] sm:$0xf]
      %v610 = vld [vmem:[%s5 + $0x58] sm:$0xf]
      %v611 = vld [vmem:[%s5 + $0x5c] sm:$0xf]
      %v612 = vld [vmem:[%s5 + $0x60] sm:$0xf]
      %v613 = vld [vmem:[%s5 + $0x64] sm:$0xf]
      %v614 = vld [vmem:[%s5 + $0x68] sm:$0xf]
      %v615 = vld [vmem:[%s5 + $0x6c] sm:$0xf]
      %v616 = vld [vmem:[%s5 + $0x70] sm:$0xf]
      %v617 = vld [vmem:[%s5 + $0x74] sm:$0xf]
      %v618 = vld [vmem:[%s5 + $0x78] sm:$0xf]
      %v619 = vld [vmem:[%s5 + $0x7c] sm:$0xf]
      %v620 = vpack.c.bf16 %v582, %v581
      %v621 = vpack.c.bf16 %v584, %v583
      %v622 = vpack.c.bf16 %v586, %v585
      %v623 = vpack.c.bf16 %v587, %v587
      %v656 = vunpack.c.l.b16 %v588
      %v657 = vunpack.c.l.b16 %v589
      %v658 = vunpack.c.l.b16 %v590
      %v659 = vunpack.c.l.b16 %v591
      %v660 = vunpack.c.l.b16 %v592
      %v661 = vunpack.c.l.b16 %v593
      %v662 = vunpack.c.l.b16 %v594
      %v663 = vunpack.c.l.b16 %v595
      %v664 = vunpack.c.l.b16 %v596
      %v665 = vunpack.c.l.b16 %v597
      %v666 = vunpack.c.l.b16 %v598
      %v667 = vunpack.c.l.b16 %v599
      %v668 = vunpack.c.l.b16 %v600
      %v669 = vunpack.c.l.b16 %v601
      %v670 = vunpack.c.l.b16 %v602
      %v671 = vunpack.c.l.b16 %v603
      %v672 = vunpack.c.l.b16 %v604
      %v673 = vunpack.c.l.b16 %v605
      %v674 = vunpack.c.l.b16 %v606
      %v675 = vunpack.c.l.b16 %v607
      %v676 = vunpack.c.l.b16 %v608
      %v677 = vunpack.c.l.b16 %v609
      %v678 = vunpack.c.l.b16 %v610
      %v679 = vunpack.c.l.b16 %v611
      %v680 = vunpack.c.l.b16 %v612
      %v681 = vunpack.c.l.b16 %v613
      %v682 = vunpack.c.l.b16 %v614
      %v683 = vunpack.c.l.b16 %v615
      %v684 = vunpack.c.l.b16 %v616
      %v685 = vunpack.c.l.b16 %v617
      %v686 = vunpack.c.l.b16 %v618
      %v687 = vunpack.c.l.b16 %v619
      %v688 = vpack.c.b16 %v657, %v656
      %v689 = vpack.c.b16 %v659, %v658
      %v690 = vpack.c.b16 %v661, %v660
      %v691 = vpack.c.b16 %v663, %v662
      %v692 = vpack.c.b16 %v665, %v664
      %v693 = vpack.c.b16 %v667, %v666
      %v694 = vpack.c.b16 %v669, %v668
      %v695 = vpack.c.b16 %v671, %v670
      %v696 = vpack.c.b16 %v673, %v672
      %v697 = vpack.c.b16 %v675, %v674
      %v698 = vpack.c.b16 %v677, %v676
      %v699 = vpack.c.b16 %v679, %v678
      %v700 = vpack.c.b16 %v681, %v680
      %v701 = vpack.c.b16 %v683, %v682
      %v702 = vpack.c.b16 %v685, %v684
      %v703 = vpack.c.b16 %v687, %v686
      %vm704 = vcmask 408576
      %v706 = vsel %vm704, %v688, 0
      %v709 = vsel %vm704, %v689, 0
      %v712 = vsel %vm704, %v690, 0
      %v715 = vsel %vm704, %v691, 0
      %v718 = vsel %vm704, %v692, 0
      %v721 = vsel %vm704, %v693, 0
      %v724 = vsel %vm704, %v694, 0
      %v727 = vsel %vm704, %v695, 0
      %v730 = vsel %vm704, %v696, 0
      %v733 = vsel %vm704, %v697, 0
      %v736 = vsel %vm704, %v698, 0
      %v739 = vsel %vm704, %v699, 0
      %v742 = vsel %vm704, %v700, 0
      %v745 = vsel %vm704, %v701, 0
      %v748 = vsel %vm704, %v702, 0
      %v751 = vsel %vm704, %v703, 0
      %vm753 = vcmask 1040384
      %v755 = vsel %vm753, %v623, 0
      %757 = vmatpush.bf16.msra.mxu0 0
      %758 = vmatpush.bf16.msra.mxu0 0
      %759 = vmatpush.bf16.msra.mxu0 0
      %760 = vmatpush.bf16.msra.mxu0 0
      %761 = vmatpush.bf16.msra.mxu0 %v755
      %762 = vmatpush.bf16.msra.mxu0 %v622
      %763 = vmatpush.bf16.msra.mxu0 %v621
      %764 = vmatpush.bf16.msra.mxu0 %v620
      %765 = vmatmul.bf16.gmra.mxu0 %v706
      %v766 = vpop.f32.mrf.mxu0
      %v767 = vadd.f32 0.0, %v766
      %v768 = vpop.f32.mrf.mxu0
      %v769 = vadd.f32 0.0, %v768
      %770 = vmatmul.bf16.gmra.mxu0 %v709
      %v771 = vpop.f32.mrf.mxu0
      %v772 = vadd.f32 0.0, %v771
      %v773 = vpop.f32.mrf.mxu0
      %v774 = vadd.f32 0.0, %v773
      %775 = vmatmul.bf16.gmra.mxu0 %v712
      %v776 = vpop.f32.mrf.mxu0
      %v777 = vadd.f32 0.0, %v776
      %v778 = vpop.f32.mrf.mxu0
      %v779 = vadd.f32 0.0, %v778
      %780 = vmatmul.bf16.gmra.mxu0 %v715
      %v781 = vpop.f32.mrf.mxu0
      %v782 = vadd.f32 0.0, %v781
      %v783 = vpop.f32.mrf.mxu0
      %v784 = vadd.f32 0.0, %v783
      %785 = vmatmul.bf16.gmra.mxu0 %v718
      %v786 = vpop.f32.mrf.mxu0
      %v787 = vadd.f32 0.0, %v786
      %v788 = vpop.f32.mrf.mxu0
      %v789 = vadd.f32 0.0, %v788
      %790 = vmatmul.bf16.gmra.mxu0 %v721
      %v791 = vpop.f32.mrf.mxu0
      %v792 = vadd.f32 0.0, %v791
      %v793 = vpop.f32.mrf.mxu0
      %v794 = vadd.f32 0.0, %v793
      %795 = vmatmul.bf16.gmra.mxu0 %v724
      %v796 = vpop.f32.mrf.mxu0
      %v797 = vadd.f32 0.0, %v796
      %v798 = vpop.f32.mrf.mxu0
      %v799 = vadd.f32 0.0, %v798
      %800 = vmatmul.bf16.gmra.mxu0 %v727
      %v801 = vpop.f32.mrf.mxu0
      %v802 = vadd.f32 0.0, %v801
      %v803 = vpop.f32.mrf.mxu0
      %v804 = vadd.f32 0.0, %v803
      %805 = vmatmul.bf16.gmra.mxu0 %v730
      %v806 = vpop.f32.mrf.mxu0
      %v807 = vadd.f32 0.0, %v806
      %v808 = vpop.f32.mrf.mxu0
      %v809 = vadd.f32 0.0, %v808
      %810 = vmatmul.bf16.gmra.mxu0 %v733
      %v811 = vpop.f32.mrf.mxu0
      %v812 = vadd.f32 0.0, %v811
      %v813 = vpop.f32.mrf.mxu0
      %v814 = vadd.f32 0.0, %v813
      %815 = vmatmul.bf16.gmra.mxu0 %v736
      %v816 = vpop.f32.mrf.mxu0
      %v817 = vadd.f32 0.0, %v816
      %v818 = vpop.f32.mrf.mxu0
      %v819 = vadd.f32 0.0, %v818
      %820 = vmatmul.bf16.gmra.mxu0 %v739
      %v821 = vpop.f32.mrf.mxu0
      %v822 = vadd.f32 0.0, %v821
      %v823 = vpop.f32.mrf.mxu0
      %v824 = vadd.f32 0.0, %v823
      %825 = vmatmul.bf16.gmra.mxu0 %v742
      %v826 = vpop.f32.mrf.mxu0
      %v827 = vadd.f32 0.0, %v826
      %v828 = vpop.f32.mrf.mxu0
      %v829 = vadd.f32 0.0, %v828
      %830 = vmatmul.bf16.gmra.mxu0 %v745
      %v831 = vpop.f32.mrf.mxu0
      %v832 = vadd.f32 0.0, %v831
      %v833 = vpop.f32.mrf.mxu0
      %v834 = vadd.f32 0.0, %v833
      %835 = vmatmul.bf16.gmra.mxu0 %v748
      %v836 = vpop.f32.mrf.mxu0
      %v837 = vadd.f32 0.0, %v836
      %v838 = vpop.f32.mrf.mxu0
      %v839 = vadd.f32 0.0, %v838
      %840 = vmatmul.bf16.gmra.mxu0 %v751
      %v841 = vpop.f32.mrf.mxu0
      %v842 = vadd.f32 0.0, %v841
      %v843 = vpop.f32.mrf.mxu0
      %v844 = vadd.f32 0.0, %v843
      %845 = vdwg.mxu0
      %v846 = vpack.c.bf16 %v767, %v767
      %v847 = vpack.c.bf16 %v769, %v769
      %v848 = vpack.c.bf16 %v772, %v772
      %v849 = vpack.c.bf16 %v774, %v774
      %v850 = vpack.c.bf16 %v777, %v777
      %v851 = vpack.c.bf16 %v779, %v779
      %v852 = vpack.c.bf16 %v782, %v782
      %v853 = vpack.c.bf16 %v784, %v784
      %v854 = vpack.c.bf16 %v787, %v787
      %v855 = vpack.c.bf16 %v789, %v789
      %v856 = vpack.c.bf16 %v792, %v792
      %v857 = vpack.c.bf16 %v794, %v794
      %v858 = vpack.c.bf16 %v797, %v797
      %v859 = vpack.c.bf16 %v799, %v799
      %v860 = vpack.c.bf16 %v802, %v802
      %v861 = vpack.c.bf16 %v804, %v804
      %v862 = vpack.c.bf16 %v807, %v807
      %v863 = vpack.c.bf16 %v809, %v809
      %v864 = vpack.c.bf16 %v812, %v812
      %v865 = vpack.c.bf16 %v814, %v814
      %v866 = vpack.c.bf16 %v817, %v817
      %v867 = vpack.c.bf16 %v819, %v819
      %v868 = vpack.c.bf16 %v822, %v822
      %v869 = vpack.c.bf16 %v824, %v824
      %v870 = vpack.c.bf16 %v827, %v827
      %v871 = vpack.c.bf16 %v829, %v829
      %v872 = vpack.c.bf16 %v832, %v832
      %v873 = vpack.c.bf16 %v834, %v834
      %v874 = vpack.c.bf16 %v837, %v837
      %v875 = vpack.c.bf16 %v839, %v839
      %v876 = vpack.c.bf16 %v842, %v842
      %v877 = vpack.c.bf16 %v844, %v844
      %v910 = vunpack.c.l.b16 %v846
      %v911 = vunpack.c.l.b16 %v847
      %v912 = vunpack.c.l.b16 %v848
      %v913 = vunpack.c.l.b16 %v849
      %v914 = vunpack.c.l.b16 %v850
      %v915 = vunpack.c.l.b16 %v851
      %v916 = vunpack.c.l.b16 %v852
      %v917 = vunpack.c.l.b16 %v853
      %v918 = vunpack.c.l.b16 %v854
      %v919 = vunpack.c.l.b16 %v855
      %v920 = vunpack.c.l.b16 %v856
      %v921 = vunpack.c.l.b16 %v857
      %v922 = vunpack.c.l.b16 %v858
      %v923 = vunpack.c.l.b16 %v859
      %v924 = vunpack.c.l.b16 %v860
      %v925 = vunpack.c.l.b16 %v861
      %v926 = vunpack.c.l.b16 %v862
      %v927 = vunpack.c.l.b16 %v863
      %v928 = vunpack.c.l.b16 %v864
      %v929 = vunpack.c.l.b16 %v865
      %v930 = vunpack.c.l.b16 %v866
      %v931 = vunpack.c.l.b16 %v867
      %v932 = vunpack.c.l.b16 %v868
      %v933 = vunpack.c.l.b16 %v869
      %v934 = vunpack.c.l.b16 %v870
      %v935 = vunpack.c.l.b16 %v871
      %v936 = vunpack.c.l.b16 %v872
      %v937 = vunpack.c.l.b16 %v873
      %v938 = vunpack.c.l.b16 %v874
      %v939 = vunpack.c.l.b16 %v875
      %v940 = vunpack.c.l.b16 %v876
      %v941 = vunpack.c.l.b16 %v877
      %v942 = vpack.c.b16 %v911, %v910
      %v943 = vpack.c.b16 %v913, %v912
      %v944 = vpack.c.b16 %v915, %v914
      %v945 = vpack.c.b16 %v917, %v916
      %v946 = vpack.c.b16 %v919, %v918
      %v947 = vpack.c.b16 %v921, %v920
      %v948 = vpack.c.b16 %v923, %v922
      %v949 = vpack.c.b16 %v925, %v924
      %v950 = vpack.c.b16 %v927, %v926
      %v951 = vpack.c.b16 %v929, %v928
      %v952 = vpack.c.b16 %v931, %v930
      %v953 = vpack.c.b16 %v933, %v932
      %v954 = vpack.c.b16 %v935, %v934
      %v955 = vpack.c.b16 %v937, %v936
      %v956 = vpack.c.b16 %v939, %v938
      %v957 = vpack.c.b16 %v941, %v940
      %v960 = vsel %vm522, %v425, 0
      %v962 = vsel %vm522, %v426, 0
      %v964 = vsel %vm522, %v427, 0
      %v966 = vsel %vm522, %v428, 0
      %v968 = vsel %vm522, %v429, 0
      %v970 = vsel %vm522, %v430, 0
      %v972 = vsel %vm522, %v431, 0
      %v974 = vsel %vm522, %v432, 0
      %v976 = vsel %vm522, %v433, 0
      %v978 = vsel %vm522, %v434, 0
      %v980 = vsel %vm522, %v435, 0
      %v982 = vsel %vm522, %v436, 0
      %v984 = vsel %vm522, %v437, 0
      %v986 = vsel %vm522, %v438, 0
      %v988 = vsel %vm522, %v439, 0
      %v990 = vsel %vm522, %v440, 0
      %v992 = vshrl.u32 %v942, 16
      %v994 = vrot.slane %v992, 7
      %v995 = vshll.u32 %v942, 16
      %v997 = vor.u32 %v994, %v995
      %v998 = vshrl.u32 %v960, 16
      %v1000 = vrot.slane %v998, 7
      %v1001 = vshll.u32 %v960, 16
      %v1003 = vor.u32 %v1000, %v1001
      %v1005 = vshrl.u32 %v943, 16
      %v1007 = vrot.slane %v1005, 7
      %v1008 = vshll.u32 %v943, 16
      %v1010 = vor.u32 %v1007, %v1008
      %v1011 = vshrl.u32 %v962, 16
      %v1013 = vrot.slane %v1011, 7
      %v1014 = vshll.u32 %v962, 16
      %v1016 = vor.u32 %v1013, %v1014
      %v1018 = vshrl.u32 %v944, 16
      %v1020 = vrot.slane %v1018, 7
      %v1021 = vshll.u32 %v944, 16
      %v1023 = vor.u32 %v1020, %v1021
      %v1024 = vshrl.u32 %v964, 16
      %v1026 = vrot.slane %v1024, 7
      %v1027 = vshll.u32 %v964, 16
      %v1029 = vor.u32 %v1026, %v1027
      %v1031 = vshrl.u32 %v945, 16
      %v1033 = vrot.slane %v1031, 7
      %v1034 = vshll.u32 %v945, 16
      %v1036 = vor.u32 %v1033, %v1034
      %v1037 = vshrl.u32 %v966, 16
      %v1039 = vrot.slane %v1037, 7
      %v1040 = vshll.u32 %v966, 16
      %v1042 = vor.u32 %v1039, %v1040
      %v1044 = vshrl.u32 %v946, 16
      %v1046 = vrot.slane %v1044, 7
      %v1047 = vshll.u32 %v946, 16
      %v1049 = vor.u32 %v1046, %v1047
      %v1050 = vshrl.u32 %v968, 16
      %v1052 = vrot.slane %v1050, 7
      %v1053 = vshll.u32 %v968, 16
      %v1055 = vor.u32 %v1052, %v1053
      %v1057 = vshrl.u32 %v947, 16
      %v1059 = vrot.slane %v1057, 7
      %v1060 = vshll.u32 %v947, 16
      %v1062 = vor.u32 %v1059, %v1060
      %v1063 = vshrl.u32 %v970, 16
      %v1065 = vrot.slane %v1063, 7
      %v1066 = vshll.u32 %v970, 16
      %v1068 = vor.u32 %v1065, %v1066
      %v1070 = vshrl.u32 %v948, 16
      %v1072 = vrot.slane %v1070, 7
      %v1073 = vshll.u32 %v948, 16
      %v1075 = vor.u32 %v1072, %v1073
      %v1076 = vshrl.u32 %v972, 16
      %v1078 = vrot.slane %v1076, 7
      %v1079 = vshll.u32 %v972, 16
      %v1081 = vor.u32 %v1078, %v1079
      %v1083 = vshrl.u32 %v949, 16
      %v1085 = vrot.slane %v1083, 7
      %v1086 = vshll.u32 %v949, 16
      %v1088 = vor.u32 %v1085, %v1086
      %v1089 = vshrl.u32 %v974, 16
      %v1091 = vrot.slane %v1089, 7
      %v1092 = vshll.u32 %v974, 16
      %v1094 = vor.u32 %v1091, %v1092
      %v1096 = vshrl.u32 %v950, 16
      %v1098 = vrot.slane %v1096, 7
      %v1099 = vshll.u32 %v950, 16
      %v1101 = vor.u32 %v1098, %v1099
      %v1102 = vshrl.u32 %v976, 16
      %v1104 = vrot.slane %v1102, 7
      %v1105 = vshll.u32 %v976, 16
      %v1107 = vor.u32 %v1104, %v1105
      %v1109 = vshrl.u32 %v951, 16
      %v1111 = vrot.slane %v1109, 7
      %v1112 = vshll.u32 %v951, 16
      %v1114 = vor.u32 %v1111, %v1112
      %v1115 = vshrl.u32 %v978, 16
      %v1117 = vrot.slane %v1115, 7
      %v1118 = vshll.u32 %v978, 16
      %v1120 = vor.u32 %v1117, %v1118
      %v1122 = vshrl.u32 %v952, 16
      %v1124 = vrot.slane %v1122, 7
      %v1125 = vshll.u32 %v952, 16
      %v1127 = vor.u32 %v1124, %v1125
      %v1128 = vshrl.u32 %v980, 16
      %v1130 = vrot.slane %v1128, 7
      %v1131 = vshll.u32 %v980, 16
      %v1133 = vor.u32 %v1130, %v1131
      %v1135 = vshrl.u32 %v953, 16
      %v1137 = vrot.slane %v1135, 7
      %v1138 = vshll.u32 %v953, 16
      %v1140 = vor.u32 %v1137, %v1138
      %v1141 = vshrl.u32 %v982, 16
      %v1143 = vrot.slane %v1141, 7
      %v1144 = vshll.u32 %v982, 16
      %v1146 = vor.u32 %v1143, %v1144
      %v1148 = vshrl.u32 %v954, 16
      %v1150 = vrot.slane %v1148, 7
      %v1151 = vshll.u32 %v954, 16
      %v1153 = vor.u32 %v1150, %v1151
      %v1154 = vshrl.u32 %v984, 16
      %v1156 = vrot.slane %v1154, 7
      %v1157 = vshll.u32 %v984, 16
      %v1159 = vor.u32 %v1156, %v1157
      %v1161 = vshrl.u32 %v955, 16
      %v1163 = vrot.slane %v1161, 7
      %v1164 = vshll.u32 %v955, 16
      %v1166 = vor.u32 %v1163, %v1164
      %v1167 = vshrl.u32 %v986, 16
      %v1169 = vrot.slane %v1167, 7
      %v1170 = vshll.u32 %v986, 16
      %v1172 = vor.u32 %v1169, %v1170
      %v1174 = vshrl.u32 %v956, 16
      %v1176 = vrot.slane %v1174, 7
      %v1177 = vshll.u32 %v956, 16
      %v1179 = vor.u32 %v1176, %v1177
      %v1180 = vshrl.u32 %v988, 16
      %v1182 = vrot.slane %v1180, 7
      %v1183 = vshll.u32 %v988, 16
      %v1185 = vor.u32 %v1182, %v1183
      %v1187 = vshrl.u32 %v957, 16
      %v1189 = vrot.slane %v1187, 7
      %v1190 = vshll.u32 %v957, 16
      %v1192 = vor.u32 %v1189, %v1190
      %v1193 = vshrl.u32 %v990, 16
      %v1195 = vrot.slane %v1193, 7
      %v1196 = vshll.u32 %v990, 16
      %v1198 = vor.u32 %v1195, %v1196
      %vm1263 = vcmask 1040384
      %vm1264 = vsmask.f32 256
      %vm1265 = vmand %vm1263, %vm1264
      %v1266 = vsel %vm1265, 0, %v997
      %v1267 = vsel %vm1265, 0, %v1003
      %v1268 = vsel %vm1265, 0, %v1010
      %v1269 = vsel %vm1265, 0, %v1016
      %v1270 = vsel %vm1265, 0, %v1023
      %v1271 = vsel %vm1265, 0, %v1029
      %v1272 = vsel %vm1265, 0, %v1036
      %v1273 = vsel %vm1265, 0, %v1042
      %v1274 = vsel %vm1265, 0, %v1049
      %v1275 = vsel %vm1265, 0, %v1055
      %v1276 = vsel %vm1265, 0, %v1062
      %v1277 = vsel %vm1265, 0, %v1068
      %v1278 = vsel %vm1265, 0, %v1075
      %v1279 = vsel %vm1265, 0, %v1081
      %v1280 = vsel %vm1265, 0, %v1088
      %v1281 = vsel %vm1265, 0, %v1094
      %v1282 = vsel %vm1265, 0, %v1101
      %v1283 = vsel %vm1265, 0, %v1107
      %v1284 = vsel %vm1265, 0, %v1114
      %v1285 = vsel %vm1265, 0, %v1120
      %v1286 = vsel %vm1265, 0, %v1127
      %v1287 = vsel %vm1265, 0, %v1133
      %v1288 = vsel %vm1265, 0, %v1140
      %v1289 = vsel %vm1265, 0, %v1146
      %v1290 = vsel %vm1265, 0, %v1153
      %v1291 = vsel %vm1265, 0, %v1159
      %v1292 = vsel %vm1265, 0, %v1166
      %v1293 = vsel %vm1265, 0, %v1172
      %v1294 = vsel %vm1265, 0, %v1179
      %v1295 = vsel %vm1265, 0, %v1185
      %v1296 = vsel %vm1265, 0, %v1192
      %v1297 = vsel %vm1265, 0, %v1198
      %v1298 = vsel %vm1265, %v994, 0
      %v1299 = vsel %vm1265, %v1000, 0
      %v1300 = vsel %vm1265, %v1007, 0
      %v1301 = vsel %vm1265, %v1013, 0
      %v1302 = vsel %vm1265, %v1020, 0
      %v1303 = vsel %vm1265, %v1026, 0
      %v1304 = vsel %vm1265, %v1033, 0
      %v1305 = vsel %vm1265, %v1039, 0
      %v1306 = vsel %vm1265, %v1046, 0
      %v1307 = vsel %vm1265, %v1052, 0
      %v1308 = vsel %vm1265, %v1059, 0
      %v1309 = vsel %vm1265, %v1065, 0
      %v1310 = vsel %vm1265, %v1072, 0
      %v1311 = vsel %vm1265, %v1078, 0
      %v1312 = vsel %vm1265, %v1085, 0
      %v1313 = vsel %vm1265, %v1091, 0
      %v1314 = vsel %vm1265, %v1098, 0
      %v1315 = vsel %vm1265, %v1104, 0
      %v1316 = vsel %vm1265, %v1111, 0
      %v1317 = vsel %vm1265, %v1117, 0
      %v1318 = vsel %vm1265, %v1124, 0
      %v1319 = vsel %vm1265, %v1130, 0
      %v1320 = vsel %vm1265, %v1137, 0
      %v1321 = vsel %vm1265, %v1143, 0
      %v1322 = vsel %vm1265, %v1150, 0
      %v1323 = vsel %vm1265, %v1156, 0
      %v1324 = vsel %vm1265, %v1163, 0
      %v1325 = vsel %vm1265, %v1169, 0
      %v1326 = vsel %vm1265, %v1176, 0
      %v1327 = vsel %vm1265, %v1182, 0
      %v1328 = vsel %vm1265, %v1189, 0
      %v1329 = vsel %vm1265, %v1195, 0
      %v1362 = vrot.slane %v1267, 7
      %v1363 = vrot.slane %v1299, 7
      %v1364 = vrot.slane %v1269, 7
      %v1365 = vrot.slane %v1301, 7
      %v1366 = vrot.slane %v1271, 7
      %v1367 = vrot.slane %v1303, 7
      %v1368 = vrot.slane %v1273, 7
      %v1369 = vrot.slane %v1305, 7
      %v1370 = vrot.slane %v1275, 7
      %v1371 = vrot.slane %v1307, 7
      %v1372 = vrot.slane %v1277, 7
      %v1373 = vrot.slane %v1309, 7
      %v1374 = vrot.slane %v1279, 7
      %v1375 = vrot.slane %v1311, 7
      %v1376 = vrot.slane %v1281, 7
      %v1377 = vrot.slane %v1313, 7
      %v1378 = vrot.slane %v1283, 7
      %v1379 = vrot.slane %v1315, 7
      %v1380 = vrot.slane %v1285, 7
      %v1381 = vrot.slane %v1317, 7
      %v1382 = vrot.slane %v1287, 7
      %v1383 = vrot.slane %v1319, 7
      %v1384 = vrot.slane %v1289, 7
      %v1385 = vrot.slane %v1321, 7
      %v1386 = vrot.slane %v1291, 7
      %v1387 = vrot.slane %v1323, 7
      %v1388 = vrot.slane %v1293, 7
      %v1389 = vrot.slane %v1325, 7
      %v1390 = vrot.slane %v1295, 7
      %v1391 = vrot.slane %v1327, 7
      %v1392 = vrot.slane %v1297, 7
      %v1393 = vrot.slane %v1329, 7
      %v1396 = vsel %vm753, %v1266, %v1362
      %vm1397 = vcmask 1041409
      %v1398 = vsel %vm1397, %v1266, %v1362
      %v1400 = vrot.slane %v1398, 1
      %vm1401 = vcmask 1042434
      %v1402 = vsel %vm1401, %v1266, %v1362
      %v1404 = vrot.slane %v1402, 2
      %vm1405 = vcmask 1043459
      %v1406 = vsel %vm1405, %v1266, %v1362
      %v1408 = vrot.slane %v1406, 3
      %vm1409 = vcmask 1044484
      %v1410 = vsel %vm1409, %v1266, %v1362
      %v1412 = vrot.slane %v1410, 4
      %vm1413 = vcmask 1045509
      %v1414 = vsel %vm1413, %v1266, %v1362
      %v1416 = vrot.slane %v1414, 5
      %vm1417 = vcmask 1046534
      %v1418 = vsel %vm1417, %v1266, %v1362
      %v1420 = vrot.slane %v1418, 6
      %vm1421 = vcmask 1046528
      %v1422 = vsel %vm1421, %v1362, %v1266
      %v1424 = vrot.slane %v1422, 7
      %v1427 = vsel %vm753, %v1298, %v1363
      %v1430 = vsel %vm753, %v1268, %v1364
      %v1431 = vsel %vm1397, %v1268, %v1364
      %v1433 = vrot.slane %v1431, 1
      %v1434 = vsel %vm1401, %v1268, %v1364
      %v1436 = vrot.slane %v1434, 2
      %v1437 = vsel %vm1405, %v1268, %v1364
      %v1439 = vrot.slane %v1437, 3
      %v1440 = vsel %vm1409, %v1268, %v1364
      %v1442 = vrot.slane %v1440, 4
      %v1443 = vsel %vm1413, %v1268, %v1364
      %v1445 = vrot.slane %v1443, 5
      %v1446 = vsel %vm1417, %v1268, %v1364
      %v1448 = vrot.slane %v1446, 6
      %v1449 = vsel %vm1421, %v1364, %v1268
      %v1451 = vrot.slane %v1449, 7
      %v1454 = vsel %vm753, %v1300, %v1365
      %v1457 = vsel %vm753, %v1270, %v1366
      %v1458 = vsel %vm1397, %v1270, %v1366
      %v1460 = vrot.slane %v1458, 1
      %v1461 = vsel %vm1401, %v1270, %v1366
      %v1463 = vrot.slane %v1461, 2
      %v1464 = vsel %vm1405, %v1270, %v1366
      %v1466 = vrot.slane %v1464, 3
      %v1467 = vsel %vm1409, %v1270, %v1366
      %v1469 = vrot.slane %v1467, 4
      %v1470 = vsel %vm1413, %v1270, %v1366
      %v1472 = vrot.slane %v1470, 5
      %v1473 = vsel %vm1417, %v1270, %v1366
      %v1475 = vrot.slane %v1473, 6
      %v1476 = vsel %vm1421, %v1366, %v1270
      %v1478 = vrot.slane %v1476, 7
      %v1481 = vsel %vm753, %v1302, %v1367
      %v1484 = vsel %vm753, %v1272, %v1368
      %v1485 = vsel %vm1397, %v1272, %v1368
      %v1487 = vrot.slane %v1485, 1
      %v1488 = vsel %vm1401, %v1272, %v1368
      %v1490 = vrot.slane %v1488, 2
      %v1491 = vsel %vm1405, %v1272, %v1368
      %v1493 = vrot.slane %v1491, 3
      %v1494 = vsel %vm1409, %v1272, %v1368
      %v1496 = vrot.slane %v1494, 4
      %v1497 = vsel %vm1413, %v1272, %v1368
      %v1499 = vrot.slane %v1497, 5
      %v1500 = vsel %vm1417, %v1272, %v1368
      %v1502 = vrot.slane %v1500, 6
      %v1503 = vsel %vm1421, %v1368, %v1272
      %v1505 = vrot.slane %v1503, 7
      %v1508 = vsel %vm753, %v1304, %v1369
      %v1511 = vsel %vm753, %v1274, %v1370
      %v1512 = vsel %vm1397, %v1274, %v1370
      %v1514 = vrot.slane %v1512, 1
      %v1515 = vsel %vm1401, %v1274, %v1370
      %v1517 = vrot.slane %v1515, 2
      %v1518 = vsel %vm1405, %v1274, %v1370
      %v1520 = vrot.slane %v1518, 3
      %v1521 = vsel %vm1409, %v1274, %v1370
      %v1523 = vrot.slane %v1521, 4
      %v1524 = vsel %vm1413, %v1274, %v1370
      %v1526 = vrot.slane %v1524, 5
      %v1527 = vsel %vm1417, %v1274, %v1370
      %v1529 = vrot.slane %v1527, 6
      %v1530 = vsel %vm1421, %v1370, %v1274
      %v1532 = vrot.slane %v1530, 7
      %v1535 = vsel %vm753, %v1306, %v1371
      %v1538 = vsel %vm753, %v1276, %v1372
      %v1539 = vsel %vm1397, %v1276, %v1372
      %v1541 = vrot.slane %v1539, 1
      %v1542 = vsel %vm1401, %v1276, %v1372
      %v1544 = vrot.slane %v1542, 2
      %v1545 = vsel %vm1405, %v1276, %v1372
      %v1547 = vrot.slane %v1545, 3
      %v1548 = vsel %vm1409, %v1276, %v1372
      %v1550 = vrot.slane %v1548, 4
      %v1551 = vsel %vm1413, %v1276, %v1372
      %v1553 = vrot.slane %v1551, 5
      %v1554 = vsel %vm1417, %v1276, %v1372
      %v1556 = vrot.slane %v1554, 6
      %v1557 = vsel %vm1421, %v1372, %v1276
      %v1559 = vrot.slane %v1557, 7
      %v1562 = vsel %vm753, %v1308, %v1373
      %v1565 = vsel %vm753, %v1278, %v1374
      %v1566 = vsel %vm1397, %v1278, %v1374
      %v1568 = vrot.slane %v1566, 1
      %v1569 = vsel %vm1401, %v1278, %v1374
      %v1571 = vrot.slane %v1569, 2
      %v1572 = vsel %vm1405, %v1278, %v1374
      %v1574 = vrot.slane %v1572, 3
      %v1575 = vsel %vm1409, %v1278, %v1374
      %v1577 = vrot.slane %v1575, 4
      %v1578 = vsel %vm1413, %v1278, %v1374
      %v1580 = vrot.slane %v1578, 5
      %v1581 = vsel %vm1417, %v1278, %v1374
      %v1583 = vrot.slane %v1581, 6
      %v1584 = vsel %vm1421, %v1374, %v1278
      %v1586 = vrot.slane %v1584, 7
      %v1589 = vsel %vm753, %v1310, %v1375
      %v1592 = vsel %vm753, %v1280, %v1376
      %v1593 = vsel %vm1397, %v1280, %v1376
      %v1595 = vrot.slane %v1593, 1
      %v1596 = vsel %vm1401, %v1280, %v1376
      %v1598 = vrot.slane %v1596, 2
      %v1599 = vsel %vm1405, %v1280, %v1376
      %v1601 = vrot.slane %v1599, 3
      %v1602 = vsel %vm1409, %v1280, %v1376
      %v1604 = vrot.slane %v1602, 4
      %v1605 = vsel %vm1413, %v1280, %v1376
      %v1607 = vrot.slane %v1605, 5
      %v1608 = vsel %vm1417, %v1280, %v1376
      %v1610 = vrot.slane %v1608, 6
      %v1611 = vsel %vm1421, %v1376, %v1280
      %v1613 = vrot.slane %v1611, 7
      %v1616 = vsel %vm753, %v1312, %v1377
      %v1619 = vsel %vm753, %v1282, %v1378
      %v1620 = vsel %vm1397, %v1282, %v1378
      %v1622 = vrot.slane %v1620, 1
      %v1623 = vsel %vm1401, %v1282, %v1378
      %v1625 = vrot.slane %v1623, 2
      %v1626 = vsel %vm1405, %v1282, %v1378
      %v1628 = vrot.slane %v1626, 3
      %v1629 = vsel %vm1409, %v1282, %v1378
      %v1631 = vrot.slane %v1629, 4
      %v1632 = vsel %vm1413, %v1282, %v1378
      %v1634 = vrot.slane %v1632, 5
      %v1635 = vsel %vm1417, %v1282, %v1378
      %v1637 = vrot.slane %v1635, 6
      %v1638 = vsel %vm1421, %v1378, %v1282
      %v1640 = vrot.slane %v1638, 7
      %v1643 = vsel %vm753, %v1314, %v1379
      %v1646 = vsel %vm753, %v1284, %v1380
      %v1647 = vsel %vm1397, %v1284, %v1380
      %v1649 = vrot.slane %v1647, 1
      %v1650 = vsel %vm1401, %v1284, %v1380
      %v1652 = vrot.slane %v1650, 2
      %v1653 = vsel %vm1405, %v1284, %v1380
      %v1655 = vrot.slane %v1653, 3
      %v1656 = vsel %vm1409, %v1284, %v1380
      %v1658 = vrot.slane %v1656, 4
      %v1659 = vsel %vm1413, %v1284, %v1380
      %v1661 = vrot.slane %v1659, 5
      %v1662 = vsel %vm1417, %v1284, %v1380
      %v1664 = vrot.slane %v1662, 6
      %v1665 = vsel %vm1421, %v1380, %v1284
      %v1667 = vrot.slane %v1665, 7
      %v1670 = vsel %vm753, %v1316, %v1381
      %v1673 = vsel %vm753, %v1286, %v1382
      %v1674 = vsel %vm1397, %v1286, %v1382
      %v1676 = vrot.slane %v1674, 1
      %v1677 = vsel %vm1401, %v1286, %v1382
      %v1679 = vrot.slane %v1677, 2
      %v1680 = vsel %vm1405, %v1286, %v1382
      %v1682 = vrot.slane %v1680, 3
      %v1683 = vsel %vm1409, %v1286, %v1382
      %v1685 = vrot.slane %v1683, 4
      %v1686 = vsel %vm1413, %v1286, %v1382
      %v1688 = vrot.slane %v1686, 5
      %v1689 = vsel %vm1417, %v1286, %v1382
      %v1691 = vrot.slane %v1689, 6
      %v1692 = vsel %vm1421, %v1382, %v1286
      %v1694 = vrot.slane %v1692, 7
      %v1697 = vsel %vm753, %v1318, %v1383
      %v1700 = vsel %vm753, %v1288, %v1384
      %v1701 = vsel %vm1397, %v1288, %v1384
      %v1703 = vrot.slane %v1701, 1
      %v1704 = vsel %vm1401, %v1288, %v1384
      %v1706 = vrot.slane %v1704, 2
      %v1707 = vsel %vm1405, %v1288, %v1384
      %v1709 = vrot.slane %v1707, 3
      %v1710 = vsel %vm1409, %v1288, %v1384
      %v1712 = vrot.slane %v1710, 4
      %v1713 = vsel %vm1413, %v1288, %v1384
      %v1715 = vrot.slane %v1713, 5
      %v1716 = vsel %vm1417, %v1288, %v1384
      %v1718 = vrot.slane %v1716, 6
      %v1719 = vsel %vm1421, %v1384, %v1288
      %v1721 = vrot.slane %v1719, 7
      %v1724 = vsel %vm753, %v1320, %v1385
      %v1727 = vsel %vm753, %v1290, %v1386
      %v1728 = vsel %vm1397, %v1290, %v1386
      %v1730 = vrot.slane %v1728, 1
      %v1731 = vsel %vm1401, %v1290, %v1386
      %v1733 = vrot.slane %v1731, 2
      %v1734 = vsel %vm1405, %v1290, %v1386
      %v1736 = vrot.slane %v1734, 3
      %v1737 = vsel %vm1409, %v1290, %v1386
      %v1739 = vrot.slane %v1737, 4
      %v1740 = vsel %vm1413, %v1290, %v1386
      %v1742 = vrot.slane %v1740, 5
      %v1743 = vsel %vm1417, %v1290, %v1386
      %v1745 = vrot.slane %v1743, 6
      %v1746 = vsel %vm1421, %v1386, %v1290
      %v1748 = vrot.slane %v1746, 7
      %v1751 = vsel %vm753, %v1322, %v1387
      %v1754 = vsel %vm753, %v1292, %v1388
      %v1755 = vsel %vm1397, %v1292, %v1388
      %v1757 = vrot.slane %v1755, 1
      %v1758 = vsel %vm1401, %v1292, %v1388
      %v1760 = vrot.slane %v1758, 2
      %v1761 = vsel %vm1405, %v1292, %v1388
      %v1763 = vrot.slane %v1761, 3
      %v1764 = vsel %vm1409, %v1292, %v1388
      %v1766 = vrot.slane %v1764, 4
      %v1767 = vsel %vm1413, %v1292, %v1388
      %v1769 = vrot.slane %v1767, 5
      %v1770 = vsel %vm1417, %v1292, %v1388
      %v1772 = vrot.slane %v1770, 6
      %v1773 = vsel %vm1421, %v1388, %v1292
      %v1775 = vrot.slane %v1773, 7
      %v1778 = vsel %vm753, %v1324, %v1389
      %v1781 = vsel %vm753, %v1294, %v1390
      %v1782 = vsel %vm1397, %v1294, %v1390
      %v1784 = vrot.slane %v1782, 1
      %v1785 = vsel %vm1401, %v1294, %v1390
      %v1787 = vrot.slane %v1785, 2
      %v1788 = vsel %vm1405, %v1294, %v1390
      %v1790 = vrot.slane %v1788, 3
      %v1791 = vsel %vm1409, %v1294, %v1390
      %v1793 = vrot.slane %v1791, 4
      %v1794 = vsel %vm1413, %v1294, %v1390
      %v1796 = vrot.slane %v1794, 5
      %v1797 = vsel %vm1417, %v1294, %v1390
      %v1799 = vrot.slane %v1797, 6
      %v1800 = vsel %vm1421, %v1390, %v1294
      %v1802 = vrot.slane %v1800, 7
      %v1805 = vsel %vm753, %v1326, %v1391
      %v1808 = vsel %vm753, %v1296, %v1392
      %v1809 = vsel %vm1397, %v1296, %v1392
      %v1811 = vrot.slane %v1809, 1
      %v1812 = vsel %vm1401, %v1296, %v1392
      %v1814 = vrot.slane %v1812, 2
      %v1815 = vsel %vm1405, %v1296, %v1392
      %v1817 = vrot.slane %v1815, 3
      %v1818 = vsel %vm1409, %v1296, %v1392
      %v1820 = vrot.slane %v1818, 4
      %v1821 = vsel %vm1413, %v1296, %v1392
      %v1823 = vrot.slane %v1821, 5
      %v1824 = vsel %vm1417, %v1296, %v1392
      %v1826 = vrot.slane %v1824, 6
      %v1827 = vsel %vm1421, %v1392, %v1296
      %v1829 = vrot.slane %v1827, 7
      %v1832 = vsel %vm753, %v1328, %v1393
      %s1833 = scalar_lea.vmem [#allocation1], 1
      %1834 = vst [vmem:[%s1833] ss:$9 sm:$0xff] %v1396
      %s1836 = scalar_lea.vmem [#allocation1], 2
      %1837 = vst [vmem:[%s1836] ss:$9 sm:$0xff] %v1400
      %s1839 = scalar_lea.vmem [#allocation1], 3
      %1840 = vst [vmem:[%s1839] ss:$9 sm:$0xff] %v1404
      %s1842 = scalar_lea.vmem [#allocation1], 4
      %1843 = vst [vmem:[%s1842] ss:$9 sm:$0xff] %v1408
      %s1845 = scalar_lea.vmem [#allocation1], 5
      %1846 = vst [vmem:[%s1845] ss:$9 sm:$0xff] %v1412
      %s1848 = scalar_lea.vmem [#allocation1], 6
      %1849 = vst [vmem:[%s1848] ss:$9 sm:$0xff] %v1416
      %s1851 = scalar_lea.vmem [#allocation1], 7
      %1852 = vst [vmem:[%s1851] ss:$9 sm:$0xff] %v1420
      %v1853 = vld [vmem:[#allocation1] sm:$0xff]
      %v1854 = vld [vmem:[#allocation1 + $0x9] sm:$0xff]
      %1856 = vst [vmem:[#allocation1] ss:$9 sm:$0xff] %v1424
      %1857 = vst [vmem:[%s1833] ss:$9 sm:$0xff] %v1427
      %1858 = vst [vmem:[%s1836] ss:$9 sm:$0xff] %v1430
      %1860 = vst [vmem:[%s1839] ss:$9 sm:$0xff] %v1433
      %1862 = vst [vmem:[%s1842] ss:$9 sm:$0xff] %v1436
      %1864 = vst [vmem:[%s1845] ss:$9 sm:$0xff] %v1439
      %1866 = vst [vmem:[%s1848] ss:$9 sm:$0xff] %v1442
      %1868 = vst [vmem:[%s1851] ss:$9 sm:$0xff] %v1445
      %v1869 = vld [vmem:[#allocation1] sm:$0xff]
      %v1871 = vld [vmem:[#allocation1 + $0x9] sm:$0xff]
      %1874 = vst [vmem:[#allocation1] ss:$9 sm:$0xff] %v1448
      %1876 = vst [vmem:[%s1833] ss:$9 sm:$0xff] %v1451
      %1877 = vst [vmem:[%s1836] ss:$9 sm:$0xff] %v1454
      %1878 = vst [vmem:[%s1839] ss:$9 sm:$0xff] %v1457
      %1880 = vst [vmem:[%s1842] ss:$9 sm:$0xff] %v1460
      %1882 = vst [vmem:[%s1845] ss:$9 sm:$0xff] %v1463
      %1884 = vst [vmem:[%s1848] ss:$9 sm:$0xff] %v1466
      %1886 = vst [vmem:[%s1851] ss:$9 sm:$0xff] %v1469
      %v1887 = vld [vmem:[#allocation1] sm:$0xff]
      %v1889 = vld [vmem:[#allocation1 + $0x9] sm:$0xff]
      %1892 = vst [vmem:[#allocation1] ss:$9 sm:$0xff] %v1472
      %1894 = vst [vmem:[%s1833] ss:$9 sm:$0xff] %v1475
      %1896 = vst [vmem:[%s1836] ss:$9 sm:$0xff] %v1478
      %1897 = vst [vmem:[%s1839] ss:$9 sm:$0xff] %v1481
      %1898 = vst [vmem:[%s1842] ss:$9 sm:$0xff] %v1484
      %1900 = vst [vmem:[%s1845] ss:$9 sm:$0xff] %v1487
      %1902 = vst [vmem:[%s1848] ss:$9 sm:$0xff] %v1490
      %1904 = vst [vmem:[%s1851] ss:$9 sm:$0xff] %v1493
      %v1905 = vld [vmem:[#allocation1] sm:$0xff]
      %v1907 = vld [vmem:[#allocation1 + $0x9] sm:$0xff]
      %1910 = vst [vmem:[#allocation1] ss:$9 sm:$0xff] %v1496
      %1912 = vst [vmem:[%s1833] ss:$9 sm:$0xff] %v1499
      %1914 = vst [vmem:[%s1836] ss:$9 sm:$0xff] %v1502
      %1916 = vst [vmem:[%s1839] ss:$9 sm:$0xff] %v1505
      %1917 = vst [vmem:[%s1842] ss:$9 sm:$0xff] %v1508
      %1918 = vst [vmem:[%s1845] ss:$9 sm:$0xff] %v1511
      %1920 = vst [vmem:[%s1848] ss:$9 sm:$0xff] %v1514
      %1922 = vst [vmem:[%s1851] ss:$9 sm:$0xff] %v1517
      %v1923 = vld [vmem:[#allocation1] sm:$0xff]
      %v1925 = vld [vmem:[#allocation1 + $0x9] sm:$0xff]
      %1928 = vst [vmem:[#allocation1] ss:$9 sm:$0xff] %v1520
      %1930 = vst [vmem:[%s1833] ss:$9 sm:$0xff] %v1523
      %1932 = vst [vmem:[%s1836] ss:$9 sm:$0xff] %v1526
      %1934 = vst [vmem:[%s1839] ss:$9 sm:$0xff] %v1529
      %1936 = vst [vmem:[%s1842] ss:$9 sm:$0xff] %v1532
      %1937 = vst [vmem:[%s1845] ss:$9 sm:$0xff] %v1535
      %1938 = vst [vmem:[%s1848] ss:$9 sm:$0xff] %v1538
      %1940 = vst [vmem:[%s1851] ss:$9 sm:$0xff] %v1541
      %v1941 = vld [vmem:[#allocation1] sm:$0xff]
      %v1943 = vld [vmem:[#allocation1 + $0x9] sm:$0xff]
      %1946 = vst [vmem:[#allocation1] ss:$9 sm:$0xff] %v1544
      %1948 = vst [vmem:[%s1833] ss:$9 sm:$0xff] %v1547
      %1950 = vst [vmem:[%s1836] ss:$9 sm:$0xff] %v1550
      %1952 = vst [vmem:[%s1839] ss:$9 sm:$0xff] %v1553
      %1954 = vst [vmem:[%s1842] ss:$9 sm:$0xff] %v1556
      %1956 = vst [vmem:[%s1845] ss:$9 sm:$0xff] %v1559
      %1957 = vst [vmem:[%s1848] ss:$9 sm:$0xff] %v1562
      %1958 = vst [vmem:[%s1851] ss:$9 sm:$0xff] %v1565
      %v1959 = vld [vmem:[#allocation1] sm:$0xff]
      %v1961 = vld [vmem:[#allocation1 + $0x9] sm:$0xff]
      %1964 = vst [vmem:[#allocation1] ss:$9 sm:$0xff] %v1568
      %1966 = vst [vmem:[%s1833] ss:$9 sm:$0xff] %v1571
      %1968 = vst [vmem:[%s1836] ss:$9 sm:$0xff] %v1574
      %1970 = vst [vmem:[%s1839] ss:$9 sm:$0xff] %v1577
      %1972 = vst [vmem:[%s1842] ss:$9 sm:$0xff] %v1580
      %1974 = vst [vmem:[%s1845] ss:$9 sm:$0xff] %v1583
      %1976 = vst [vmem:[%s1848] ss:$9 sm:$0xff] %v1586
      %1977 = vst [vmem:[%s1851] ss:$9 sm:$0xff] %v1589
      %v1978 = vld [vmem:[#allocation1] sm:$0xff]
      %v1980 = vld [vmem:[#allocation1 + $0x9] sm:$0xff]
      %1982 = vst [vmem:[#allocation1] ss:$9 sm:$0xff] %v1592
      %1984 = vst [vmem:[%s1833] ss:$9 sm:$0xff] %v1595
      %1986 = vst [vmem:[%s1836] ss:$9 sm:$0xff] %v1598
      %1988 = vst [vmem:[%s1839] ss:$9 sm:$0xff] %v1601
      %1990 = vst [vmem:[%s1842] ss:$9 sm:$0xff] %v1604
      %1992 = vst [vmem:[%s1845] ss:$9 sm:$0xff] %v1607
      %1994 = vst [vmem:[%s1848] ss:$9 sm:$0xff] %v1610
      %1996 = vst [vmem:[%s1851] ss:$9 sm:$0xff] %v1613
      %v1997 = vld [vmem:[#allocation1] sm:$0xff]
      %v1999 = vld [vmem:[#allocation1 + $0x9] sm:$0xff]
      %2001 = vst [vmem:[#allocation1] ss:$9 sm:$0xff] %v1616
      %2002 = vst [vmem:[%s1833] ss:$9 sm:$0xff] %v1619
      %2004 = vst [vmem:[%s1836] ss:$9 sm:$0xff] %v1622
      %2006 = vst [vmem:[%s1839] ss:$9 sm:$0xff] %v1625
      %2008 = vst [vmem:[%s1842] ss:$9 sm:$0xff] %v1628
      %2010 = vst [vmem:[%s1845] ss:$9 sm:$0xff] %v1631
      %2012 = vst [vmem:[%s1848] ss:$9 sm:$0xff] %v1634
      %2014 = vst [vmem:[%s1851] ss:$9 sm:$0xff] %v1637
      %v2015 = vld [vmem:[#allocation1] sm:$0xff]
      %v2017 = vld [vmem:[#allocation1 + $0x9] sm:$0xff]
      %2020 = vst [vmem:[#allocation1] ss:$9 sm:$0xff] %v1640
      %2021 = vst [vmem:[%s1833] ss:$9 sm:$0xff] %v1643
      %2022 = vst [vmem:[%s1836] ss:$9 sm:$0xff] %v1646
      %2024 = vst [vmem:[%s1839] ss:$9 sm:$0xff] %v1649
      %2026 = vst [vmem:[%s1842] ss:$9 sm:$0xff] %v1652
      %2028 = vst [vmem:[%s1845] ss:$9 sm:$0xff] %v1655
      %2030 = vst [vmem:[%s1848] ss:$9 sm:$0xff] %v1658
      %2032 = vst [vmem:[%s1851] ss:$9 sm:$0xff] %v1661
      %v2033 = vld [vmem:[#allocation1] sm:$0xff]
      %v2035 = vld [vmem:[#allocation1 + $0x9] sm:$0xff]
      %2038 = vst [vmem:[#allocation1] ss:$9 sm:$0xff] %v1664
      %2040 = vst [vmem:[%s1833] ss:$9 sm:$0xff] %v1667
      %2041 = vst [vmem:[%s1836] ss:$9 sm:$0xff] %v1670
      %2042 = vst [vmem:[%s1839] ss:$9 sm:$0xff] %v1673
      %2044 = vst [vmem:[%s1842] ss:$9 sm:$0xff] %v1676
      %2046 = vst [vmem:[%s1845] ss:$9 sm:$0xff] %v1679
      %2048 = vst [vmem:[%s1848] ss:$9 sm:$0xff] %v1682
      %2050 = vst [vmem:[%s1851] ss:$9 sm:$0xff] %v1685
      %v2051 = vld [vmem:[#allocation1] sm:$0xff]
      %v2053 = vld [vmem:[#allocation1 + $0x9] sm:$0xff]
      %2056 = vst [vmem:[#allocation1] ss:$9 sm:$0xff] %v1688
      %2058 = vst [vmem:[%s1833] ss:$9 sm:$0xff] %v1691
      %2060 = vst [vmem:[%s1836] ss:$9 sm:$0xff] %v1694
      %2061 = vst [vmem:[%s1839] ss:$9 sm:$0xff] %v1697
      %2062 = vst [vmem:[%s1842] ss:$9 sm:$0xff] %v1700
      %2064 = vst [vmem:[%s1845] ss:$9 sm:$0xff] %v1703
      %2066 = vst [vmem:[%s1848] ss:$9 sm:$0xff] %v1706
      %2068 = vst [vmem:[%s1851] ss:$9 sm:$0xff] %v1709
      %v2069 = vld [vmem:[#allocation1] sm:$0xff]
      %v2071 = vld [vmem:[#allocation1 + $0x9] sm:$0xff]
      %2074 = vst [vmem:[#allocation1] ss:$9 sm:$0xff] %v1712
      %2076 = vst [vmem:[%s1833] ss:$9 sm:$0xff] %v1715
      %2078 = vst [vmem:[%s1836] ss:$9 sm:$0xff] %v1718
      %2080 = vst [vmem:[%s1839] ss:$9 sm:$0xff] %v1721
      %2081 = vst [vmem:[%s1842] ss:$9 sm:$0xff] %v1724
      %2082 = vst [vmem:[%s1845] ss:$9 sm:$0xff] %v1727
      %2084 = vst [vmem:[%s1848] ss:$9 sm:$0xff] %v1730
      %2086 = vst [vmem:[%s1851] ss:$9 sm:$0xff] %v1733
      %v2087 = vld [vmem:[#allocation1] sm:$0xff]
      %v2089 = vld [vmem:[#allocation1 + $0x9] sm:$0xff]
      %2092 = vst [vmem:[#allocation1] ss:$9 sm:$0xff] %v1736
      %2094 = vst [vmem:[%s1833] ss:$9 sm:$0xff] %v1739
      %2096 = vst [vmem:[%s1836] ss:$9 sm:$0xff] %v1742
      %2098 = vst [vmem:[%s1839] ss:$9 sm:$0xff] %v1745
      %2100 = vst [vmem:[%s1842] ss:$9 sm:$0xff] %v1748
      %2101 = vst [vmem:[%s1845] ss:$9 sm:$0xff] %v1751
      %2102 = vst [vmem:[%s1848] ss:$9 sm:$0xff] %v1754
      %2104 = vst [vmem:[%s1851] ss:$9 sm:$0xff] %v1757
      %v2105 = vld [vmem:[#allocation1] sm:$0xff]
      %v2107 = vld [vmem:[#allocation1 + $0x9] sm:$0xff]
      %2110 = vst [vmem:[#allocation1] ss:$9 sm:$0xff] %v1760
      %2112 = vst [vmem:[%s1833] ss:$9 sm:$0xff] %v1763
      %2114 = vst [vmem:[%s1836] ss:$9 sm:$0xff] %v1766
      %2116 = vst [vmem:[%s1839] ss:$9 sm:$0xff] %v1769
      %2118 = vst [vmem:[%s1842] ss:$9 sm:$0xff] %v1772
      %2120 = vst [vmem:[%s1845] ss:$9 sm:$0xff] %v1775
      %2121 = vst [vmem:[%s1848] ss:$9 sm:$0xff] %v1778
      %2122 = vst [vmem:[%s1851] ss:$9 sm:$0xff] %v1781
      %v2123 = vld [vmem:[#allocation1] sm:$0xff]
      %v2125 = vld [vmem:[#allocation1 + $0x9] sm:$0xff]
      %2128 = vst [vmem:[#allocation1] ss:$9 sm:$0xff] %v1784
      %2130 = vst [vmem:[%s1833] ss:$9 sm:$0xff] %v1787
      %2132 = vst [vmem:[%s1836] ss:$9 sm:$0xff] %v1790
      %2134 = vst [vmem:[%s1839] ss:$9 sm:$0xff] %v1793
      %2136 = vst [vmem:[%s1842] ss:$9 sm:$0xff] %v1796
      %2138 = vst [vmem:[%s1845] ss:$9 sm:$0xff] %v1799
      %2140 = vst [vmem:[%s1848] ss:$9 sm:$0xff] %v1802
      %2141 = vst [vmem:[%s1851] ss:$9 sm:$0xff] %v1805
      %v2142 = vld [vmem:[#allocation1] sm:$0xff]
      %v2144 = vld [vmem:[#allocation1 + $0x9] sm:$0xff]
      %2146 = vst [vmem:[#allocation1] ss:$9 sm:$0xff] %v1808
      %2148 = vst [vmem:[%s1833] ss:$9 sm:$0xff] %v1811
      %2150 = vst [vmem:[%s1836] ss:$9 sm:$0xff] %v1814
      %2152 = vst [vmem:[%s1839] ss:$9 sm:$0xff] %v1817
      %2154 = vst [vmem:[%s1842] ss:$9 sm:$0xff] %v1820
      %2156 = vst [vmem:[%s1845] ss:$9 sm:$0xff] %v1823
      %2158 = vst [vmem:[%s1848] ss:$9 sm:$0xff] %v1826
      %2160 = vst [vmem:[%s1851] ss:$9 sm:$0xff] %v1829
      %v2161 = vld [vmem:[#allocation1] sm:$0xff]
      %v2163 = vld [vmem:[#allocation1 + $0x9] sm:$0xff]
      %2165 = vst [vmem:[#allocation1] ss:$9 sm:$0xff] %v1832
      %v2166 = vld [vmem:[#allocation1] sm:$0xff]
      %v2167 = vld [vmem:[#allocation1 + $0x9] sm:$0xff]
      %v2168 = vsel %vm753, 0, %v1853
      %v2169 = vsel %vm753, 0, %v1854
      %v2170 = vsel %vm753, %v2166, 0
      %v2171 = vsel %vm753, %v2167, 0
      %v2175 = vunpack.c.l.b16 0
      %v2176 = vunpack.c.h.b16 0
      %v2177 = vunpack.c.l.b16 %v2168
      %v2178 = vunpack.c.l.b16 %v2169
      %v2179 = vunpack.c.h.b16 %v2168
      %v2180 = vunpack.c.h.b16 %v2169
      %v2181 = vunpack.c.l.b16 %v1869
      %v2182 = vunpack.c.l.b16 %v1871
      %v2183 = vunpack.c.h.b16 %v1869
      %v2184 = vunpack.c.h.b16 %v1871
      %v2185 = vunpack.c.l.b16 %v1887
      %v2186 = vunpack.c.l.b16 %v1889
      %v2187 = vunpack.c.h.b16 %v1887
      %v2188 = vunpack.c.h.b16 %v1889
      %v2189 = vunpack.c.l.b16 %v1905
      %v2190 = vunpack.c.l.b16 %v1907
      %v2191 = vunpack.c.h.b16 %v1905
      %v2192 = vunpack.c.h.b16 %v1907
      %v2193 = vunpack.c.l.b16 %v1923
      %v2194 = vunpack.c.l.b16 %v1925
      %v2195 = vunpack.c.h.b16 %v1923
      %v2196 = vunpack.c.h.b16 %v1925
      %v2197 = vunpack.c.l.b16 %v1941
      %v2198 = vunpack.c.l.b16 %v1943
      %v2199 = vunpack.c.h.b16 %v1941
      %v2200 = vunpack.c.h.b16 %v1943
      %v2201 = vunpack.c.l.b16 %v1959
      %v2202 = vunpack.c.l.b16 %v1961
      %v2203 = vunpack.c.h.b16 %v1959
      %v2204 = vunpack.c.h.b16 %v1961
      %v2205 = vunpack.c.l.b16 %v1978
      %v2206 = vunpack.c.l.b16 %v1980
      %v2207 = vunpack.c.h.b16 %v1978
      %v2208 = vunpack.c.h.b16 %v1980
      %v2209 = vunpack.c.l.b16 %v1997
      %v2210 = vunpack.c.l.b16 %v1999
      %v2211 = vunpack.c.h.b16 %v1997
      %v2212 = vunpack.c.h.b16 %v1999
      %v2213 = vunpack.c.l.b16 %v2015
      %v2214 = vunpack.c.l.b16 %v2017
      %v2215 = vunpack.c.h.b16 %v2015
      %v2216 = vunpack.c.h.b16 %v2017
      %v2217 = vunpack.c.l.b16 %v2033
      %v2218 = vunpack.c.l.b16 %v2035
      %v2219 = vpack.c.b16 %v2175, %v2175
      %v2220 = vpack.c.b16 %v2176, %v2176
      %v2221 = vpack.c.b16 %v2178, %v2177
      %v2222 = vpack.c.b16 %v2180, %v2179
      %v2223 = vpack.c.b16 %v2182, %v2181
      %v2224 = vpack.c.b16 %v2184, %v2183
      %v2225 = vpack.c.b16 %v2186, %v2185
      %v2226 = vpack.c.b16 %v2188, %v2187
      %v2227 = vpack.c.b16 %v2190, %v2189
      %v2228 = vpack.c.b16 %v2192, %v2191
      %v2229 = vpack.c.b16 %v2194, %v2193
      %v2230 = vpack.c.b16 %v2196, %v2195
      %v2231 = vpack.c.b16 %v2198, %v2197
      %v2232 = vpack.c.b16 %v2200, %v2199
      %v2233 = vpack.c.b16 %v2202, %v2201
      %v2234 = vpack.c.b16 %v2204, %v2203
      %v2235 = vpack.c.b16 %v2206, %v2205
      %v2236 = vpack.c.b16 %v2208, %v2207
      %v2237 = vpack.c.b16 %v2210, %v2209
      %v2238 = vpack.c.b16 %v2212, %v2211
      %v2239 = vpack.c.b16 %v2214, %v2213
      %v2240 = vpack.c.b16 %v2216, %v2215
      %v2241 = vpack.c.b16 %v2218, %v2217
      %2265 = vst [vmem:[%s251] sm:$0xff] %v2219
      %2266 = vst [vmem:[%s251 + $0x8] sm:$0xff] %v2220
      %2267 = vst [vmem:[%s251 + $0x10] sm:$0xff] %v2221
      %2268 = vst [vmem:[%s251 + $0x18] sm:$0xff] %v2222
      %2269 = vst [vmem:[%s251 + $0x20] sm:$0xff] %v2223
      %2270 = vst [vmem:[%s251 + $0x28] sm:$0xff] %v2224
      %2271 = vst [vmem:[%s251 + $0x30] sm:$0xff] %v2225
      %2272 = vst [vmem:[%s251 + $0x38] sm:$0xff] %v2226
      %2273 = vst [vmem:[%s251 + $0x40] sm:$0xff] %v2227
      %2274 = vst [vmem:[%s251 + $0x48] sm:$0xff] %v2228
      %2275 = vst [vmem:[%s251 + $0x50] sm:$0xff] %v2229
      %2276 = vst [vmem:[%s251 + $0x58] sm:$0xff] %v2230
      %2277 = vst [vmem:[%s251 + $0x60] sm:$0xff] %v2231
      %2278 = vst [vmem:[%s251 + $0x68] sm:$0xff] %v2232
      %2279 = vst [vmem:[%s251 + $0x70] sm:$0xff] %v2233
      %2280 = vst [vmem:[%s251 + $0x78] sm:$0xff] %v2234
      %2281 = vst [vmem:[%s251 + $0x80] sm:$0xff] %v2235
      %2282 = vst [vmem:[%s251 + $0x88] sm:$0xff] %v2236
      %2283 = vst [vmem:[%s251 + $0x90] sm:$0xff] %v2237
      %2284 = vst [vmem:[%s251 + $0x98] sm:$0xff] %v2238
      %2285 = vst [vmem:[%s251 + $0xa0] sm:$0xff] %v2239
      %2286 = vst [vmem:[%s251 + $0xa8] sm:$0xff] %v2240
      %2287 = vst [vmem:[%s251 + $0xb0] sm:$0xff] %v2241
      %v2290 = vunpack.c.h.b16 %v2033
      %v2291 = vunpack.c.h.b16 %v2035
      %v2292 = vunpack.c.l.b16 %v2051
      %v2293 = vunpack.c.l.b16 %v2053
      %v2294 = vunpack.c.h.b16 %v2051
      %v2295 = vunpack.c.h.b16 %v2053
      %v2296 = vunpack.c.l.b16 %v2069
      %v2297 = vunpack.c.l.b16 %v2071
      %v2298 = vunpack.c.h.b16 %v2069
      %v2299 = vunpack.c.h.b16 %v2071
      %v2300 = vunpack.c.l.b16 %v2087
      %v2301 = vunpack.c.l.b16 %v2089
      %v2302 = vunpack.c.h.b16 %v2087
      %v2303 = vunpack.c.h.b16 %v2089
      %v2304 = vunpack.c.l.b16 %v2105
      %v2305 = vunpack.c.l.b16 %v2107
      %v2306 = vunpack.c.h.b16 %v2105
      %v2307 = vunpack.c.h.b16 %v2107
      %v2308 = vunpack.c.l.b16 %v2123
      %v2309 = vunpack.c.l.b16 %v2125
      %v2310 = vunpack.c.h.b16 %v2123
      %v2311 = vunpack.c.h.b16 %v2125
      %v2312 = vunpack.c.l.b16 %v2142
      %v2313 = vunpack.c.l.b16 %v2144
      %v2314 = vunpack.c.h.b16 %v2142
      %v2315 = vunpack.c.h.b16 %v2144
      %v2316 = vunpack.c.l.b16 %v2161
      %v2317 = vunpack.c.l.b16 %v2163
      %v2318 = vunpack.c.h.b16 %v2161
      %v2319 = vunpack.c.h.b16 %v2163
      %v2320 = vunpack.c.l.b16 %v2170
      %v2321 = vunpack.c.l.b16 %v2171
      %v2322 = vunpack.c.h.b16 %v2170
      %v2323 = vunpack.c.h.b16 %v2171
      %v2324 = vpack.c.b16 %v2291, %v2290
      %v2325 = vpack.c.b16 %v2293, %v2292
      %v2326 = vpack.c.b16 %v2295, %v2294
      %v2327 = vpack.c.b16 %v2297, %v2296
      %v2328 = vpack.c.b16 %v2299, %v2298
      %v2329 = vpack.c.b16 %v2301, %v2300
      %v2330 = vpack.c.b16 %v2303, %v2302
      %v2331 = vpack.c.b16 %v2305, %v2304
      %v2332 = vpack.c.b16 %v2307, %v2306
      %v2333 = vpack.c.b16 %v2309, %v2308
      %v2334 = vpack.c.b16 %v2311, %v2310
      %v2335 = vpack.c.b16 %v2313, %v2312
      %v2336 = vpack.c.b16 %v2315, %v2314
      %v2337 = vpack.c.b16 %v2317, %v2316
      %v2338 = vpack.c.b16 %v2319, %v2318
      %v2339 = vpack.c.b16 %v2321, %v2320
      %v2340 = vpack.c.b16 %v2323, %v2322
      %s2358 = scalar_lea.vmem %s251, 184
      %2359 = vst [vmem:[%s2358] sm:$0xff] %v2237
      %2360 = vst [vmem:[%s2358 + $0x8] sm:$0xff] %v2238
      %2361 = vst [vmem:[%s2358 + $0x10] sm:$0xff] %v2239
      %2362 = vst [vmem:[%s2358 + $0x18] sm:$0xff] %v2240
      %2363 = vst [vmem:[%s2358 + $0x20] sm:$0xff] %v2241
      %2364 = vst [vmem:[%s2358 + $0x28] sm:$0xff] %v2324
      %2365 = vst [vmem:[%s2358 + $0x30] sm:$0xff] %v2325
      %2366 = vst [vmem:[%s2358 + $0x38] sm:$0xff] %v2326
      %2367 = vst [vmem:[%s2358 + $0x40] sm:$0xff] %v2327
      %2368 = vst [vmem:[%s2358 + $0x48] sm:$0xff] %v2328
      %2369 = vst [vmem:[%s2358 + $0x50] sm:$0xff] %v2329
      %2370 = vst [vmem:[%s2358 + $0x58] sm:$0xff] %v2330
      %2371 = vst [vmem:[%s2358 + $0x60] sm:$0xff] %v2331
      %2372 = vst [vmem:[%s2358 + $0x68] sm:$0xff] %v2332
      %2373 = vst [vmem:[%s2358 + $0x70] sm:$0xff] %v2333
      %2374 = vst [vmem:[%s2358 + $0x78] sm:$0xff] %v2334
      %2375 = vst [vmem:[%s2358 + $0x80] sm:$0xff] %v2335
      %2376 = vst [vmem:[%s2358 + $0x88] sm:$0xff] %v2336
      %2377 = vst [vmem:[%s2358 + $0x90] sm:$0xff] %v2337
      %2378 = vst [vmem:[%s2358 + $0x98] sm:$0xff] %v2338
      %2379 = vst [vmem:[%s2358 + $0xa0] sm:$0xff] %v2339
      %2380 = vst [vmem:[%s2358 + $0xa8] sm:$0xff] %v2340
      %2381 = vst [vmem:[%s2358 + $0xb0] sm:$0xff] %v2219
      %p2382 = scmp.lt.s32.totalorder %s17, 1
      %s2383 = scalar_select %p2382, %s17, 1
      %s2384 = smul.addr %s2383, 92
      %s2385 = smul.addr %s2384, 4
      %s2386 = scalar_lea.vmem %s6, %s2385
      // Predicated region
      $region45: #{ppm_forward.2} parent=43 // pred_check
        %p2387 = pneg %p166
      $region46: #{ppm_forward.2} parent=43 // pred_check_branch
        %2389 = sbr.rel (%p2387) target = $region48
      $region47: #{ppm_forward.2} parent=43 // pred_region
        _
      $region48: #{ppm_forward.2} parent=43 // pred_fallthru
        _
    $region44: #{ppm_forward.2} parent=5 // pred_fallthru
      _
    %p2390 = scmp.le.s32.totalorder 2, %s12
    // Predicated region
    $region49: #{ppm_forward.2} parent=5 // pred_check
      %p2391 = pneg %p2390
    $region50: #{ppm_forward.2} parent=5 // pred_check_branch
      %2393 = sbr.rel (%p2391) target = $region52
    $region51: #{ppm_forward.2} parent=5 // pred_region
      %s2394 = ssub.s32 %s12, 2
      // Predicated region
      $region53: #{ppm_forward.2} parent=51 // pred_check
        %p2395 = pneg %p172
      $region54: #{ppm_forward.2} parent=51 // pred_check_branch
        %2397 = sbr.rel (%p2395) target = $region56
      $region55: #{ppm_forward.2} parent=51 // pred_region
        %p2398 = scmp.lt.s32.totalorder %s18, 1
        %s2399 = scalar_select %p2398, %s18, 1
        %s2400 = smul.addr %s2399, 92
        %s2401 = smul.addr %s2400, 4
        %s2402 = scalar_lea.vmem %s6, %s2401
      $region56: #{ppm_forward.2} parent=51 // pred_fallthru
        _
    $region52: #{ppm_forward.2} parent=5 // pred_fallthru
      _
  $region6: #{ppm_forward.2} parent=0 // loop_footer
    %s16 = sadd.s32 1, %s12
  $region7: #{ppm_forward.2} parent=0 // loop_footer_branch
    %11 = sbr.rel target = $region3
  $region8: #{ppm_forward.2} parent=0 // loop_exit
    _

</llo_original>
